<compile_context>
chip_gen: v7x
topology: tpu7x:2x2x1
jax: 0.10.0
libtpu: 0.0.40
codegen_flags: <defaults>
</compile_context>

<pallas_src>
import functools

import jax
import jax.numpy as jnp
from jax.experimental import pallas as pl
from jax.experimental.pallas import tpu as pltpu

# `unit = len(ind2w)` in the original script (vocabulary size).  Unknown at
# translation time, so pick a small deterministic synthetic value.
UNIT = 16
IN_FEATURES = 10
HIDDEN = 1200
OUT_FEATURES = 20 * UNIT            # 320 (logical output width)


def _round_up(x: int, m: int) -> int:
    return -(-x // m) * m


# Lane-aligned padded dims (computed, not hardcoded, so a larger UNIT still works).
HIDDEN_PAD = _round_up(HIDDEN, 128)         # 1280
OUT_PAD = _round_up(OUT_FEATURES, 128)      # 384 for UNIT=16

TB_MAX = 512                                 # cap on batch rows per grid step


def _bf16_tanh_supported() -> bool:
    """v6e / v7x have a bf16 VPU/EUP (≈2x tanh rate); v5e and older do not."""
    try:
        kind = jax.devices()[0].device_kind.lower()
    except Exception:
        return False
    return any(tag in kind for tag in ("v6", "v7", "7x"))


def _choose_tb(batch: int) -> int:
    """Batch tile: >= 2 grid steps when possible (v7x: 2 TensorCores on the
    'parallel' axis), multiple of 8 (f32 sublane granule), capped at TB_MAX so
    the per-step x/h/o working set stays a few MiB."""
    half = pl.cdiv(batch, 2)
    tb = _round_up(max(half, 1), 8)
    return max(8, min(TB_MAX, tb))


def _mlp_kernel(x_ref, w1_ref, b1_ref, w2_ref, b2_ref, o_ref, *, bf16_tanh):
    # x_ref : (TB, 10)  f32        w1_ref: (10, HIDDEN_PAD)      bf16
    # b1_ref: (1, HIDDEN_PAD) f32  w2_ref: (HIDDEN_PAD, OUT_PAD) bf16
    # b2_ref: (1, OUT_PAD)    f32  o_ref : (TB, OUT_PAD)         out dtype
    x = x_ref[...].astype(jnp.bfloat16)
    h = jnp.dot(x, w1_ref[...], preferred_element_type=jnp.float32) + b1_ref[...]
    if bf16_tanh:
        # v6e/v7x: bf16 EUP doubles tanh throughput and halves the VMEM
        # traffic of the (TB, HIDDEN_PAD) intermediate; h is consumed by the
        # MXU in bf16 anyway.
        h = jnp.tanh(h.astype(jnp.bfloat16))
    else:
        # v5e: no bf16 VPU/EUP -> keep the transcendental in f32.
        h = jnp.tanh(h).astype(jnp.bfloat16)
    y = jnp.dot(h, w2_ref[...], preferred_element_type=jnp.float32) + b2_ref[...]
    o_ref[...] = y.astype(o_ref.dtype)


def prepare_params(w1, b1, w2, b2):
    """Pad params to lane-aligned shapes; weights -> bf16, biases stay f32."""
    w1p = jnp.pad(w1, ((0, 0), (0, HIDDEN_PAD - HIDDEN))).astype(jnp.bfloat16)
    b1p = jnp.pad(b1.reshape(1, HIDDEN),
                  ((0, 0), (0, HIDDEN_PAD - HIDDEN))).astype(jnp.float32)
    w2p = jnp.pad(w2, ((0, HIDDEN_PAD - HIDDEN),
                       (0, OUT_PAD - OUT_FEATURES))).astype(jnp.bfloat16)
    b2p = jnp.pad(b2.reshape(1, OUT_FEATURES),
                  ((0, 0), (0, OUT_PAD - OUT_FEATURES))).astype(jnp.float32)
    return w1p, b1p, w2p, b2p


def net_forward_padded(x, w1p, b1p, w2p, b2p, *, out_dtype=jnp.float32):
    """x: (B, 10) f32.  Returns the PADDED (Bp, OUT_PAD) output.

    Consumers should slice [:B, :OUT_FEATURES] lazily / fuse it into the next
    op instead of forcing an extra HBM round-trip here.  `out_dtype=bf16` can
    be used to halve store traffic (most valuable on v5e) if downstream
    tolerates it.  Note: padded batch rows hold tanh(b1)@w2+b2, not zeros —
    fine as long as this buffer is not aliased into a caller-owned array.
    """
    B = x.shape[0]
    tb = _choose_tb(B)
    Bp = _round_up(B, tb)
    if Bp != B:
        x = jnp.pad(x, ((0, Bp - B), (0, 0)))

    kernel = functools.partial(_mlp_kernel, bf16_tanh=_bf16_tanh_supported())

    # Weights/biases use constant block indices -> VMEM-resident across the
    # whole grid (one HBM load per call).  Single-buffering them
    # (pipeline_mode=pl.Buffered(1)) would save ~1 MiB more VMEM, but at
    # TB<=512 the working set already fits comfortably under the 32 MiB
    # limit, so default buffering is kept for compiler-version compatibility.
    out = pl.pallas_call(
        kernel,
        out_shape=jax.ShapeDtypeStruct((Bp, OUT_PAD), out_dtype),
        grid=(Bp // tb,),
        in_specs=[
            pl.BlockSpec((tb, IN_FEATURES), lambda i: (i, 0)),
            pl.BlockSpec((IN_FEATURES, HIDDEN_PAD), lambda i: (0, 0)),
            pl.BlockSpec((1, HIDDEN_PAD), lambda i: (0, 0)),
            pl.BlockSpec((HIDDEN_PAD, OUT_PAD), lambda i: (0, 0)),
            pl.BlockSpec((1, OUT_PAD), lambda i: (0, 0)),
        ],
        out_specs=pl.BlockSpec((tb, OUT_PAD), lambda i: (i, 0)),
        compiler_params=pltpu.CompilerParams(
            dimension_semantics=("parallel",),      # v7x: shard batch over 2 TCs
            vmem_limit_bytes=32 << 20,              # scaled for TB up to 512
        ),
    )(x, w1p, b1p, w2p, b2p)
    return out


def net_forward(x, w1p, b1p, w2p, b2p):
    """Convenience wrapper returning the logical (B, 20*UNIT) output."""
    B = x.shape[0]
    return net_forward_padded(x, w1p, b1p, w2p, b2p)[:B, :OUT_FEATURES]


def init_params(key):
    """Deterministic init mimicking nn.Linear's U(-1/sqrt(fan_in), 1/sqrt(fan_in))."""
    k1, k2, k3, k4 = jax.random.split(key, 4)
    lim1 = 1.0 / jnp.sqrt(jnp.float32(IN_FEATURES))
    lim2 = 1.0 / jnp.sqrt(jnp.float32(HIDDEN))
    # Weights stored (in, out): transpose of PyTorch's (out, in) layout.
    w1 = jax.random.uniform(k1, (IN_FEATURES, HIDDEN), jnp.float32, -lim1, lim1)
    b1 = jax.random.uniform(k2, (HIDDEN,), jnp.float32, -lim1, lim1)
    w2 = jax.random.uniform(k3, (HIDDEN, OUT_FEATURES), jnp.float32, -lim2, lim2)
    b2 = jax.random.uniform(k4, (OUT_FEATURES,), jnp.float32, -lim2, lim2)
    return w1, b1, w2, b2


def net_reference(x, w1, b1, w2, b2, *, bf16_tanh):
    """Pure-JAX reference emulating the kernel's bf16-weight / f32-acc numerics."""
    f32 = jnp.float32
    hp = jax.lax.Precision.HIGHEST
    xb = x.astype(jnp.bfloat16).astype(f32)
    w1b = w1.astype(jnp.bfloat16).astype(f32)
    w2b = w2.astype(jnp.bfloat16).astype(f32)
    h = jnp.dot(xb, w1b, precision=hp) + b1.reshape(1, -1)
    if bf16_tanh:
        hb = jnp.tanh(h.astype(jnp.bfloat16)).astype(f32)
    else:
        hb = jnp.tanh(h).astype(jnp.bfloat16).astype(f32)
    return jnp.dot(hb, w2b, precision=hp) + b2.reshape(1, -1)


if __name__ == "__main__":
    key = jax.random.PRNGKey(0)
    k_params, k_x = jax.random.split(key)
    w1, b1, w2, b2 = init_params(k_params)
    w1p, b1p, w2p, b2p = prepare_params(w1, b1, w2, b2)

    # B not a multiple of the tile on purpose: exercises batch padding and a
    # 2-step grid (so the v7x parallel-axis split is exercised too).
    B = 200
    x = jax.random.normal(k_x, (B, IN_FEATURES), jnp.float32)

    out_padded = net_forward_padded(x, w1p, b1p, w2p, b2p)
    out_padded = jax.block_until_ready(out_padded)

    # Slice to the logical shape only for the correctness check; real
    # consumers should keep using the padded buffer (or fuse the slice).
    out = out_padded[:B, :OUT_FEATURES]
    ref = net_reference(x, w1, b1, w2, b2, bf16_tanh=_bf16_tanh_supported())
    assert out.shape == (B, OUT_FEATURES), out.shape
    assert jnp.allclose(out, ref, atol=1e-2, rtol=1e-2), "mismatch vs. JAX reference"

    print("KERNEL_OK")
</pallas_src>

<mosaic_0001>
module attributes {stable_mosaic.version = 11 : i64} {
  func.func @_mlp_kernel(%arg0: i32, %arg1: memref<104x10xf32, #tpu.memory_space<vmem>>, %arg2: memref<10x1280xbf16, #tpu.memory_space<vmem>>, %arg3: memref<1x1280xf32, #tpu.memory_space<vmem>>, %arg4: memref<1280x384xbf16, #tpu.memory_space<vmem>>, %arg5: memref<1x384xf32, #tpu.memory_space<vmem>>, %arg6: memref<104x384xf32, #tpu.memory_space<vmem>>) attributes {dimension_semantics = [#tpu.dimension_semantics<parallel>], iteration_bounds = array<i64: 2>, scalar_prefetch = 0 : i64, scratch_operands = 0 : i64, tpu.core_type = #tpu.core_type<tc>, window_params = [{transform_indices = @transform_0, window_bounds = array<i64: 104, 10>}, {pipeline_mode = #tpu.pipeline_mode<synchronous>, transform_indices = @transform_1, window_bounds = array<i64: 10, 1280>}, {pipeline_mode = #tpu.pipeline_mode<synchronous>, transform_indices = @transform_2, window_bounds = array<i64: 1, 1280>}, {pipeline_mode = #tpu.pipeline_mode<synchronous>, transform_indices = @transform_3, window_bounds = array<i64: 1280, 384>}, {pipeline_mode = #tpu.pipeline_mode<synchronous>, transform_indices = @transform_4, window_bounds = array<i64: 1, 384>}, {transform_indices = @transform_5, window_bounds = array<i64: 104, 384>}]} {
    %c0 = arith.constant 0 : index
    %c0_0 = arith.constant 0 : index
    %0 = vector.load %arg1[%c0, %c0_0] : memref<104x10xf32, #tpu.memory_space<vmem>>, vector<104x10xf32>
    %1 = arith.truncf %0 : vector<104x10xf32> to vector<104x10xbf16>
    %c0_1 = arith.constant 0 : index
    %c0_2 = arith.constant 0 : index
    %2 = vector.load %arg2[%c0_1, %c0_2] : memref<10x1280xbf16, #tpu.memory_space<vmem>>, vector<10x1280xbf16>
    %cst = arith.constant dense<0.000000e+00> : vector<104x1280xf32>
    %3 = tpu.matmul %1, %2, %cst {dimension_numbers = #tpu.dot_dimension_numbers<[1], [0], [0], [1], [0, 0, 1, 1], [], []>} : vector<104x10xbf16>, vector<10x1280xbf16>, vector<104x1280xf32> -> vector<104x1280xf32>
    %c0_3 = arith.constant 0 : index
    %c0_4 = arith.constant 0 : index
    %4 = vector.load %arg3[%c0_3, %c0_4] : memref<1x1280xf32, #tpu.memory_space<vmem>>, vector<1x1280xf32>
    %5 = vector.broadcast %4 : vector<1x1280xf32> to vector<104x1280xf32>
    %6 = arith.addf %3, %5 : vector<104x1280xf32>
    %7 = math.tanh %6 : vector<104x1280xf32>
    %8 = arith.truncf %7 : vector<104x1280xf32> to vector<104x1280xbf16>
    %c0_5 = arith.constant 0 : index
    %c0_6 = arith.constant 0 : index
    %9 = vector.load %arg4[%c0_5, %c0_6] : memref<1280x384xbf16, #tpu.memory_space<vmem>>, vector<1280x384xbf16>
    %cst_7 = arith.constant dense<0.000000e+00> : vector<104x384xf32>
    %10 = tpu.matmul %8, %9, %cst_7 {dimension_numbers = #tpu.dot_dimension_numbers<[1], [0], [0], [1], [0, 0, 1, 1], [], []>} : vector<104x1280xbf16>, vector<1280x384xbf16>, vector<104x384xf32> -> vector<104x384xf32>
    %c0_8 = arith.constant 0 : index
    %c0_9 = arith.constant 0 : index
    %11 = vector.load %arg5[%c0_8, %c0_9] : memref<1x384xf32, #tpu.memory_space<vmem>>, vector<1x384xf32>
    %12 = vector.broadcast %11 : vector<1x384xf32> to vector<104x384xf32>
    %13 = arith.addf %10, %12 : vector<104x384xf32>
    %c0_10 = arith.constant 0 : index
    %c0_11 = arith.constant 0 : index
    %14 = vector.load %arg6[%c0_10, %c0_11] : memref<104x384xf32, #tpu.memory_space<vmem>>, vector<104x384xf32>
    tpu.vector_store %arg6[%c0_10, %c0_11], %13 {strides = array<i32>} : memref<104x384xf32, #tpu.memory_space<vmem>>, vector<104x384xf32>,
    return
  }
  func.func @transform_0(%arg0: i32) -> (i32, i32) {
    %c0_i32 = arith.constant 0 : i32
    %c0_i32_0 = arith.constant 0 : i32
    return %arg0, %c0_i32 : i32, i32
  }
  func.func @transform_1(%arg0: i32) -> (i32, i32) {
    %c0_i32 = arith.constant 0 : i32
    %c0_i32_0 = arith.constant 0 : i32
    %c0_i32_1 = arith.constant 0 : i32
    return %c0_i32, %c0_i32_0 : i32, i32
  }
  func.func @transform_2(%arg0: i32) -> (i32, i32) {
    %c0_i32 = arith.constant 0 : i32
    %c0_i32_0 = arith.constant 0 : i32
    %c0_i32_1 = arith.constant 0 : i32
    return %c0_i32, %c0_i32_0 : i32, i32
  }
  func.func @transform_3(%arg0: i32) -> (i32, i32) {
    %c0_i32 = arith.constant 0 : i32
    %c0_i32_0 = arith.constant 0 : i32
    %c0_i32_1 = arith.constant 0 : i32
    return %c0_i32, %c0_i32_0 : i32, i32
  }
  func.func @transform_4(%arg0: i32) -> (i32, i32) {
    %c0_i32 = arith.constant 0 : i32
    %c0_i32_0 = arith.constant 0 : i32
    %c0_i32_1 = arith.constant 0 : i32
    return %c0_i32, %c0_i32_0 : i32, i32
  }
  func.func @transform_5(%arg0: i32) -> (i32, i32) {
    %c0_i32 = arith.constant 0 : i32
    %c0_i32_0 = arith.constant 0 : i32
    return %arg0, %c0_i32 : i32, i32
  }
}

</mosaic_0001>

<llo_original>
// kernel: tpu_custom_call.1
$region0: #{tpu_custom_call.1}
  #allocation0 [shape = 'u32[]', space=smem, size = 0x4, offset = 0x4, fixed_abs, tag = 'smem constant byte address 0x4 - core index']
  #allocation1 [shape = 'u32[144,128]{1,0:T(1,128)}', space=vmem, size = 0x12000, scoped, tag = 'internal scratch']
  %s0 = inlined_call_operand.vmem [shape: f32[208,10], index: 0, kind: input, shape index: {}]
  %s1 = inlined_call_operand.vmem [shape: bf16[10,1280], index: 1, kind: input, shape index: {}]
  %s2 = inlined_call_operand.vmem [shape: f32[1,1280], index: 2, kind: input, shape index: {}]
  %s3 = inlined_call_operand.hbm [shape: bf16[1280,384], index: 3, kind: input, shape index: {}]
  %s4 = inlined_call_operand.vmem [shape: f32[1,384], index: 4, kind: input, shape index: {}]
  %s5 = inlined_call_operand.hbm [shape: f32[208,384], index: 5, kind: output, shape index: {}]
  %s6 = sld [smem:[#allocation0]]
  $region57: #{tpu_custom_call.1} parent=0
    _
  %s8 = ssub.s32 1, %s6
  %s9 = scalar_select 0, %s8, %s6
  $region1: #{tpu_custom_call.1} parent=0
    #allocation2 [shape = 'u8[983040]{0}', space=vmem, size = 0xf0000, scoped, tag = 'input window, operand 3, single buffered']
    #allocation3 [shape = 's32[2]{0}', space=sflag, size = 0x8, scoped, tag = 'scoped memory for tpu_custom_call.1']
    #allocation4 [shape = 's32[2]{0}', space=sflag, size = 0x8, scoped, tag = 'scoped memory for tpu_custom_call.1']
    #allocation5 [shape = 'u8[319488]{0}', space=vmem, size = 0x4e000, scoped, tag = 'output window, operand 0']
    %10 = vsyncpa [#allocation3], 0
    %11 = vsyncpa [#allocation4], 0
    %s12 = scalar_lea.sflag [#allocation4], 1
    %13 = vsyncpa %s12, 0
    loop: start=0, step=1, limit=4
    $region2: #{tpu_custom_call.1} parent=1 // loop_pre_header
      _
    $region3: #{tpu_custom_call.1} parent=1 // loop_header
      %s15 = sphi 0, %s19
      %p16 = scmp.ge.s32.totalorder %s15, 4
      %s25 = sphi 0, %s27
      %s28 = sphi 0, %s25
      %s29 = sphi 0, %s28
      %s45 = sphi 0, %s29
      %s49 = sphi 0, %s49
      %s51 = sphi 0, %s49
      %s52 = sphi 0, %s51
      %s66 = sphi 0, %s52
      %s70 = sphi 0, %s70
      %s72 = sphi 0, %s70
      %s73 = sphi 0, %s72
      %s87 = sphi 0, %s73
      %s91 = sphi 0, %s91
      %s93 = sphi 0, %s91
      %s94 = sphi 0, %s93
      %s108 = sphi 0, %s94
      %s112 = sphi 0, %s112
      %s114 = sphi 0, %s112
      %s115 = sphi 0, %s114
      %s129 = sphi 0, %s115
      %s135 = sphi 0, %s137
      %s138 = sphi 0, %s135
      %s139 = sphi 0, %s138
      %s155 = sphi 0, %s139
    $region4: #{tpu_custom_call.1} parent=1 // loop_header_branch
      %18 = sbr.rel (%p16) target = $region8
    $region5: #{tpu_custom_call.1} parent=1 // loop_body
      %s20 = ssub.s32 %s15, 1
      %s21 = ssub.s32 %s15, 2
      %s22 = sadd.s32 %s15, 1
      %s23 = ssub.s32 %s15, %s22
      %p24 = scmp.eq.s32.totalorder %s23, 0
      %s26 = sadd.s32 %s25, 1
      %s27 = scalar_select %p24, %s25, %s26
      %p30 = pneg %p24
      %p31 = scmp.eq.s32.totalorder %s15, 1
      %p32 = por %p30, %p31
      %p33 = scmp.ne.s32.totalorder %s25, %s28
      %p34 = scmp.eq.s32.totalorder %s15, 0
      %p35 = por %p33, %p34
      %p36 = scmp.ne.s32.totalorder %s25, %s28
      %p37 = scmp.eq.s32.totalorder %s20, 1
      %p38 = por %p36, %p37
      %p39 = scmp.ne.s32.totalorder %s28, %s29
      %p40 = scmp.eq.s32.totalorder %s20, 0
      %p41 = por %p39, %p40
      %p42 = scmp.ne.s32.totalorder %s28, %s29
      %p43 = scmp.eq.s32.totalorder %s21, 1
      %p44 = por %p42, %p43
      %p46 = scmp.ne.s32.totalorder %s29, %s45
      %p47 = scmp.eq.s32.totalorder %s21, 0
      %p48 = por %p46, %p47
      %s50 = sadd.s32 %s49, 1
      %p53 = scmp.eq.s32.totalorder %s15, 1
      %p54 = scmp.ne.s32.totalorder %s49, %s51
      %p55 = scmp.eq.s32.totalorder %s15, 0
      %p56 = por %p54, %p55
      %p57 = scmp.ne.s32.totalorder %s49, %s51
      %p58 = scmp.eq.s32.totalorder %s20, 1
      %p59 = por %p57, %p58
      %p60 = scmp.ne.s32.totalorder %s51, %s52
      %p61 = scmp.eq.s32.totalorder %s20, 0
      %p62 = por %p60, %p61
      %p63 = scmp.ne.s32.totalorder %s51, %s52
      %p64 = scmp.eq.s32.totalorder %s21, 1
      %p65 = por %p63, %p64
      %p67 = scmp.ne.s32.totalorder %s52, %s66
      %p68 = scmp.eq.s32.totalorder %s21, 0
      %p69 = por %p67, %p68
      %s71 = sadd.s32 %s70, 1
      %p74 = scmp.eq.s32.totalorder %s15, 1
      %p75 = scmp.ne.s32.totalorder %s70, %s72
      %p76 = scmp.eq.s32.totalorder %s15, 0
      %p77 = por %p75, %p76
      %p78 = scmp.ne.s32.totalorder %s70, %s72
      %p79 = scmp.eq.s32.totalorder %s20, 1
      %p80 = por %p78, %p79
      %p81 = scmp.ne.s32.totalorder %s72, %s73
      %p82 = scmp.eq.s32.totalorder %s20, 0
      %p83 = por %p81, %p82
      %p84 = scmp.ne.s32.totalorder %s72, %s73
      %p85 = scmp.eq.s32.totalorder %s21, 1
      %p86 = por %p84, %p85
      %p88 = scmp.ne.s32.totalorder %s73, %s87
      %p89 = scmp.eq.s32.totalorder %s21, 0
      %p90 = por %p88, %p89
      %s92 = sadd.s32 %s91, 1
      %p95 = scmp.eq.s32.totalorder %s15, 1
      %p96 = scmp.ne.s32.totalorder %s91, %s93
      %p97 = scmp.eq.s32.totalorder %s15, 0
      %p98 = por %p96, %p97
      %p99 = scmp.ne.s32.totalorder %s91, %s93
      %p100 = scmp.eq.s32.totalorder %s20, 1
      %p101 = por %p99, %p100
      %p102 = scmp.ne.s32.totalorder %s93, %s94
      %p103 = scmp.eq.s32.totalorder %s20, 0
      %p104 = por %p102, %p103
      %p105 = scmp.ne.s32.totalorder %s93, %s94
      %p106 = scmp.eq.s32.totalorder %s21, 1
      %p107 = por %p105, %p106
      %p109 = scmp.ne.s32.totalorder %s94, %s108
      %p110 = scmp.eq.s32.totalorder %s21, 0
      %p111 = por %p109, %p110
      %s113 = sadd.s32 %s112, 1
      %p116 = scmp.eq.s32.totalorder %s15, 1
      %p117 = scmp.ne.s32.totalorder %s112, %s114
      %p118 = scmp.eq.s32.totalorder %s15, 0
      %p119 = por %p117, %p118
      %p120 = scmp.ne.s32.totalorder %s112, %s114
      %p121 = scmp.eq.s32.totalorder %s20, 1
      %p122 = por %p120, %p121
      %p123 = scmp.ne.s32.totalorder %s114, %s115
      %p124 = scmp.eq.s32.totalorder %s20, 0
      %p125 = por %p123, %p124
      %p126 = scmp.ne.s32.totalorder %s114, %s115
      %p127 = scmp.eq.s32.totalorder %s21, 1
      %p128 = por %p126, %p127
      %p130 = scmp.ne.s32.totalorder %s115, %s129
      %p131 = scmp.eq.s32.totalorder %s21, 0
      %p132 = por %p130, %p131
      %s133 = ssub.s32 %s15, %s22
      %p134 = scmp.eq.s32.totalorder %s133, 0
      %s136 = sadd.s32 %s135, 1
      %s137 = scalar_select %p134, %s135, %s136
      %p140 = pneg %p134
      %p141 = scmp.eq.s32.totalorder %s15, 1
      %p142 = por %p140, %p141
      %p143 = scmp.ne.s32.totalorder %s135, %s138
      %p144 = scmp.eq.s32.totalorder %s15, 0
      %p145 = por %p143, %p144
      %p146 = scmp.ne.s32.totalorder %s135, %s138
      %p147 = scmp.eq.s32.totalorder %s20, 1
      %p148 = por %p146, %p147
      %p149 = scmp.ne.s32.totalorder %s138, %s139
      %p150 = scmp.eq.s32.totalorder %s20, 0
      %p151 = por %p149, %p150
      %p152 = scmp.ne.s32.totalorder %s138, %s139
      %p153 = scmp.eq.s32.totalorder %s21, 1
      %p154 = por %p152, %p153
      %p156 = scmp.ne.s32.totalorder %s139, %s155
      %p157 = scmp.eq.s32.totalorder %s21, 0
      %p158 = por %p156, %p157
      %p159 = scmp.le.s32.totalorder 1, %s15
      %p160 = scmp.lt.s32.totalorder %s15, 3
      %p161 = pnand %p159, %p160
      %p162 = pneg %p161
      // Predicated region
      $region9: #{tpu_custom_call.1} parent=5 // pred_check
        _
      $region10: #{tpu_custom_call.1} parent=5 // pred_check_branch
        %164 = sbr.rel (%p161) target = $region12
      $region11: #{tpu_custom_call.1} parent=5 // pred_region
        %s165 = ssub.s32 %s15, 1
        // Predicated region
        $region13: #{tpu_custom_call.1} parent=11 // pred_check
          %p166 = pneg %p62
        $region14: #{tpu_custom_call.1} parent=11 // pred_check_branch
          %168 = sbr.rel (%p166) target = $region16
        $region15: #{tpu_custom_call.1} parent=11 // pred_region
          _
        $region16: #{tpu_custom_call.1} parent=11 // pred_fallthru
          _
        // Predicated region
        $region17: #{tpu_custom_call.1} parent=11 // pred_check
          %p169 = pneg %p83
        $region18: #{tpu_custom_call.1} parent=11 // pred_check_branch
          %171 = sbr.rel (%p169) target = $region20
        $region19: #{tpu_custom_call.1} parent=11 // pred_region
          _
        $region20: #{tpu_custom_call.1} parent=11 // pred_fallthru
          _
        // Predicated region
        $region21: #{tpu_custom_call.1} parent=11 // pred_check
          %p172 = pneg %p104
        $region22: #{tpu_custom_call.1} parent=11 // pred_check_branch
          %174 = sbr.rel (%p172) target = $region24
        $region23: #{tpu_custom_call.1} parent=11 // pred_region
          %s176 = ssub.s32 30720, 30720
          %177 = vsyncadd [#allocation3], %s176
          %s178 = sshll.u32 [#allocation2], 4
          %s179 = int_to_ptr.vmem [resolvable:$true] %s178
          %184 = dma.hbm_to_vmem [thread:$0]  %s3, 30720, %s179, [#allocation3], 192, 192, 12
        $region24: #{tpu_custom_call.1} parent=11 // pred_fallthru
          _
        // Predicated region
        $region25: #{tpu_custom_call.1} parent=11 // pred_check
          %p185 = pneg %p125
        $region26: #{tpu_custom_call.1} parent=11 // pred_check_branch
          %187 = sbr.rel (%p185) target = $region28
        $region27: #{tpu_custom_call.1} parent=11 // pred_region
          _
        $region28: #{tpu_custom_call.1} parent=11 // pred_fallthru
          _
      $region12: #{tpu_custom_call.1} parent=5 // pred_fallthru
        _
      %p188 = scmp.lt.s32.totalorder %s15, 2
      // Predicated region
      $region29: #{tpu_custom_call.1} parent=5 // pred_check
        %p189 = pneg %p188
      $region30: #{tpu_custom_call.1} parent=5 // pred_check_branch
        %191 = sbr.rel (%p189) target = $region32
      $region31: #{tpu_custom_call.1} parent=5 // pred_region
        // Predicated region
        $region33: #{tpu_custom_call.1} parent=31 // pred_check
          %p192 = pneg %p35
        $region34: #{tpu_custom_call.1} parent=31 // pred_check_branch
          %194 = sbr.rel (%p192) target = $region36
        $region35: #{tpu_custom_call.1} parent=31 // pred_region
          %s195 = smul.u32 13, %s15
          %p196 = scmp.lt.s32.totalorder %s195, 25
          %s197 = scalar_select %p196, %s195, 25
          %s198 = smul.addr %s197, 8
          %s199 = scalar_lea.vmem %s0, %s198
          %s200 = smul.u32 13, %s15
        $region36: #{tpu_custom_call.1} parent=31 // pred_fallthru
          _
      $region32: #{tpu_custom_call.1} parent=5 // pred_fallthru
        _
      %p201 = scmp.le.s32.totalorder 1, %s15
      %p202 = scmp.lt.s32.totalorder %s15, 3
      %p203 = pnand %p201, %p202
      %p204 = pneg %p203
      // Predicated region
      $region37: #{tpu_custom_call.1} parent=5 // pred_check
        _
      $region38: #{tpu_custom_call.1} parent=5 // pred_check_branch
        %206 = sbr.rel (%p203) target = $region40
      $region39: #{tpu_custom_call.1} parent=5 // pred_region
        %s207 = ssub.s32 %s15, 1
        // Predicated region
        $region41: #{tpu_custom_call.1} parent=39 // pred_check
          %p208 = pneg %p104
        $region42: #{tpu_custom_call.1} parent=39 // pred_check_branch
          %210 = sbr.rel (%p208) target = $region44
        $region43: #{tpu_custom_call.1} parent=39 // pred_region
          %211 = dma.done [#allocation3], 30720
        $region44: #{tpu_custom_call.1} parent=39 // pred_fallthru
          _
        %s212 = smul.u32 13, %s20
        %p213 = scmp.lt.s32.totalorder %s212, 25
        %s214 = scalar_select %p213, %s212, 25
        %s215 = smul.addr %s214, 8
        %s216 = scalar_lea.vmem %s0, %s215
        %p217 = pneg %p41
        %p218 = pneg %p38
        %p219 = pneg %p62
        %p220 = pneg %p59
        %p221 = pneg %p83
        %p222 = pneg %p80
        %p223 = pneg %p104
        %p224 = pneg %p101
        %p225 = pneg %p125
        %p226 = pneg %p122
        %p227 = pneg %p151
        %p228 = pneg %p148
        %s229 = sand.u32 %s138, 1
        %s230 = scalar_lea.sflag [#allocation4], %s229
        %s231 = sand.u32 %s138, 1
        %s232 = smul.addr %s231, 312
        %s233 = scalar_lea.vmem [#allocation5], %s232
        %s234 = smul.u32 13, %s20
        %p235 = scmp.lt.s32.totalorder %s234, 25
        %s236 = scalar_select %p235, %s234, 25
        %s237 = smul.addr %s236, 8
        %s238 = scalar_lea.vmem %s0, %s237
        %s239 = smul.u32 13, %s20
        %s240 = smul.u32 13, %s20
        %v242 = vld [vmem:[%s238] sm:$0xff]
        %v243 = vld [vmem:[%s238 + $0x8] sm:$0xff]
        %v244 = vld [vmem:[%s238 + $0x10] sm:$0xff]
        %v245 = vld [vmem:[%s238 + $0x18] sm:$0xff]
        %v246 = vld [vmem:[%s238 + $0x20] sm:$0xff]
        %v247 = vld [vmem:[%s238 + $0x28] sm:$0xff]
        %v248 = vld [vmem:[%s238 + $0x30] sm:$0xff]
        %v249 = vld [vmem:[%s238 + $0x38] sm:$0xff]
        %v250 = vld [vmem:[%s238 + $0x40] sm:$0xff]
        %v251 = vld [vmem:[%s238 + $0x48] sm:$0xff]
        %v252 = vld [vmem:[%s238 + $0x50] sm:$0xff]
        %v253 = vld [vmem:[%s238 + $0x58] sm:$0xff]
        %v254 = vld [vmem:[%s238 + $0x60] sm:$0xff]
        %v255 = vpack.c.bf16 %v243, %v242
        %v256 = vpack.c.bf16 %v245, %v244
        %v257 = vpack.c.bf16 %v247, %v246
        %v258 = vpack.c.bf16 %v249, %v248
        %v259 = vpack.c.bf16 %v251, %v250
        %v260 = vpack.c.bf16 %v253, %v252
        %v261 = vpack.c.bf16 %v254, %v254
        %v262 = vld [vmem:[%s1] sm:$0xff]
        %v263 = vld [vmem:[%s1 + $0x8] sm:$0xff]
        %v264 = vld [vmem:[%s1 + $0x10] sm:$0xff]
        %v265 = vld [vmem:[%s1 + $0x18] sm:$0xff]
        %v266 = vld [vmem:[%s1 + $0x20] sm:$0xff]
        %v267 = vld [vmem:[%s1 + $0x28] sm:$0x11]
        %v268 = vld [vmem:[%s1 + $0x30] sm:$0x11]
        %v269 = vld [vmem:[%s1 + $0x38] sm:$0x11]
        %v270 = vld [vmem:[%s1 + $0x40] sm:$0x11]
        %v271 = vld [vmem:[%s1 + $0x48] sm:$0x11]
        %v272 = vld [vmem:[%s2] sm:$0xff]
        %v273 = vld [vmem:[%s2 + $0x8] sm:$0x3]
        %v276 = vlaneseq
        %v277 = vshrl.u32 %v276, 7
        %v278 = vsub.s32 0, %v277
        %v279 = vrot.slane %v272, %v278
        %v280 = vlaneseq
        %v281 = vshrl.u32 %v280, 7
        %v282 = vsub.s32 1, %v281
        %v283 = vrot.slane %v272, %v282
        %v284 = vlaneseq
        %v285 = vshrl.u32 %v284, 7
        %v286 = vsub.s32 2, %v285
        %v287 = vrot.slane %v272, %v286
        %v288 = vlaneseq
        %v289 = vshrl.u32 %v288, 7
        %v290 = vsub.s32 3, %v289
        %v291 = vrot.slane %v272, %v290
        %v292 = vlaneseq
        %v293 = vshrl.u32 %v292, 7
        %v294 = vsub.s32 4, %v293
        %v295 = vrot.slane %v272, %v294
        %v296 = vlaneseq
        %v297 = vshrl.u32 %v296, 7
        %v298 = vsub.s32 5, %v297
        %v299 = vrot.slane %v272, %v298
        %v300 = vlaneseq
        %v301 = vshrl.u32 %v300, 7
        %v302 = vsub.s32 6, %v301
        %v303 = vrot.slane %v272, %v302
        %v304 = vlaneseq
        %v305 = vshrl.u32 %v304, 7
        %v306 = vsub.s32 7, %v305
        %v307 = vrot.slane %v272, %v306
        %v308 = vlaneseq
        %v309 = vshrl.u32 %v308, 7
        %v310 = vsub.s32 0, %v309
        %v311 = vrot.slane %v273, %v310
        %v312 = vlaneseq
        %v313 = vshrl.u32 %v312, 7
        %v314 = vsub.s32 1, %v313
        %v315 = vrot.slane %v273, %v314
        %v336 = vunpack.c.l.b16 %v262
        %v337 = vunpack.c.h.b16 %v262
        %v338 = vunpack.c.l.b16 %v263
        %v339 = vunpack.c.h.b16 %v263
        %v340 = vunpack.c.l.b16 %v264
        %v341 = vunpack.c.h.b16 %v264
        %v342 = vunpack.c.l.b16 %v265
        %v343 = vunpack.c.h.b16 %v265
        %v344 = vunpack.c.l.b16 %v266
        %v345 = vunpack.c.h.b16 %v266
        %v346 = vunpack.c.l.b16 %v267
        %v347 = vunpack.c.h.b16 %v267
        %v348 = vunpack.c.l.b16 %v268
        %v349 = vunpack.c.h.b16 %v268
        %v350 = vunpack.c.l.b16 %v269
        %v351 = vunpack.c.h.b16 %v269
        %v352 = vunpack.c.l.b16 %v270
        %v353 = vunpack.c.h.b16 %v270
        %v354 = vunpack.c.l.b16 %v271
        %v355 = vunpack.c.h.b16 %v271
        %v356 = vpack.c.b16 %v346, %v336
        %v357 = vpack.c.b16 %v347, %v337
        %v358 = vpack.c.b16 %v348, %v338
        %v359 = vpack.c.b16 %v349, %v339
        %v360 = vpack.c.b16 %v350, %v340
        %v361 = vpack.c.b16 %v351, %v341
        %v362 = vpack.c.b16 %v352, %v342
        %v363 = vpack.c.b16 %v353, %v343
        %v364 = vpack.c.b16 %v354, %v344
        %v365 = vpack.c.b16 %v355, %v345
        %vm366 = vcmask 80896
        %v368 = vsel %vm366, %v255, 0
        %v371 = vsel %vm366, %v256, 0
        %v374 = vsel %vm366, %v257, 0
        %v377 = vsel %vm366, %v258, 0
        %v380 = vsel %vm366, %v259, 0
        %v383 = vsel %vm366, %v260, 0
        %v386 = vsel %vm366, %v261, 0
        %vm388 = vcmask 1044480
        %v390 = vsel %vm388, %v356, 0
        %v393 = vsel %vm388, %v357, 0
        %v396 = vsel %vm388, %v358, 0
        %v399 = vsel %vm388, %v359, 0
        %v402 = vsel %vm388, %v360, 0
        %v405 = vsel %vm388, %v361, 0
        %v408 = vsel %vm388, %v362, 0
        %v411 = vsel %vm388, %v363, 0
        %v414 = vsel %vm388, %v364, 0
        %v417 = vsel %vm388, %v365, 0
        %419 = vmatprep.subr.bf16.mxu0 %v393
        %420 = vmatpush1.bf16.msra.mxu0 %v390
        %421 = vmatprep.subr.bf16.mxu0 0
        %422 = vmatpush1.bf16.msra.mxu0 0
        %423 = vmatprep.subr.bf16.mxu0 0
        %424 = vmatpush1.bf16.msra.mxu0 0
        %425 = vmatprep.subr.bf16.mxu0 0
        %426 = vmatpush1.bf16.msra.mxu0 0
        %427 = vmatprep.subr.bf16.mxu0 0
        %428 = vmatpush1.bf16.msra.mxu0 0
        %429 = vmatprep.subr.bf16.mxu0 0
        %430 = vmatpush1.bf16.msra.mxu0 0
        %431 = vmatprep.subr.bf16.mxu0 0
        %432 = vmatpush1.bf16.msra.mxu0 0
        %433 = vmatprep.subr.bf16.mxu0 0
        %434 = vmatpush1.bf16.msra.mxu0 0
        %435 = vmatprep.subr.bf16.mxu0 0
        %436 = vmatpush1.bf16.msra.mxu0 0
        %437 = vmatprep.subr.bf16.mxu0 0
        %438 = vmatpush1.bf16.msra.mxu0 0
        %439 = vmatprep.subr.bf16.mxu0 0
        %440 = vmatpush1.bf16.msra.mxu0 0
        %441 = vmatprep.subr.bf16.mxu0 0
        %442 = vmatpush1.bf16.msra.mxu0 0
        %443 = vmatprep.subr.bf16.mxu0 0
        %444 = vmatpush1.bf16.msra.mxu0 0
        %445 = vmatprep.subr.bf16.mxu0 0
        %446 = vmatpush1.bf16.msra.mxu0 0
        %447 = vmatprep.subr.bf16.mxu0 0
        %448 = vmatpush1.bf16.msra.mxu0 0
        %449 = vmatprep.subr.bf16.mxu0 0
        %450 = vmatpush1.bf16.msra.mxu0 0
        %451 = vmatprep.mubr.bf16.mxu0 0
        %452 = vmatmul.mubr.bf16.gmra.mrb[0].mxu0 %v368
        %v453 = vpop.f32.mrb[0].mxu0
        %v454 = vadd.f32 %v279, %v453
        %v455 = vpop.f32.mrb[0].mxu0
        %v456 = vadd.f32 %v283, %v455
        %v457 = vpop.f32.mrb[0].mxu0
        %v458 = vadd.f32 %v279, %v457
        %v459 = vpop.f32.mrb[0].mxu0
        %v460 = vadd.f32 %v283, %v459
        %461 = vmatprep.mubr.bf16.mxu0 0
        %462 = vmatmul.mubr.bf16.gmra.mrb[0].mxu0 %v371
        %v463 = vpop.f32.mrb[0].mxu0
        %v464 = vadd.f32 %v279, %v463
        %v465 = vpop.f32.mrb[0].mxu0
        %v466 = vadd.f32 %v283, %v465
        %v467 = vpop.f32.mrb[0].mxu0
        %v468 = vadd.f32 %v279, %v467
        %v469 = vpop.f32.mrb[0].mxu0
        %v470 = vadd.f32 %v283, %v469
        %471 = vmatprep.mubr.bf16.mxu0 0
        %472 = vmatmul.mubr.bf16.gmra.mrb[0].mxu0 %v374
        %v473 = vpop.f32.mrb[0].mxu0
        %v474 = vadd.f32 %v279, %v473
        %v475 = vpop.f32.mrb[0].mxu0
        %v476 = vadd.f32 %v283, %v475
        %v477 = vpop.f32.mrb[0].mxu0
        %v478 = vadd.f32 %v279, %v477
        %v479 = vpop.f32.mrb[0].mxu0
        %v480 = vadd.f32 %v283, %v479
        %481 = vmatprep.mubr.bf16.mxu0 0
        %482 = vmatmul.mubr.bf16.gmra.mrb[0].mxu0 %v377
        %v483 = vpop.f32.mrb[0].mxu0
        %v484 = vadd.f32 %v279, %v483
        %v485 = vpop.f32.mrb[0].mxu0
        %v486 = vadd.f32 %v283, %v485
        %v487 = vpop.f32.mrb[0].mxu0
        %v488 = vadd.f32 %v279, %v487
        %v489 = vpop.f32.mrb[0].mxu0
        %v490 = vadd.f32 %v283, %v489
        %491 = vmatprep.mubr.bf16.mxu0 0
        %492 = vmatmul.mubr.bf16.gmra.mrb[0].mxu0 %v380
        %v493 = vpop.f32.mrb[0].mxu0
        %v494 = vadd.f32 %v279, %v493
        %v495 = vpop.f32.mrb[0].mxu0
        %v496 = vadd.f32 %v283, %v495
        %v497 = vpop.f32.mrb[0].mxu0
        %v498 = vadd.f32 %v279, %v497
        %v499 = vpop.f32.mrb[0].mxu0
        %v500 = vadd.f32 %v283, %v499
        %501 = vmatprep.mubr.bf16.mxu0 0
        %502 = vmatmul.mubr.bf16.gmra.mrb[0].mxu0 %v383
        %v503 = vpop.f32.mrb[0].mxu0
        %v504 = vadd.f32 %v279, %v503
        %v505 = vpop.f32.mrb[0].mxu0
        %v506 = vadd.f32 %v283, %v505
        %v507 = vpop.f32.mrb[0].mxu0
        %v508 = vadd.f32 %v279, %v507
        %v509 = vpop.f32.mrb[0].mxu0
        %v510 = vadd.f32 %v283, %v509
        %511 = vmatprep.mubr.bf16.mxu0 0
        %512 = vmatmul.mubr.bf16.gmra.mrb[0].mxu0 %v386
        %v513 = vpop.f32.mrb[0].mxu0
        %v514 = vadd.f32 %v279, %v513
        %v515 = vpop.f32.mrb[0].mxu0
        %v516 = vadd.f32 %v283, %v515
        %v517 = vpop.f32.mrb[0].mxu0
        %v518 = vpop.f32.mrb[0].mxu0
        %519 = vdwg.mxu0
        %520 = vmatprep.subr.bf16.mxu0 %v399
        %521 = vmatpush1.bf16.msra.mxu0 %v396
        %522 = vmatprep.subr.bf16.mxu0 0
        %523 = vmatpush1.bf16.msra.mxu0 0
        %524 = vmatprep.subr.bf16.mxu0 0
        %525 = vmatpush1.bf16.msra.mxu0 0
        %526 = vmatprep.subr.bf16.mxu0 0
        %527 = vmatpush1.bf16.msra.mxu0 0
        %528 = vmatprep.subr.bf16.mxu0 0
        %529 = vmatpush1.bf16.msra.mxu0 0
        %530 = vmatprep.subr.bf16.mxu0 0
        %531 = vmatpush1.bf16.msra.mxu0 0
        %532 = vmatprep.subr.bf16.mxu0 0
        %533 = vmatpush1.bf16.msra.mxu0 0
        %534 = vmatprep.subr.bf16.mxu0 0
        %535 = vmatpush1.bf16.msra.mxu0 0
        %536 = vmatprep.subr.bf16.mxu0 0
        %537 = vmatpush1.bf16.msra.mxu0 0
        %538 = vmatprep.subr.bf16.mxu0 0
        %539 = vmatpush1.bf16.msra.mxu0 0
        %540 = vmatprep.subr.bf16.mxu0 0
        %541 = vmatpush1.bf16.msra.mxu0 0
        %542 = vmatprep.subr.bf16.mxu0 0
        %543 = vmatpush1.bf16.msra.mxu0 0
        %544 = vmatprep.subr.bf16.mxu0 0
        %545 = vmatpush1.bf16.msra.mxu0 0
        %546 = vmatprep.subr.bf16.mxu0 0
        %547 = vmatpush1.bf16.msra.mxu0 0
        %548 = vmatprep.subr.bf16.mxu0 0
        %549 = vmatpush1.bf16.msra.mxu0 0
        %550 = vmatprep.subr.bf16.mxu0 0
        %551 = vmatpush1.bf16.msra.mxu0 0
        %552 = vmatprep.mubr.bf16.mxu0 0
        %553 = vmatmul.mubr.bf16.gmra.mrb[0].mxu0 %v368
        %v554 = vpop.f32.mrb[0].mxu0
        %v555 = vadd.f32 %v287, %v554
        %v556 = vpop.f32.mrb[0].mxu0
        %v557 = vadd.f32 %v291, %v556
        %v558 = vpop.f32.mrb[0].mxu0
        %v559 = vadd.f32 %v287, %v558
        %v560 = vpop.f32.mrb[0].mxu0
        %v561 = vadd.f32 %v291, %v560
        %562 = vmatprep.mubr.bf16.mxu0 0
        %563 = vmatmul.mubr.bf16.gmra.mrb[0].mxu0 %v371
        %v564 = vpop.f32.mrb[0].mxu0
        %v565 = vadd.f32 %v287, %v564
        %v566 = vpop.f32.mrb[0].mxu0
        %v567 = vadd.f32 %v291, %v566
        %v568 = vpop.f32.mrb[0].mxu0
        %v569 = vadd.f32 %v287, %v568
        %v570 = vpop.f32.mrb[0].mxu0
        %v571 = vadd.f32 %v291, %v570
        %572 = vmatprep.mubr.bf16.mxu0 0
        %573 = vmatmul.mubr.bf16.gmra.mrb[0].mxu0 %v374
        %v574 = vpop.f32.mrb[0].mxu0
        %v575 = vadd.f32 %v287, %v574
        %v576 = vpop.f32.mrb[0].mxu0
        %v577 = vadd.f32 %v291, %v576
        %v578 = vpop.f32.mrb[0].mxu0
        %v579 = vadd.f32 %v287, %v578
        %v580 = vpop.f32.mrb[0].mxu0
        %v581 = vadd.f32 %v291, %v580
        %582 = vmatprep.mubr.bf16.mxu0 0
        %583 = vmatmul.mubr.bf16.gmra.mrb[0].mxu0 %v377
        %v584 = vpop.f32.mrb[0].mxu0
        %v585 = vadd.f32 %v287, %v584
        %v586 = vpop.f32.mrb[0].mxu0
        %v587 = vadd.f32 %v291, %v586
        %v588 = vpop.f32.mrb[0].mxu0
        %v589 = vadd.f32 %v287, %v588
        %v590 = vpop.f32.mrb[0].mxu0
        %v591 = vadd.f32 %v291, %v590
        %592 = vmatprep.mubr.bf16.mxu0 0
        %593 = vmatmul.mubr.bf16.gmra.mrb[0].mxu0 %v380
        %v594 = vpop.f32.mrb[0].mxu0
        %v595 = vadd.f32 %v287, %v594
        %v596 = vpop.f32.mrb[0].mxu0
        %v597 = vadd.f32 %v291, %v596
        %v598 = vpop.f32.mrb[0].mxu0
        %v599 = vadd.f32 %v287, %v598
        %v600 = vpop.f32.mrb[0].mxu0
        %v601 = vadd.f32 %v291, %v600
        %602 = vmatprep.mubr.bf16.mxu0 0
        %603 = vmatmul.mubr.bf16.gmra.mrb[0].mxu0 %v383
        %v604 = vpop.f32.mrb[0].mxu0
        %v605 = vadd.f32 %v287, %v604
        %v606 = vpop.f32.mrb[0].mxu0
        %v607 = vadd.f32 %v291, %v606
        %v608 = vpop.f32.mrb[0].mxu0
        %v609 = vadd.f32 %v287, %v608
        %v610 = vpop.f32.mrb[0].mxu0
        %v611 = vadd.f32 %v291, %v610
        %612 = vmatprep.mubr.bf16.mxu0 0
        %613 = vmatmul.mubr.bf16.gmra.mrb[0].mxu0 %v386
        %v614 = vpop.f32.mrb[0].mxu0
        %v615 = vadd.f32 %v287, %v614
        %v616 = vpop.f32.mrb[0].mxu0
        %v617 = vadd.f32 %v291, %v616
        %v618 = vpop.f32.mrb[0].mxu0
        %v619 = vpop.f32.mrb[0].mxu0
        %620 = vdwg.mxu0
        %621 = vmatprep.subr.bf16.mxu0 %v405
        %622 = vmatpush1.bf16.msra.mxu0 %v402
        %623 = vmatprep.subr.bf16.mxu0 0
        %624 = vmatpush1.bf16.msra.mxu0 0
        %625 = vmatprep.subr.bf16.mxu0 0
        %626 = vmatpush1.bf16.msra.mxu0 0
        %627 = vmatprep.subr.bf16.mxu0 0
        %628 = vmatpush1.bf16.msra.mxu0 0
        %629 = vmatprep.subr.bf16.mxu0 0
        %630 = vmatpush1.bf16.msra.mxu0 0
        %631 = vmatprep.subr.bf16.mxu0 0
        %632 = vmatpush1.bf16.msra.mxu0 0
        %633 = vmatprep.subr.bf16.mxu0 0
        %634 = vmatpush1.bf16.msra.mxu0 0
        %635 = vmatprep.subr.bf16.mxu0 0
        %636 = vmatpush1.bf16.msra.mxu0 0
        %637 = vmatprep.subr.bf16.mxu0 0
        %638 = vmatpush1.bf16.msra.mxu0 0
        %639 = vmatprep.subr.bf16.mxu0 0
        %640 = vmatpush1.bf16.msra.mxu0 0
        %641 = vmatprep.subr.bf16.mxu0 0
        %642 = vmatpush1.bf16.msra.mxu0 0
        %643 = vmatprep.subr.bf16.mxu0 0
        %644 = vmatpush1.bf16.msra.mxu0 0
        %645 = vmatprep.subr.bf16.mxu0 0
        %646 = vmatpush1.bf16.msra.mxu0 0
        %647 = vmatprep.subr.bf16.mxu0 0
        %648 = vmatpush1.bf16.msra.mxu0 0
        %649 = vmatprep.subr.bf16.mxu0 0
        %650 = vmatpush1.bf16.msra.mxu0 0
        %651 = vmatprep.subr.bf16.mxu0 0
        %652 = vmatpush1.bf16.msra.mxu0 0
        %653 = vmatprep.mubr.bf16.mxu0 0
        %654 = vmatmul.mubr.bf16.gmra.mrb[0].mxu0 %v368
        %v655 = vpop.f32.mrb[0].mxu0
        %v656 = vadd.f32 %v295, %v655
        %v657 = vpop.f32.mrb[0].mxu0
        %v658 = vadd.f32 %v299, %v657
        %v659 = vpop.f32.mrb[0].mxu0
        %v660 = vadd.f32 %v295, %v659
        %v661 = vpop.f32.mrb[0].mxu0
        %v662 = vadd.f32 %v299, %v661
        %663 = vmatprep.mubr.bf16.mxu0 0
        %664 = vmatmul.mubr.bf16.gmra.mrb[0].mxu0 %v371
        %v665 = vpop.f32.mrb[0].mxu0
        %v666 = vadd.f32 %v295, %v665
        %v667 = vpop.f32.mrb[0].mxu0
        %v668 = vadd.f32 %v299, %v667
        %v669 = vpop.f32.mrb[0].mxu0
        %v670 = vadd.f32 %v295, %v669
        %v671 = vpop.f32.mrb[0].mxu0
        %v672 = vadd.f32 %v299, %v671
        %673 = vmatprep.mubr.bf16.mxu0 0
        %674 = vmatmul.mubr.bf16.gmra.mrb[0].mxu0 %v374
        %v675 = vpop.f32.mrb[0].mxu0
        %v676 = vadd.f32 %v295, %v675
        %v677 = vpop.f32.mrb[0].mxu0
        %v678 = vadd.f32 %v299, %v677
        %v679 = vpop.f32.mrb[0].mxu0
        %v680 = vadd.f32 %v295, %v679
        %v681 = vpop.f32.mrb[0].mxu0
        %v682 = vadd.f32 %v299, %v681
        %683 = vmatprep.mubr.bf16.mxu0 0
        %684 = vmatmul.mubr.bf16.gmra.mrb[0].mxu0 %v377
        %v685 = vpop.f32.mrb[0].mxu0
        %v686 = vadd.f32 %v295, %v685
        %v687 = vpop.f32.mrb[0].mxu0
        %v688 = vadd.f32 %v299, %v687
        %v689 = vpop.f32.mrb[0].mxu0
        %v690 = vadd.f32 %v295, %v689
        %v691 = vpop.f32.mrb[0].mxu0
        %v692 = vadd.f32 %v299, %v691
        %693 = vmatprep.mubr.bf16.mxu0 0
        %694 = vmatmul.mubr.bf16.gmra.mrb[0].mxu0 %v380
        %v695 = vpop.f32.mrb[0].mxu0
        %v696 = vadd.f32 %v295, %v695
        %v697 = vpop.f32.mrb[0].mxu0
        %v698 = vadd.f32 %v299, %v697
        %v699 = vpop.f32.mrb[0].mxu0
        %v700 = vadd.f32 %v295, %v699
        %v701 = vpop.f32.mrb[0].mxu0
        %v702 = vadd.f32 %v299, %v701
        %703 = vmatprep.mubr.bf16.mxu0 0
        %704 = vmatmul.mubr.bf16.gmra.mrb[0].mxu0 %v383
        %v705 = vpop.f32.mrb[0].mxu0
        %v706 = vadd.f32 %v295, %v705
        %v707 = vpop.f32.mrb[0].mxu0
        %v708 = vadd.f32 %v299, %v707
        %v709 = vpop.f32.mrb[0].mxu0
        %v710 = vadd.f32 %v295, %v709
        %v711 = vpop.f32.mrb[0].mxu0
        %v712 = vadd.f32 %v299, %v711
        %713 = vmatprep.mubr.bf16.mxu0 0
        %714 = vmatmul.mubr.bf16.gmra.mrb[0].mxu0 %v386
        %v715 = vpop.f32.mrb[0].mxu0
        %v716 = vadd.f32 %v295, %v715
        %v717 = vpop.f32.mrb[0].mxu0
        %v718 = vadd.f32 %v299, %v717
        %v719 = vpop.f32.mrb[0].mxu0
        %v720 = vpop.f32.mrb[0].mxu0
        %721 = vdwg.mxu0
        %722 = vmatprep.subr.bf16.mxu0 %v411
        %723 = vmatpush1.bf16.msra.mxu0 %v408
        %724 = vmatprep.subr.bf16.mxu0 0
        %725 = vmatpush1.bf16.msra.mxu0 0
        %726 = vmatprep.subr.bf16.mxu0 0
        %727 = vmatpush1.bf16.msra.mxu0 0
        %728 = vmatprep.subr.bf16.mxu0 0
        %729 = vmatpush1.bf16.msra.mxu0 0
        %730 = vmatprep.subr.bf16.mxu0 0
        %731 = vmatpush1.bf16.msra.mxu0 0
        %732 = vmatprep.subr.bf16.mxu0 0
        %733 = vmatpush1.bf16.msra.mxu0 0
        %734 = vmatprep.subr.bf16.mxu0 0
        %735 = vmatpush1.bf16.msra.mxu0 0
        %736 = vmatprep.subr.bf16.mxu0 0
        %737 = vmatpush1.bf16.msra.mxu0 0
        %738 = vmatprep.subr.bf16.mxu0 0
        %739 = vmatpush1.bf16.msra.mxu0 0
        %740 = vmatprep.subr.bf16.mxu0 0
        %741 = vmatpush1.bf16.msra.mxu0 0
        %742 = vmatprep.subr.bf16.mxu0 0
        %743 = vmatpush1.bf16.msra.mxu0 0
        %744 = vmatprep.subr.bf16.mxu0 0
        %745 = vmatpush1.bf16.msra.mxu0 0
        %746 = vmatprep.subr.bf16.mxu0 0
        %747 = vmatpush1.bf16.msra.mxu0 0
        %748 = vmatprep.subr.bf16.mxu0 0
        %749 = vmatpush1.bf16.msra.mxu0 0
        %750 = vmatprep.subr.bf16.mxu0 0
        %751 = vmatpush1.bf16.msra.mxu0 0
        %752 = vmatprep.subr.bf16.mxu0 0
        %753 = vmatpush1.bf16.msra.mxu0 0
        %754 = vmatprep.mubr.bf16.mxu0 0
        %755 = vmatmul.mubr.bf16.gmra.mrb[0].mxu0 %v368
        %v756 = vpop.f32.mrb[0].mxu0
        %v757 = vadd.f32 %v303, %v756
        %v758 = vpop.f32.mrb[0].mxu0
        %v759 = vadd.f32 %v307, %v758
        %v760 = vpop.f32.mrb[0].mxu0
        %v761 = vadd.f32 %v303, %v760
        %v762 = vpop.f32.mrb[0].mxu0
        %v763 = vadd.f32 %v307, %v762
        %764 = vmatprep.mubr.bf16.mxu0 0
        %765 = vmatmul.mubr.bf16.gmra.mrb[0].mxu0 %v371
        %v766 = vpop.f32.mrb[0].mxu0
        %v767 = vadd.f32 %v303, %v766
        %v768 = vpop.f32.mrb[0].mxu0
        %v769 = vadd.f32 %v307, %v768
        %v770 = vpop.f32.mrb[0].mxu0
        %v771 = vadd.f32 %v303, %v770
        %v772 = vpop.f32.mrb[0].mxu0
        %v773 = vadd.f32 %v307, %v772
        %774 = vmatprep.mubr.bf16.mxu0 0
        %775 = vmatmul.mubr.bf16.gmra.mrb[0].mxu0 %v374
        %v776 = vpop.f32.mrb[0].mxu0
        %v777 = vadd.f32 %v303, %v776
        %v778 = vpop.f32.mrb[0].mxu0
        %v779 = vadd.f32 %v307, %v778
        %v780 = vpop.f32.mrb[0].mxu0
        %v781 = vadd.f32 %v303, %v780
        %v782 = vpop.f32.mrb[0].mxu0
        %v783 = vadd.f32 %v307, %v782
        %784 = vmatprep.mubr.bf16.mxu0 0
        %785 = vmatmul.mubr.bf16.gmra.mrb[0].mxu0 %v377
        %v786 = vpop.f32.mrb[0].mxu0
        %v787 = vadd.f32 %v303, %v786
        %v788 = vpop.f32.mrb[0].mxu0
        %v789 = vadd.f32 %v307, %v788
        %v790 = vpop.f32.mrb[0].mxu0
        %v791 = vadd.f32 %v303, %v790
        %v792 = vpop.f32.mrb[0].mxu0
        %v793 = vadd.f32 %v307, %v792
        %794 = vmatprep.mubr.bf16.mxu0 0
        %795 = vmatmul.mubr.bf16.gmra.mrb[0].mxu0 %v380
        %v796 = vpop.f32.mrb[0].mxu0
        %v797 = vadd.f32 %v303, %v796
        %v798 = vpop.f32.mrb[0].mxu0
        %v799 = vadd.f32 %v307, %v798
        %v800 = vpop.f32.mrb[0].mxu0
        %v801 = vadd.f32 %v303, %v800
        %v802 = vpop.f32.mrb[0].mxu0
        %v803 = vadd.f32 %v307, %v802
        %804 = vmatprep.mubr.bf16.mxu0 0
        %805 = vmatmul.mubr.bf16.gmra.mrb[0].mxu0 %v383
        %v806 = vpop.f32.mrb[0].mxu0
        %v807 = vadd.f32 %v303, %v806
        %v808 = vpop.f32.mrb[0].mxu0
        %v809 = vadd.f32 %v307, %v808
        %v810 = vpop.f32.mrb[0].mxu0
        %v811 = vadd.f32 %v303, %v810
        %v812 = vpop.f32.mrb[0].mxu0
        %v813 = vadd.f32 %v307, %v812
        %814 = vmatprep.mubr.bf16.mxu0 0
        %815 = vmatmul.mubr.bf16.gmra.mrb[0].mxu0 %v386
        %v816 = vpop.f32.mrb[0].mxu0
        %v817 = vadd.f32 %v303, %v816
        %v818 = vpop.f32.mrb[0].mxu0
        %v819 = vadd.f32 %v307, %v818
        %v820 = vpop.f32.mrb[0].mxu0
        %v821 = vpop.f32.mrb[0].mxu0
        %822 = vdwg.mxu0
        %823 = vmatprep.subr.bf16.mxu0 %v417
        %824 = vmatpush1.bf16.msra.mxu0 %v414
        %825 = vmatprep.subr.bf16.mxu0 0
        %826 = vmatpush1.bf16.msra.mxu0 0
        %827 = vmatprep.subr.bf16.mxu0 0
        %828 = vmatpush1.bf16.msra.mxu0 0
        %829 = vmatprep.subr.bf16.mxu0 0
        %830 = vmatpush1.bf16.msra.mxu0 0
        %831 = vmatprep.subr.bf16.mxu0 0
        %832 = vmatpush1.bf16.msra.mxu0 0
        %833 = vmatprep.subr.bf16.mxu0 0
        %834 = vmatpush1.bf16.msra.mxu0 0
        %835 = vmatprep.subr.bf16.mxu0 0
        %836 = vmatpush1.bf16.msra.mxu0 0
        %837 = vmatprep.subr.bf16.mxu0 0
        %838 = vmatpush1.bf16.msra.mxu0 0
        %839 = vmatprep.subr.bf16.mxu0 0
        %840 = vmatpush1.bf16.msra.mxu0 0
        %841 = vmatprep.subr.bf16.mxu0 0
        %842 = vmatpush1.bf16.msra.mxu0 0
        %843 = vmatprep.subr.bf16.mxu0 0
        %844 = vmatpush1.bf16.msra.mxu0 0
        %845 = vmatprep.subr.bf16.mxu0 0
        %846 = vmatpush1.bf16.msra.mxu0 0
        %847 = vmatprep.subr.bf16.mxu0 0
        %848 = vmatpush1.bf16.msra.mxu0 0
        %849 = vmatprep.subr.bf16.mxu0 0
        %850 = vmatpush1.bf16.msra.mxu0 0
        %851 = vmatprep.subr.bf16.mxu0 0
        %852 = vmatpush1.bf16.msra.mxu0 0
        %853 = vmatprep.subr.bf16.mxu0 0
        %854 = vmatpush1.bf16.msra.mxu0 0
        %855 = vmatprep.mubr.bf16.mxu0 0
        %856 = vmatmul.mubr.bf16.gmra.mrb[0].mxu0 %v368
        %v857 = vpop.f32.mrb[0].mxu0
        %v858 = vadd.f32 %v311, %v857
        %v859 = vpop.f32.mrb[0].mxu0
        %v860 = vadd.f32 %v315, %v859
        %v861 = vpop.f32.mrb[0].mxu0
        %v862 = vadd.f32 %v311, %v861
        %v863 = vpop.f32.mrb[0].mxu0
        %v864 = vadd.f32 %v315, %v863
        %865 = vmatprep.mubr.bf16.mxu0 0
        %866 = vmatmul.mubr.bf16.gmra.mrb[0].mxu0 %v371
        %v867 = vpop.f32.mrb[0].mxu0
        %v868 = vadd.f32 %v311, %v867
        %v869 = vpop.f32.mrb[0].mxu0
        %v870 = vadd.f32 %v315, %v869
        %v871 = vpop.f32.mrb[0].mxu0
        %v872 = vadd.f32 %v311, %v871
        %v873 = vpop.f32.mrb[0].mxu0
        %v874 = vadd.f32 %v315, %v873
        %875 = vmatprep.mubr.bf16.mxu0 0
        %876 = vmatmul.mubr.bf16.gmra.mrb[0].mxu0 %v374
        %v877 = vpop.f32.mrb[0].mxu0
        %v878 = vadd.f32 %v311, %v877
        %v879 = vpop.f32.mrb[0].mxu0
        %v880 = vadd.f32 %v315, %v879
        %v881 = vpop.f32.mrb[0].mxu0
        %v882 = vadd.f32 %v311, %v881
        %v883 = vpop.f32.mrb[0].mxu0
        %v884 = vadd.f32 %v315, %v883
        %885 = vmatprep.mubr.bf16.mxu0 0
        %886 = vmatmul.mubr.bf16.gmra.mrb[0].mxu0 %v377
        %v887 = vpop.f32.mrb[0].mxu0
        %v888 = vadd.f32 %v311, %v887
        %v889 = vpop.f32.mrb[0].mxu0
        %v890 = vadd.f32 %v315, %v889
        %v891 = vpop.f32.mrb[0].mxu0
        %v892 = vadd.f32 %v311, %v891
        %v893 = vpop.f32.mrb[0].mxu0
        %v894 = vadd.f32 %v315, %v893
        %895 = vmatprep.mubr.bf16.mxu0 0
        %896 = vmatmul.mubr.bf16.gmra.mrb[0].mxu0 %v380
        %v897 = vpop.f32.mrb[0].mxu0
        %v898 = vadd.f32 %v311, %v897
        %v899 = vpop.f32.mrb[0].mxu0
        %v900 = vadd.f32 %v315, %v899
        %v901 = vpop.f32.mrb[0].mxu0
        %v902 = vadd.f32 %v311, %v901
        %v903 = vpop.f32.mrb[0].mxu0
        %v904 = vadd.f32 %v315, %v903
        %905 = vmatprep.mubr.bf16.mxu0 0
        %906 = vmatmul.mubr.bf16.gmra.mrb[0].mxu0 %v383
        %v907 = vpop.f32.mrb[0].mxu0
        %v908 = vadd.f32 %v311, %v907
        %v909 = vpop.f32.mrb[0].mxu0
        %v910 = vadd.f32 %v315, %v909
        %v911 = vpop.f32.mrb[0].mxu0
        %v912 = vadd.f32 %v311, %v911
        %v913 = vpop.f32.mrb[0].mxu0
        %v914 = vadd.f32 %v315, %v913
        %915 = vmatprep.mubr.bf16.mxu0 0
        %916 = vmatmul.mubr.bf16.gmra.mrb[0].mxu0 %v386
        %v917 = vpop.f32.mrb[0].mxu0
        %v918 = vadd.f32 %v311, %v917
        %v919 = vpop.f32.mrb[0].mxu0
        %v920 = vadd.f32 %v315, %v919
        %v921 = vpop.f32.mrb[0].mxu0
        %v922 = vpop.f32.mrb[0].mxu0
        %923 = vdwg.mxu0
        %v924 = vtanh.pop %v454
        %v925 = vtanh.pop %v456
        %v926 = vtanh.pop %v555
        %v927 = vtanh.pop %v557
        %v928 = vtanh.pop %v656
        %v929 = vtanh.pop %v658
        %v930 = vtanh.pop %v757
        %v931 = vtanh.pop %v759
        %v932 = vtanh.pop %v858
        %v933 = vtanh.pop %v860
        %v934 = vtanh.pop %v458
        %v935 = vtanh.pop %v460
        %v936 = vtanh.pop %v559
        %v937 = vtanh.pop %v561
        %v938 = vtanh.pop %v660
        %v939 = vtanh.pop %v662
        %v940 = vtanh.pop %v761
        %v941 = vtanh.pop %v763
        %v942 = vtanh.pop %v862
        %v943 = vtanh.pop %v864
        %v944 = vtanh.pop %v464
        %v945 = vtanh.pop %v466
        %v946 = vtanh.pop %v565
        %v947 = vtanh.pop %v567
        %v948 = vtanh.pop %v666
        %v949 = vtanh.pop %v668
        %v950 = vtanh.pop %v767
        %v951 = vtanh.pop %v769
        %v952 = vtanh.pop %v868
        %v953 = vtanh.pop %v870
        %v954 = vtanh.pop %v468
        %v955 = vtanh.pop %v470
        %v956 = vtanh.pop %v569
        %v957 = vtanh.pop %v571
        %v958 = vtanh.pop %v670
        %v959 = vtanh.pop %v672
        %v960 = vtanh.pop %v771
        %v961 = vtanh.pop %v773
        %v962 = vtanh.pop %v872
        %v963 = vtanh.pop %v874
        %v964 = vtanh.pop %v474
        %v965 = vtanh.pop %v476
        %v966 = vtanh.pop %v575
        %v967 = vtanh.pop %v577
        %v968 = vtanh.pop %v676
        %v969 = vtanh.pop %v678
        %v970 = vtanh.pop %v777
        %v971 = vtanh.pop %v779
        %v972 = vtanh.pop %v878
        %v973 = vtanh.pop %v880
        %v974 = vtanh.pop %v478
        %v975 = vtanh.pop %v480
        %v976 = vtanh.pop %v579
        %v977 = vtanh.pop %v581
        %v978 = vtanh.pop %v680
        %v979 = vtanh.pop %v682
        %v980 = vtanh.pop %v781
        %v981 = vtanh.pop %v783
        %v982 = vtanh.pop %v882
        %v983 = vtanh.pop %v884
        %v984 = vtanh.pop %v484
        %v985 = vtanh.pop %v486
        %v986 = vtanh.pop %v585
        %v987 = vtanh.pop %v587
        %v988 = vtanh.pop %v686
        %v989 = vtanh.pop %v688
        %v990 = vtanh.pop %v787
        %v991 = vtanh.pop %v789
        %v992 = vtanh.pop %v888
        %v993 = vtanh.pop %v890
        %v994 = vtanh.pop %v488
        %v995 = vtanh.pop %v490
        %v996 = vtanh.pop %v589
        %v997 = vtanh.pop %v591
        %v998 = vtanh.pop %v690
        %v999 = vtanh.pop %v692
        %v1000 = vtanh.pop %v791
        %v1001 = vtanh.pop %v793
        %v1002 = vtanh.pop %v892
        %v1003 = vtanh.pop %v894
        %v1004 = vtanh.pop %v494
        %v1005 = vtanh.pop %v496
        %v1006 = vtanh.pop %v595
        %v1007 = vtanh.pop %v597
        %v1008 = vtanh.pop %v696
        %v1009 = vtanh.pop %v698
        %v1010 = vtanh.pop %v797
        %v1011 = vtanh.pop %v799
        %v1012 = vtanh.pop %v898
        %v1013 = vtanh.pop %v900
        %v1014 = vtanh.pop %v498
        %v1015 = vtanh.pop %v500
        %v1016 = vtanh.pop %v599
        %v1017 = vtanh.pop %v601
        %v1018 = vtanh.pop %v700
        %v1019 = vtanh.pop %v702
        %v1020 = vtanh.pop %v801
        %v1021 = vtanh.pop %v803
        %v1022 = vtanh.pop %v902
        %v1023 = vtanh.pop %v904
        %v1024 = vtanh.pop %v504
        %v1025 = vtanh.pop %v506
        %v1026 = vtanh.pop %v605
        %v1027 = vtanh.pop %v607
        %v1028 = vtanh.pop %v706
        %v1029 = vtanh.pop %v708
        %v1030 = vtanh.pop %v807
        %v1031 = vtanh.pop %v809
        %v1032 = vtanh.pop %v908
        %v1033 = vtanh.pop %v910
        %v1034 = vtanh.pop %v508
        %v1035 = vtanh.pop %v510
        %v1036 = vtanh.pop %v609
        %v1037 = vtanh.pop %v611
        %v1038 = vtanh.pop %v710
        %v1039 = vtanh.pop %v712
        %v1040 = vtanh.pop %v811
        %v1041 = vtanh.pop %v813
        %v1042 = vtanh.pop %v912
        %v1043 = vtanh.pop %v914
        %v1044 = vtanh.pop %v514
        %v1045 = vtanh.pop %v516
        %v1046 = vtanh.pop %v615
        %v1047 = vtanh.pop %v617
        %v1048 = vtanh.pop %v716
        %v1049 = vtanh.pop %v718
        %v1050 = vtanh.pop %v817
        %v1051 = vtanh.pop %v819
        %v1052 = vtanh.pop %v918
        %v1053 = vtanh.pop %v920
        %v1054 = vpack.c.bf16 %v934, %v924
        %v1055 = vpack.c.bf16 %v935, %v925
        %v1056 = vpack.c.bf16 %v936, %v926
        %v1057 = vpack.c.bf16 %v937, %v927
        %v1058 = vpack.c.bf16 %v938, %v928
        %v1059 = vpack.c.bf16 %v939, %v929
        %v1060 = vpack.c.bf16 %v940, %v930
        %v1061 = vpack.c.bf16 %v941, %v931
        %v1062 = vpack.c.bf16 %v942, %v932
        %v1063 = vpack.c.bf16 %v943, %v933
        %v1064 = vpack.c.bf16 %v954, %v944
        %v1065 = vpack.c.bf16 %v955, %v945
        %v1066 = vpack.c.bf16 %v956, %v946
        %v1067 = vpack.c.bf16 %v957, %v947
        %v1068 = vpack.c.bf16 %v958, %v948
        %v1069 = vpack.c.bf16 %v959, %v949
        %v1070 = vpack.c.bf16 %v960, %v950
        %v1071 = vpack.c.bf16 %v961, %v951
        %v1072 = vpack.c.bf16 %v962, %v952
        %v1073 = vpack.c.bf16 %v963, %v953
        %v1074 = vpack.c.bf16 %v974, %v964
        %v1075 = vpack.c.bf16 %v975, %v965
        %v1076 = vpack.c.bf16 %v976, %v966
        %v1077 = vpack.c.bf16 %v977, %v967
        %v1078 = vpack.c.bf16 %v978, %v968
        %v1079 = vpack.c.bf16 %v979, %v969
        %v1080 = vpack.c.bf16 %v980, %v970
        %v1081 = vpack.c.bf16 %v981, %v971
        %v1082 = vpack.c.bf16 %v982, %v972
        %v1083 = vpack.c.bf16 %v983, %v973
        %v1084 = vpack.c.bf16 %v994, %v984
        %v1085 = vpack.c.bf16 %v995, %v985
        %v1086 = vpack.c.bf16 %v996, %v986
        %v1087 = vpack.c.bf16 %v997, %v987
        %v1088 = vpack.c.bf16 %v998, %v988
        %v1089 = vpack.c.bf16 %v999, %v989
        %v1090 = vpack.c.bf16 %v1000, %v990
        %v1091 = vpack.c.bf16 %v1001, %v991
        %v1092 = vpack.c.bf16 %v1002, %v992
        %v1093 = vpack.c.bf16 %v1003, %v993
        %v1094 = vpack.c.bf16 %v1014, %v1004
        %v1095 = vpack.c.bf16 %v1015, %v1005
        %v1096 = vpack.c.bf16 %v1016, %v1006
        %v1097 = vpack.c.bf16 %v1017, %v1007
        %v1098 = vpack.c.bf16 %v1018, %v1008
        %v1099 = vpack.c.bf16 %v1019, %v1009
        %v1100 = vpack.c.bf16 %v1020, %v1010
        %v1101 = vpack.c.bf16 %v1021, %v1011
        %v1102 = vpack.c.bf16 %v1022, %v1012
        %v1103 = vpack.c.bf16 %v1023, %v1013
        %v1104 = vpack.c.bf16 %v1034, %v1024
        %v1105 = vpack.c.bf16 %v1035, %v1025
        %v1106 = vpack.c.bf16 %v1036, %v1026
        %v1107 = vpack.c.bf16 %v1037, %v1027
        %v1108 = vpack.c.bf16 %v1038, %v1028
        %v1109 = vpack.c.bf16 %v1039, %v1029
        %v1110 = vpack.c.bf16 %v1040, %v1030
        %v1111 = vpack.c.bf16 %v1041, %v1031
        %v1112 = vpack.c.bf16 %v1042, %v1032
        %v1113 = vpack.c.bf16 %v1043, %v1033
        %v1114 = vpack.c.bf16 %v1044, %v1044
        %v1115 = vpack.c.bf16 %v1045, %v1045
        %v1116 = vpack.c.bf16 %v1046, %v1046
        %v1117 = vpack.c.bf16 %v1047, %v1047
        %v1118 = vpack.c.bf16 %v1048, %v1048
        %v1119 = vpack.c.bf16 %v1049, %v1049
        %v1120 = vpack.c.bf16 %v1050, %v1050
        %v1121 = vpack.c.bf16 %v1051, %v1051
        %v1122 = vpack.c.bf16 %v1052, %v1052
        %v1123 = vpack.c.bf16 %v1053, %v1053
        %v1124 = vld [vmem:[#allocation2] sm:$0xff]
        %v1125 = vld [vmem:[#allocation2 + $0x8] sm:$0xf]
        %v1126 = vld [vmem:[#allocation2 + $0xc] sm:$0xff]
        %v1127 = vld [vmem:[#allocation2 + $0x14] sm:$0xf]
        %v1128 = vld [vmem:[#allocation2 + $0x18] sm:$0xff]
        %v1129 = vld [vmem:[#allocation2 + $0x20] sm:$0xf]
        %v1130 = vld [vmem:[#allocation2 + $0x24] sm:$0xff]
        %v1131 = vld [vmem:[#allocation2 + $0x2c] sm:$0xf]
        %v1132 = vld [vmem:[#allocation2 + $0x30] sm:$0xff]
        %v1133 = vld [vmem:[#allocation2 + $0x38] sm:$0xf]
        %v1134 = vld [vmem:[#allocation2 + $0x3c] sm:$0xff]
        %v1135 = vld [vmem:[#allocation2 + $0x44] sm:$0xf]
        %v1136 = vld [vmem:[#allocation2 + $0x48] sm:$0xff]
        %v1137 = vld [vmem:[#allocation2 + $0x50] sm:$0xf]
        %v1138 = vld [vmem:[#allocation2 + $0x54] sm:$0xff]
        %v1139 = vld [vmem:[#allocation2 + $0x5c] sm:$0xf]
        %v1140 = vld [vmem:[#allocation2 + $0x60] sm:$0xff]
        %v1141 = vld [vmem:[#allocation2 + $0x68] sm:$0xf]
        %v1142 = vld [vmem:[#allocation2 + $0x6c] sm:$0xff]
        %v1143 = vld [vmem:[#allocation2 + $0x74] sm:$0xf]
        %v1144 = vld [vmem:[#allocation2 + $0x78] sm:$0xff]
        %v1145 = vld [vmem:[#allocation2 + $0x80] sm:$0xf]
        %v1146 = vld [vmem:[#allocation2 + $0x84] sm:$0xff]
        %v1147 = vld [vmem:[#allocation2 + $0x8c] sm:$0xf]
        %v1148 = vld [vmem:[#allocation2 + $0x90] sm:$0xff]
        %v1149 = vld [vmem:[#allocation2 + $0x98] sm:$0xf]
        %v1150 = vld [vmem:[#allocation2 + $0x9c] sm:$0xff]
        %v1151 = vld [vmem:[#allocation2 + $0xa4] sm:$0xf]
        %v1152 = vld [vmem:[#allocation2 + $0xa8] sm:$0xff]
        %v1153 = vld [vmem:[#allocation2 + $0xb0] sm:$0xf]
        %v1154 = vld [vmem:[#allocation2 + $0xb4] sm:$0xff]
        %v1155 = vld [vmem:[#allocation2 + $0xbc] sm:$0xf]
        %v1156 = vld [vmem:[#allocation2 + $0xc0] sm:$0xff]
        %v1157 = vld [vmem:[#allocation2 + $0xc8] sm:$0xf]
        %v1158 = vld [vmem:[#allocation2 + $0xcc] sm:$0xff]
        %v1159 = vld [vmem:[#allocation2 + $0xd4] sm:$0xf]
        %v1160 = vld [vmem:[#allocation2 + $0xd8] sm:$0xff]
        %v1161 = vld [vmem:[#allocation2 + $0xe0] sm:$0xf]
        %v1162 = vld [vmem:[#allocation2 + $0xe4] sm:$0xff]
        %v1163 = vld [vmem:[#allocation2 + $0xec] sm:$0xf]
        %v1164 = vld [vmem:[#allocation2 + $0xf0] sm:$0xff]
        %v1165 = vld [vmem:[#allocation2 + $0xf8] sm:$0xf]
        %v1166 = vld [vmem:[#allocation2 + $0xfc] sm:$0xff]
        %v1167 = vld [vmem:[#allocation2 + $0x104] sm:$0xf]
        %v1168 = vld [vmem:[#allocation2 + $0x108] sm:$0xff]
        %v1169 = vld [vmem:[#allocation2 + $0x110] sm:$0xf]
        %v1170 = vld [vmem:[#allocation2 + $0x114] sm:$0xff]
        %v1171 = vld [vmem:[#allocation2 + $0x11c] sm:$0xf]
        %v1172 = vld [vmem:[#allocation2 + $0x120] sm:$0xff]
        %v1173 = vld [vmem:[#allocation2 + $0x128] sm:$0xf]
        %v1174 = vld [vmem:[#allocation2 + $0x12c] sm:$0xff]
        %v1175 = vld [vmem:[#allocation2 + $0x134] sm:$0xf]
        %v1176 = vld [vmem:[#allocation2 + $0x138] sm:$0xff]
        %v1177 = vld [vmem:[#allocation2 + $0x140] sm:$0xf]
        %v1178 = vld [vmem:[#allocation2 + $0x144] sm:$0xff]
        %v1179 = vld [vmem:[#allocation2 + $0x14c] sm:$0xf]
        %v1180 = vld [vmem:[#allocation2 + $0x150] sm:$0xff]
        %v1181 = vld [vmem:[#allocation2 + $0x158] sm:$0xf]
        %v1182 = vld [vmem:[#allocation2 + $0x15c] sm:$0xff]
        %v1183 = vld [vmem:[#allocation2 + $0x164] sm:$0xf]
        %v1184 = vld [vmem:[#allocation2 + $0x168] sm:$0xff]
        %v1185 = vld [vmem:[#allocation2 + $0x170] sm:$0xf]
        %v1186 = vld [vmem:[#allocation2 + $0x174] sm:$0xff]
        %v1187 = vld [vmem:[#allocation2 + $0x17c] sm:$0xf]
        %v1188 = vld [vmem:[#allocation2 + $0x180] sm:$0xff]
        %v1189 = vld [vmem:[#allocation2 + $0x188] sm:$0xf]
        %v1190 = vld [vmem:[#allocation2 + $0x18c] sm:$0xff]
        %v1191 = vld [vmem:[#allocation2 + $0x194] sm:$0xf]
        %v1192 = vld [vmem:[#allocation2 + $0x198] sm:$0xff]
        %v1193 = vld [vmem:[#allocation2 + $0x1a0] sm:$0xf]
        %v1194 = vld [vmem:[#allocation2 + $0x1a4] sm:$0xff]
        %v1195 = vld [vmem:[#allocation2 + $0x1ac] sm:$0xf]
        %v1196 = vld [vmem:[#allocation2 + $0x1b0] sm:$0xff]
        %v1197 = vld [vmem:[#allocation2 + $0x1b8] sm:$0xf]
        %v1198 = vld [vmem:[#allocation2 + $0x1bc] sm:$0xff]
        %v1199 = vld [vmem:[#allocation2 + $0x1c4] sm:$0xf]
        %v1200 = vld [vmem:[#allocation2 + $0x1c8] sm:$0xff]
        %v1201 = vld [vmem:[#allocation2 + $0x1d0] sm:$0xf]
        %v1202 = vld [vmem:[#allocation2 + $0x1d4] sm:$0xff]
        %v1203 = vld [vmem:[#allocation2 + $0x1dc] sm:$0xf]
        %v1204 = vld [vmem:[#allocation2 + $0x1e0] sm:$0xff]
        %v1205 = vld [vmem:[#allocation2 + $0x1e8] sm:$0xf]
        %v1206 = vld [vmem:[#allocation2 + $0x1ec] sm:$0xff]
        %v1207 = vld [vmem:[#allocation2 + $0x1f4] sm:$0xf]
        %v1208 = vld [vmem:[#allocation2 + $0x1f8] sm:$0xff]
        %v1209 = vld [vmem:[#allocation2 + $0x200] sm:$0xf]
        %v1210 = vld [vmem:[#allocation2 + $0x204] sm:$0xff]
        %v1211 = vld [vmem:[#allocation2 + $0x20c] sm:$0xf]
        %v1212 = vld [vmem:[#allocation2 + $0x210] sm:$0xff]
        %v1213 = vld [vmem:[#allocation2 + $0x218] sm:$0xf]
        %v1214 = vld [vmem:[#allocation2 + $0x21c] sm:$0xff]
        %v1215 = vld [vmem:[#allocation2 + $0x224] sm:$0xf]
        %v1216 = vld [vmem:[#allocation2 + $0x228] sm:$0xff]
        %v1217 = vld [vmem:[#allocation2 + $0x230] sm:$0xf]
        %v1218 = vld [vmem:[#allocation2 + $0x234] sm:$0xff]
        %v1219 = vld [vmem:[#allocation2 + $0x23c] sm:$0xf]
        %v1220 = vld [vmem:[#allocation2 + $0x240] sm:$0xff]
        %v1221 = vld [vmem:[#allocation2 + $0x248] sm:$0xf]
        %v1222 = vld [vmem:[#allocation2 + $0x24c] sm:$0xff]
        %v1223 = vld [vmem:[#allocation2 + $0x254] sm:$0xf]
        %v1224 = vld [vmem:[#allocation2 + $0x258] sm:$0xff]
        %v1225 = vld [vmem:[#allocation2 + $0x260] sm:$0xf]
        %v1226 = vld [vmem:[#allocation2 + $0x264] sm:$0xff]
        %v1227 = vld [vmem:[#allocation2 + $0x26c] sm:$0xf]
        %v1228 = vld [vmem:[#allocation2 + $0x270] sm:$0xff]
        %v1229 = vld [vmem:[#allocation2 + $0x278] sm:$0xf]
        %v1230 = vld [vmem:[#allocation2 + $0x27c] sm:$0xff]
        %v1231 = vld [vmem:[#allocation2 + $0x284] sm:$0xf]
        %v1232 = vld [vmem:[#allocation2 + $0x288] sm:$0xff]
        %v1233 = vld [vmem:[#allocation2 + $0x290] sm:$0xf]
        %v1234 = vld [vmem:[#allocation2 + $0x294] sm:$0xff]
        %v1235 = vld [vmem:[#allocation2 + $0x29c] sm:$0xf]
        %v1236 = vld [vmem:[#allocation2 + $0x2a0] sm:$0xff]
        %v1237 = vld [vmem:[#allocation2 + $0x2a8] sm:$0xf]
        %v1238 = vld [vmem:[#allocation2 + $0x2ac] sm:$0xff]
        %v1239 = vld [vmem:[#allocation2 + $0x2b4] sm:$0xf]
        %v1240 = vld [vmem:[#allocation2 + $0x2b8] sm:$0xff]
        %v1241 = vld [vmem:[#allocation2 + $0x2c0] sm:$0xf]
        %v1242 = vld [vmem:[#allocation2 + $0x2c4] sm:$0xff]
        %v1243 = vld [vmem:[#allocation2 + $0x2cc] sm:$0xf]
        %v1244 = vld [vmem:[#allocation2 + $0x2d0] sm:$0xff]
        %v1245 = vld [vmem:[#allocation2 + $0x2d8] sm:$0xf]
        %v1246 = vld [vmem:[#allocation2 + $0x2dc] sm:$0xff]
        %v1247 = vld [vmem:[#allocation2 + $0x2e4] sm:$0xf]
        %v1248 = vld [vmem:[#allocation2 + $0x2e8] sm:$0xff]
        %v1249 = vld [vmem:[#allocation2 + $0x2f0] sm:$0xf]
        %v1250 = vld [vmem:[#allocation2 + $0x2f4] sm:$0xff]
        %v1251 = vld [vmem:[#allocation2 + $0x2fc] sm:$0xf]
        %v1252 = vld [vmem:[#allocation2 + $0x300] sm:$0xff]
        %v1253 = vld [vmem:[#allocation2 + $0x308] sm:$0xf]
        %v1254 = vld [vmem:[#allocation2 + $0x30c] sm:$0xff]
        %v1255 = vld [vmem:[#allocation2 + $0x314] sm:$0xf]
        %v1256 = vld [vmem:[#allocation2 + $0x318] sm:$0xff]
        %v1257 = vld [vmem:[#allocation2 + $0x320] sm:$0xf]
        %v1258 = vld [vmem:[#allocation2 + $0x324] sm:$0xff]
        %v1259 = vld [vmem:[#allocation2 + $0x32c] sm:$0xf]
        %v1260 = vld [vmem:[#allocation2 + $0x330] sm:$0xff]
        %v1261 = vld [vmem:[#allocation2 + $0x338] sm:$0xf]
        %v1262 = vld [vmem:[#allocation2 + $0x33c] sm:$0xff]
        %v1263 = vld [vmem:[#allocation2 + $0x344] sm:$0xf]
        %v1264 = vld [vmem:[#allocation2 + $0x348] sm:$0xff]
        %v1265 = vld [vmem:[#allocation2 + $0x350] sm:$0xf]
        %v1266 = vld [vmem:[#allocation2 + $0x354] sm:$0xff]
        %v1267 = vld [vmem:[#allocation2 + $0x35c] sm:$0xf]
        %v1268 = vld [vmem:[#allocation2 + $0x360] sm:$0xff]
        %v1269 = vld [vmem:[#allocation2 + $0x368] sm:$0xf]
        %v1270 = vld [vmem:[#allocation2 + $0x36c] sm:$0xff]
        %v1271 = vld [vmem:[#allocation2 + $0x374] sm:$0xf]
        %v1272 = vld [vmem:[#allocation2 + $0x378] sm:$0xff]
        %v1273 = vld [vmem:[#allocation2 + $0x380] sm:$0xf]
        %v1274 = vld [vmem:[#allocation2 + $0x384] sm:$0xff]
        %v1275 = vld [vmem:[#allocation2 + $0x38c] sm:$0xf]
        %v1276 = vld [vmem:[#allocation2 + $0x390] sm:$0xff]
        %v1277 = vld [vmem:[#allocation2 + $0x398] sm:$0xf]
        %v1278 = vld [vmem:[#allocation2 + $0x39c] sm:$0xff]
        %v1279 = vld [vmem:[#allocation2 + $0x3a4] sm:$0xf]
        %v1280 = vld [vmem:[#allocation2 + $0x3a8] sm:$0xff]
        %v1281 = vld [vmem:[#allocation2 + $0x3b0] sm:$0xf]
        %v1282 = vld [vmem:[#allocation2 + $0x3b4] sm:$0xff]
        %v1283 = vld [vmem:[#allocation2 + $0x3bc] sm:$0xf]
        %v1284 = vld [vmem:[#allocation2 + $0x3c0] sm:$0xff]
        %v1285 = vld [vmem:[#allocation2 + $0x3c8] sm:$0xf]
        %v1286 = vld [vmem:[#allocation2 + $0x3cc] sm:$0xff]
        %v1287 = vld [vmem:[#allocation2 + $0x3d4] sm:$0xf]
        %v1288 = vld [vmem:[#allocation2 + $0x3d8] sm:$0xff]
        %v1289 = vld [vmem:[#allocation2 + $0x3e0] sm:$0xf]
        %v1290 = vld [vmem:[#allocation2 + $0x3e4] sm:$0xff]
        %v1291 = vld [vmem:[#allocation2 + $0x3ec] sm:$0xf]
        %v1292 = vld [vmem:[#allocation2 + $0x3f0] sm:$0xff]
        %v1293 = vld [vmem:[#allocation2 + $0x3f8] sm:$0xf]
        %v1294 = vld [vmem:[#allocation2 + $0x3fc] sm:$0xff]
        %v1295 = vld [vmem:[#allocation2 + $0x404] sm:$0xf]
        %v1296 = vld [vmem:[#allocation2 + $0x408] sm:$0xff]
        %v1297 = vld [vmem:[#allocation2 + $0x410] sm:$0xf]
        %v1298 = vld [vmem:[#allocation2 + $0x414] sm:$0xff]
        %v1299 = vld [vmem:[#allocation2 + $0x41c] sm:$0xf]
        %v1300 = vld [vmem:[#allocation2 + $0x420] sm:$0xff]
        %v1301 = vld [vmem:[#allocation2 + $0x428] sm:$0xf]
        %v1302 = vld [vmem:[#allocation2 + $0x42c] sm:$0xff]
        %v1303 = vld [vmem:[#allocation2 + $0x434] sm:$0xf]
        %v1304 = vld [vmem:[#allocation2 + $0x438] sm:$0xff]
        %v1305 = vld [vmem:[#allocation2 + $0x440] sm:$0xf]
        %v1306 = vld [vmem:[#allocation2 + $0x444] sm:$0xff]
        %v1307 = vld [vmem:[#allocation2 + $0x44c] sm:$0xf]
        %v1308 = vld [vmem:[#allocation2 + $0x450] sm:$0xff]
        %v1309 = vld [vmem:[#allocation2 + $0x458] sm:$0xf]
        %v1310 = vld [vmem:[#allocation2 + $0x45c] sm:$0xff]
        %v1311 = vld [vmem:[#allocation2 + $0x464] sm:$0xf]
        %v1312 = vld [vmem:[#allocation2 + $0x468] sm:$0xff]
        %v1313 = vld [vmem:[#allocation2 + $0x470] sm:$0xf]
        %v1314 = vld [vmem:[#allocation2 + $0x474] sm:$0xff]
        %v1315 = vld [vmem:[#allocation2 + $0x47c] sm:$0xf]
        %v1316 = vld [vmem:[#allocation2 + $0x480] sm:$0xff]
        %v1317 = vld [vmem:[#allocation2 + $0x488] sm:$0xf]
        %v1318 = vld [vmem:[#allocation2 + $0x48c] sm:$0xff]
        %v1319 = vld [vmem:[#allocation2 + $0x494] sm:$0xf]
        %v1320 = vld [vmem:[#allocation2 + $0x498] sm:$0xff]
        %v1321 = vld [vmem:[#allocation2 + $0x4a0] sm:$0xf]
        %v1322 = vld [vmem:[#allocation2 + $0x4a4] sm:$0xff]
        %v1323 = vld [vmem:[#allocation2 + $0x4ac] sm:$0xf]
        %v1324 = vld [vmem:[#allocation2 + $0x4b0] sm:$0xff]
        %v1325 = vld [vmem:[#allocation2 + $0x4b8] sm:$0xf]
        %v1326 = vld [vmem:[#allocation2 + $0x4bc] sm:$0xff]
        %v1327 = vld [vmem:[#allocation2 + $0x4c4] sm:$0xf]
        %v1328 = vld [vmem:[#allocation2 + $0x4c8] sm:$0xff]
        %v1329 = vld [vmem:[#allocation2 + $0x4d0] sm:$0xf]
        %v1330 = vld [vmem:[#allocation2 + $0x4d4] sm:$0xff]
        %v1331 = vld [vmem:[#allocation2 + $0x4dc] sm:$0xf]
        %v1332 = vld [vmem:[#allocation2 + $0x4e0] sm:$0xff]
        %v1333 = vld [vmem:[#allocation2 + $0x4e8] sm:$0xf]
        %v1334 = vld [vmem:[#allocation2 + $0x4ec] sm:$0xff]
        %v1335 = vld [vmem:[#allocation2 + $0x4f4] sm:$0xf]
        %v1336 = vld [vmem:[#allocation2 + $0x4f8] sm:$0xff]
        %v1337 = vld [vmem:[#allocation2 + $0x500] sm:$0xf]
        %v1338 = vld [vmem:[#allocation2 + $0x504] sm:$0xff]
        %v1339 = vld [vmem:[#allocation2 + $0x50c] sm:$0xf]
        %v1340 = vld [vmem:[#allocation2 + $0x510] sm:$0xff]
        %v1341 = vld [vmem:[#allocation2 + $0x518] sm:$0xf]
        %v1342 = vld [vmem:[#allocation2 + $0x51c] sm:$0xff]
        %v1343 = vld [vmem:[#allocation2 + $0x524] sm:$0xf]
        %v1344 = vld [vmem:[#allocation2 + $0x528] sm:$0xff]
        %v1345 = vld [vmem:[#allocation2 + $0x530] sm:$0xf]
        %v1346 = vld [vmem:[#allocation2 + $0x534] sm:$0xff]
        %v1347 = vld [vmem:[#allocation2 + $0x53c] sm:$0xf]
        %v1348 = vld [vmem:[#allocation2 + $0x540] sm:$0xff]
        %v1349 = vld [vmem:[#allocation2 + $0x548] sm:$0xf]
        %v1350 = vld [vmem:[#allocation2 + $0x54c] sm:$0xff]
        %v1351 = vld [vmem:[#allocation2 + $0x554] sm:$0xf]
        %v1352 = vld [vmem:[#allocation2 + $0x558] sm:$0xff]
        %v1353 = vld [vmem:[#allocation2 + $0x560] sm:$0xf]
        %v1354 = vld [vmem:[#allocation2 + $0x564] sm:$0xff]
        %v1355 = vld [vmem:[#allocation2 + $0x56c] sm:$0xf]
        %v1356 = vld [vmem:[#allocation2 + $0x570] sm:$0xff]
        %v1357 = vld [vmem:[#allocation2 + $0x578] sm:$0xf]
        %v1358 = vld [vmem:[#allocation2 + $0x57c] sm:$0xff]
        %v1359 = vld [vmem:[#allocation2 + $0x584] sm:$0xf]
        %v1360 = vld [vmem:[#allocation2 + $0x588] sm:$0xff]
        %v1361 = vld [vmem:[#allocation2 + $0x590] sm:$0xf]
        %v1362 = vld [vmem:[#allocation2 + $0x594] sm:$0xff]
        %v1363 = vld [vmem:[#allocation2 + $0x59c] sm:$0xf]
        %v1364 = vld [vmem:[#allocation2 + $0x5a0] sm:$0xff]
        %v1365 = vld [vmem:[#allocation2 + $0x5a8] sm:$0xf]
        %v1366 = vld [vmem:[#allocation2 + $0x5ac] sm:$0xff]
        %v1367 = vld [vmem:[#allocation2 + $0x5b4] sm:$0xf]
        %v1368 = vld [vmem:[#allocation2 + $0x5b8] sm:$0xff]
        %v1369 = vld [vmem:[#allocation2 + $0x5c0] sm:$0xf]
        %v1370 = vld [vmem:[#allocation2 + $0x5c4] sm:$0xff]
        %v1371 = vld [vmem:[#allocation2 + $0x5cc] sm:$0xf]
        %v1372 = vld [vmem:[#allocation2 + $0x5d0] sm:$0xff]
        %v1373 = vld [vmem:[#allocation2 + $0x5d8] sm:$0xf]
        %v1374 = vld [vmem:[#allocation2 + $0x5dc] sm:$0xff]
        %v1375 = vld [vmem:[#allocation2 + $0x5e4] sm:$0xf]
        %v1376 = vld [vmem:[#allocation2 + $0x5e8] sm:$0xff]
        %v1377 = vld [vmem:[#allocation2 + $0x5f0] sm:$0xf]
        %v1378 = vld [vmem:[#allocation2 + $0x5f4] sm:$0xff]
        %v1379 = vld [vmem:[#allocation2 + $0x5fc] sm:$0xf]
        %v1380 = vld [vmem:[#allocation2 + $0x600] sm:$0xff]
        %v1381 = vld [vmem:[#allocation2 + $0x608] sm:$0xf]
        %v1382 = vld [vmem:[#allocation2 + $0x60c] sm:$0xff]
        %v1383 = vld [vmem:[#allocation2 + $0x614] sm:$0xf]
        %v1384 = vld [vmem:[#allocation2 + $0x618] sm:$0xff]
        %v1385 = vld [vmem:[#allocation2 + $0x620] sm:$0xf]
        %v1386 = vld [vmem:[#allocation2 + $0x624] sm:$0xff]
        %v1387 = vld [vmem:[#allocation2 + $0x62c] sm:$0xf]
        %v1388 = vld [vmem:[#allocation2 + $0x630] sm:$0xff]
        %v1389 = vld [vmem:[#allocation2 + $0x638] sm:$0xf]
        %v1390 = vld [vmem:[#allocation2 + $0x63c] sm:$0xff]
        %v1391 = vld [vmem:[#allocation2 + $0x644] sm:$0xf]
        %v1392 = vld [vmem:[#allocation2 + $0x648] sm:$0xff]
        %v1393 = vld [vmem:[#allocation2 + $0x650] sm:$0xf]
        %v1394 = vld [vmem:[#allocation2 + $0x654] sm:$0xff]
        %v1395 = vld [vmem:[#allocation2 + $0x65c] sm:$0xf]
        %v1396 = vld [vmem:[#allocation2 + $0x660] sm:$0xff]
        %v1397 = vld [vmem:[#allocation2 + $0x668] sm:$0xf]
        %v1398 = vld [vmem:[#allocation2 + $0x66c] sm:$0xff]
        %v1399 = vld [vmem:[#allocation2 + $0x674] sm:$0xf]
        %v1400 = vld [vmem:[#allocation2 + $0x678] sm:$0xff]
        %v1401 = vld [vmem:[#allocation2 + $0x680] sm:$0xf]
        %v1402 = vld [vmem:[#allocation2 + $0x684] sm:$0xff]
        %v1403 = vld [vmem:[#allocation2 + $0x68c] sm:$0xf]
        %v1404 = vld [vmem:[#allocation2 + $0x690] sm:$0xff]
        %v1405 = vld [vmem:[#allocation2 + $0x698] sm:$0xf]
        %v1406 = vld [vmem:[#allocation2 + $0x69c] sm:$0xff]
        %v1407 = vld [vmem:[#allocation2 + $0x6a4] sm:$0xf]
        %v1408 = vld [vmem:[#allocation2 + $0x6a8] sm:$0xff]
        %v1409 = vld [vmem:[#allocation2 + $0x6b0] sm:$0xf]
        %v1410 = vld [vmem:[#allocation2 + $0x6b4] sm:$0xff]
        %v1411 = vld [vmem:[#allocation2 + $0x6bc] sm:$0xf]
        %v1412 = vld [vmem:[#allocation2 + $0x6c0] sm:$0xff]
        %v1413 = vld [vmem:[#allocation2 + $0x6c8] sm:$0xf]
        %v1414 = vld [vmem:[#allocation2 + $0x6cc] sm:$0xff]
        %v1415 = vld [vmem:[#allocation2 + $0x6d4] sm:$0xf]
        %v1416 = vld [vmem:[#allocation2 + $0x6d8] sm:$0xff]
        %v1417 = vld [vmem:[#allocation2 + $0x6e0] sm:$0xf]
        %v1418 = vld [vmem:[#allocation2 + $0x6e4] sm:$0xff]
        %v1419 = vld [vmem:[#allocation2 + $0x6ec] sm:$0xf]
        %v1420 = vld [vmem:[#allocation2 + $0x6f0] sm:$0xff]
        %v1421 = vld [vmem:[#allocation2 + $0x6f8] sm:$0xf]
        %v1422 = vld [vmem:[#allocation2 + $0x6fc] sm:$0xff]
        %v1423 = vld [vmem:[#allocation2 + $0x704] sm:$0xf]
        %v1424 = vld [vmem:[#allocation2 + $0x708] sm:$0xff]
        %v1425 = vld [vmem:[#allocation2 + $0x710] sm:$0xf]
        %v1426 = vld [vmem:[#allocation2 + $0x714] sm:$0xff]
        %v1427 = vld [vmem:[#allocation2 + $0x71c] sm:$0xf]
        %v1428 = vld [vmem:[#allocation2 + $0x720] sm:$0xff]
        %v1429 = vld [vmem:[#allocation2 + $0x728] sm:$0xf]
        %v1430 = vld [vmem:[#allocation2 + $0x72c] sm:$0xff]
        %v1431 = vld [vmem:[#allocation2 + $0x734] sm:$0xf]
        %v1432 = vld [vmem:[#allocation2 + $0x738] sm:$0xff]
        %v1433 = vld [vmem:[#allocation2 + $0x740] sm:$0xf]
        %v1434 = vld [vmem:[#allocation2 + $0x744] sm:$0xff]
        %v1435 = vld [vmem:[#allocation2 + $0x74c] sm:$0xf]
        %v1436 = vld [vmem:[#allocation2 + $0x750] sm:$0xff]
        %v1437 = vld [vmem:[#allocation2 + $0x758] sm:$0xf]
        %v1438 = vld [vmem:[#allocation2 + $0x75c] sm:$0xff]
        %v1439 = vld [vmem:[#allocation2 + $0x764] sm:$0xf]
        %v1440 = vld [vmem:[#allocation2 + $0x768] sm:$0xff]
        %v1441 = vld [vmem:[#allocation2 + $0x770] sm:$0xf]
        %v1442 = vld [vmem:[#allocation2 + $0x774] sm:$0xff]
        %v1443 = vld [vmem:[#allocation2 + $0x77c] sm:$0xf]
        %v1444 = vld [vmem:[%s4] sm:$0x7]
        %v1446 = vlaneseq
        %v1447 = vshrl.u32 %v1446, 7
        %v1448 = vsub.s32 0, %v1447
        %v1449 = vrot.slane %v1444, %v1448
        %v1450 = vlaneseq
        %v1451 = vshrl.u32 %v1450, 7
        %v1452 = vsub.s32 1, %v1451
        %v1453 = vrot.slane %v1444, %v1452
        %v1454 = vlaneseq
        %v1455 = vshrl.u32 %v1454, 7
        %v1456 = vsub.s32 2, %v1455
        %v1457 = vrot.slane %v1444, %v1456
        %v1781 = vunpack.c.l.b16 %v1124
        %v1782 = vunpack.c.h.b16 %v1124
        %v1783 = vunpack.c.l.b16 %v1125
        %v1784 = vunpack.c.l.b16 %v1126
        %v1785 = vunpack.c.h.b16 %v1126
        %v1786 = vunpack.c.l.b16 %v1127
        %v1787 = vunpack.c.l.b16 %v1128
        %v1788 = vunpack.c.h.b16 %v1128
        %v1789 = vunpack.c.l.b16 %v1129
        %v1790 = vunpack.c.l.b16 %v1130
        %v1791 = vunpack.c.h.b16 %v1130
        %v1792 = vunpack.c.l.b16 %v1131
        %v1793 = vunpack.c.l.b16 %v1132
        %v1794 = vunpack.c.h.b16 %v1132
        %v1795 = vunpack.c.l.b16 %v1133
        %v1796 = vunpack.c.l.b16 %v1134
        %v1797 = vunpack.c.h.b16 %v1134
        %v1798 = vunpack.c.l.b16 %v1135
        %v1799 = vunpack.c.l.b16 %v1136
        %v1800 = vunpack.c.h.b16 %v1136
        %v1801 = vunpack.c.l.b16 %v1137
        %v1802 = vunpack.c.l.b16 %v1138
        %v1803 = vunpack.c.h.b16 %v1138
        %v1804 = vunpack.c.l.b16 %v1139
        %v1805 = vunpack.c.l.b16 %v1140
        %v1806 = vunpack.c.h.b16 %v1140
        %v1807 = vunpack.c.l.b16 %v1141
        %v1808 = vunpack.c.l.b16 %v1142
        %v1809 = vunpack.c.h.b16 %v1142
        %v1810 = vunpack.c.l.b16 %v1143
        %v1811 = vunpack.c.l.b16 %v1144
        %v1812 = vunpack.c.h.b16 %v1144
        %v1813 = vunpack.c.l.b16 %v1145
        %v1814 = vunpack.c.l.b16 %v1146
        %v1815 = vunpack.c.h.b16 %v1146
        %v1816 = vunpack.c.l.b16 %v1147
        %v1817 = vunpack.c.l.b16 %v1148
        %v1818 = vunpack.c.h.b16 %v1148
        %v1819 = vunpack.c.l.b16 %v1149
        %v1820 = vunpack.c.l.b16 %v1150
        %v1821 = vunpack.c.h.b16 %v1150
        %v1822 = vunpack.c.l.b16 %v1151
        %v1823 = vunpack.c.l.b16 %v1152
        %v1824 = vunpack.c.h.b16 %v1152
        %v1825 = vunpack.c.l.b16 %v1153
        %v1826 = vunpack.c.l.b16 %v1154
        %v1827 = vunpack.c.h.b16 %v1154
        %v1828 = vunpack.c.l.b16 %v1155
        %v1829 = vunpack.c.l.b16 %v1156
        %v1830 = vunpack.c.h.b16 %v1156
        %v1831 = vunpack.c.l.b16 %v1157
        %v1832 = vunpack.c.l.b16 %v1158
        %v1833 = vunpack.c.h.b16 %v1158
        %v1834 = vunpack.c.l.b16 %v1159
        %v1835 = vunpack.c.l.b16 %v1160
        %v1836 = vunpack.c.h.b16 %v1160
        %v1837 = vunpack.c.l.b16 %v1161
        %v1838 = vunpack.c.l.b16 %v1162
        %v1839 = vunpack.c.h.b16 %v1162
        %v1840 = vunpack.c.l.b16 %v1163
        %v1841 = vunpack.c.l.b16 %v1164
        %v1842 = vunpack.c.h.b16 %v1164
        %v1843 = vunpack.c.l.b16 %v1165
        %v1844 = vunpack.c.l.b16 %v1166
        %v1845 = vunpack.c.h.b16 %v1166
        %v1846 = vunpack.c.l.b16 %v1167
        %v1847 = vunpack.c.l.b16 %v1168
        %v1848 = vunpack.c.h.b16 %v1168
        %v1849 = vunpack.c.l.b16 %v1169
        %v1850 = vunpack.c.l.b16 %v1170
        %v1851 = vunpack.c.h.b16 %v1170
        %v1852 = vunpack.c.l.b16 %v1171
        %v1853 = vunpack.c.l.b16 %v1172
        %v1854 = vunpack.c.h.b16 %v1172
        %v1855 = vunpack.c.l.b16 %v1173
        %v1856 = vunpack.c.l.b16 %v1174
        %v1857 = vunpack.c.h.b16 %v1174
        %v1858 = vunpack.c.l.b16 %v1175
        %v1859 = vunpack.c.l.b16 %v1176
        %v1860 = vunpack.c.h.b16 %v1176
        %v1861 = vunpack.c.l.b16 %v1177
        %v1862 = vunpack.c.l.b16 %v1178
        %v1863 = vunpack.c.h.b16 %v1178
        %v1864 = vunpack.c.l.b16 %v1179
        %v1865 = vunpack.c.l.b16 %v1180
        %v1866 = vunpack.c.h.b16 %v1180
        %v1867 = vunpack.c.l.b16 %v1181
        %v1868 = vunpack.c.l.b16 %v1182
        %v1869 = vunpack.c.h.b16 %v1182
        %v1870 = vunpack.c.l.b16 %v1183
        %v1871 = vunpack.c.l.b16 %v1184
        %v1872 = vunpack.c.h.b16 %v1184
        %v1873 = vunpack.c.l.b16 %v1185
        %v1874 = vunpack.c.l.b16 %v1186
        %v1875 = vunpack.c.h.b16 %v1186
        %v1876 = vunpack.c.l.b16 %v1187
        %v1877 = vunpack.c.l.b16 %v1188
        %v1878 = vunpack.c.h.b16 %v1188
        %v1879 = vunpack.c.l.b16 %v1189
        %v1880 = vunpack.c.l.b16 %v1190
        %v1881 = vunpack.c.h.b16 %v1190
        %v1882 = vunpack.c.l.b16 %v1191
        %v1883 = vunpack.c.l.b16 %v1192
        %v1884 = vunpack.c.h.b16 %v1192
        %v1885 = vunpack.c.l.b16 %v1193
        %v1886 = vunpack.c.l.b16 %v1194
        %v1887 = vunpack.c.h.b16 %v1194
        %v1888 = vunpack.c.l.b16 %v1195
        %v1889 = vunpack.c.l.b16 %v1196
        %v1890 = vunpack.c.h.b16 %v1196
        %v1891 = vunpack.c.l.b16 %v1197
        %v1892 = vunpack.c.l.b16 %v1198
        %v1893 = vunpack.c.h.b16 %v1198
        %v1894 = vunpack.c.l.b16 %v1199
        %v1895 = vunpack.c.l.b16 %v1200
        %v1896 = vunpack.c.h.b16 %v1200
        %v1897 = vunpack.c.l.b16 %v1201
        %v1898 = vunpack.c.l.b16 %v1202
        %v1899 = vunpack.c.h.b16 %v1202
        %v1900 = vunpack.c.l.b16 %v1203
        %v1901 = vunpack.c.l.b16 %v1204
        %v1902 = vunpack.c.h.b16 %v1204
        %v1903 = vunpack.c.l.b16 %v1205
        %v1904 = vunpack.c.l.b16 %v1206
        %v1905 = vunpack.c.h.b16 %v1206
        %v1906 = vunpack.c.l.b16 %v1207
        %v1907 = vunpack.c.l.b16 %v1208
        %v1908 = vunpack.c.h.b16 %v1208
        %v1909 = vunpack.c.l.b16 %v1209
        %v1910 = vunpack.c.l.b16 %v1210
        %v1911 = vunpack.c.h.b16 %v1210
        %v1912 = vunpack.c.l.b16 %v1211
        %v1913 = vunpack.c.l.b16 %v1212
        %v1914 = vunpack.c.h.b16 %v1212
        %v1915 = vunpack.c.l.b16 %v1213
        %v1916 = vunpack.c.l.b16 %v1214
        %v1917 = vunpack.c.h.b16 %v1214
        %v1918 = vunpack.c.l.b16 %v1215
        %v1919 = vunpack.c.l.b16 %v1216
        %v1920 = vunpack.c.h.b16 %v1216
        %v1921 = vunpack.c.l.b16 %v1217
        %v1922 = vunpack.c.l.b16 %v1218
        %v1923 = vunpack.c.h.b16 %v1218
        %v1924 = vunpack.c.l.b16 %v1219
        %v1925 = vunpack.c.l.b16 %v1220
        %v1926 = vunpack.c.h.b16 %v1220
        %v1927 = vunpack.c.l.b16 %v1221
        %v1928 = vunpack.c.l.b16 %v1222
        %v1929 = vunpack.c.h.b16 %v1222
        %v1930 = vunpack.c.l.b16 %v1223
        %v1931 = vunpack.c.l.b16 %v1224
        %v1932 = vunpack.c.h.b16 %v1224
        %v1933 = vunpack.c.l.b16 %v1225
        %v1934 = vunpack.c.l.b16 %v1226
        %v1935 = vunpack.c.h.b16 %v1226
        %v1936 = vunpack.c.l.b16 %v1227
        %v1937 = vunpack.c.l.b16 %v1228
        %v1938 = vunpack.c.h.b16 %v1228
        %v1939 = vunpack.c.l.b16 %v1229
        %v1940 = vunpack.c.l.b16 %v1230
        %v1941 = vunpack.c.h.b16 %v1230
        %v1942 = vunpack.c.l.b16 %v1231
        %v1943 = vunpack.c.l.b16 %v1232
        %v1944 = vunpack.c.h.b16 %v1232
        %v1945 = vunpack.c.l.b16 %v1233
        %v1946 = vunpack.c.l.b16 %v1234
        %v1947 = vunpack.c.h.b16 %v1234
        %v1948 = vunpack.c.l.b16 %v1235
        %v1949 = vunpack.c.l.b16 %v1236
        %v1950 = vunpack.c.h.b16 %v1236
        %v1951 = vunpack.c.l.b16 %v1237
        %v1952 = vunpack.c.l.b16 %v1238
        %v1953 = vunpack.c.h.b16 %v1238
        %v1954 = vunpack.c.l.b16 %v1239
        %v1955 = vunpack.c.l.b16 %v1240
        %v1956 = vunpack.c.h.b16 %v1240
        %v1957 = vunpack.c.l.b16 %v1241
        %v1958 = vunpack.c.l.b16 %v1242
        %v1959 = vunpack.c.h.b16 %v1242
        %v1960 = vunpack.c.l.b16 %v1243
        %v1961 = vunpack.c.l.b16 %v1244
        %v1962 = vunpack.c.h.b16 %v1244
        %v1963 = vunpack.c.l.b16 %v1245
        %v1964 = vunpack.c.l.b16 %v1246
        %v1965 = vunpack.c.h.b16 %v1246
        %v1966 = vunpack.c.l.b16 %v1247
        %v1967 = vunpack.c.l.b16 %v1248
        %v1968 = vunpack.c.h.b16 %v1248
        %v1969 = vunpack.c.l.b16 %v1249
        %v1970 = vunpack.c.l.b16 %v1250
        %v1971 = vunpack.c.h.b16 %v1250
        %v1972 = vunpack.c.l.b16 %v1251
        %v1973 = vunpack.c.l.b16 %v1252
        %v1974 = vunpack.c.h.b16 %v1252
        %v1975 = vunpack.c.l.b16 %v1253
        %v1976 = vunpack.c.l.b16 %v1254
        %v1977 = vunpack.c.h.b16 %v1254
        %v1978 = vunpack.c.l.b16 %v1255
        %v1979 = vunpack.c.l.b16 %v1256
        %v1980 = vunpack.c.h.b16 %v1256
        %v1981 = vunpack.c.l.b16 %v1257
        %v1982 = vunpack.c.l.b16 %v1258
        %v1983 = vunpack.c.h.b16 %v1258
        %v1984 = vunpack.c.l.b16 %v1259
        %v1985 = vunpack.c.l.b16 %v1260
        %v1986 = vunpack.c.h.b16 %v1260
        %v1987 = vunpack.c.l.b16 %v1261
        %v1988 = vunpack.c.l.b16 %v1262
        %v1989 = vunpack.c.h.b16 %v1262
        %v1990 = vunpack.c.l.b16 %v1263
        %v1991 = vunpack.c.l.b16 %v1264
        %v1992 = vunpack.c.h.b16 %v1264
        %v1993 = vunpack.c.l.b16 %v1265
        %v1994 = vunpack.c.l.b16 %v1266
        %v1995 = vunpack.c.h.b16 %v1266
        %v1996 = vunpack.c.l.b16 %v1267
        %v1997 = vunpack.c.l.b16 %v1268
        %v1998 = vunpack.c.h.b16 %v1268
        %v1999 = vunpack.c.l.b16 %v1269
        %v2000 = vunpack.c.l.b16 %v1270
        %v2001 = vunpack.c.h.b16 %v1270
        %v2002 = vunpack.c.l.b16 %v1271
        %v2003 = vunpack.c.l.b16 %v1272
        %v2004 = vunpack.c.h.b16 %v1272
        %v2005 = vunpack.c.l.b16 %v1273
        %v2006 = vunpack.c.l.b16 %v1274
        %v2007 = vunpack.c.h.b16 %v1274
        %v2008 = vunpack.c.l.b16 %v1275
        %v2009 = vunpack.c.l.b16 %v1276
        %v2010 = vunpack.c.h.b16 %v1276
        %v2011 = vunpack.c.l.b16 %v1277
        %v2012 = vunpack.c.l.b16 %v1278
        %v2013 = vunpack.c.h.b16 %v1278
        %v2014 = vunpack.c.l.b16 %v1279
        %v2015 = vunpack.c.l.b16 %v1280
        %v2016 = vunpack.c.h.b16 %v1280
        %v2017 = vunpack.c.l.b16 %v1281
        %v2018 = vunpack.c.l.b16 %v1282
        %v2019 = vunpack.c.h.b16 %v1282
        %v2020 = vunpack.c.l.b16 %v1283
        %v2021 = vunpack.c.l.b16 %v1284
        %v2022 = vunpack.c.h.b16 %v1284
        %v2023 = vunpack.c.l.b16 %v1285
        %v2024 = vunpack.c.l.b16 %v1286
        %v2025 = vunpack.c.h.b16 %v1286
        %v2026 = vunpack.c.l.b16 %v1287
        %v2027 = vunpack.c.l.b16 %v1288
        %v2028 = vunpack.c.h.b16 %v1288
        %v2029 = vunpack.c.l.b16 %v1289
        %v2030 = vunpack.c.l.b16 %v1290
        %v2031 = vunpack.c.h.b16 %v1290
        %v2032 = vunpack.c.l.b16 %v1291
        %v2033 = vunpack.c.l.b16 %v1292
        %v2034 = vunpack.c.h.b16 %v1292
        %v2035 = vunpack.c.l.b16 %v1293
        %v2036 = vunpack.c.l.b16 %v1294
        %v2037 = vunpack.c.h.b16 %v1294
        %v2038 = vunpack.c.l.b16 %v1295
        %v2039 = vunpack.c.l.b16 %v1296
        %v2040 = vunpack.c.h.b16 %v1296
        %v2041 = vunpack.c.l.b16 %v1297
        %v2042 = vunpack.c.l.b16 %v1298
        %v2043 = vunpack.c.h.b16 %v1298
        %v2044 = vunpack.c.l.b16 %v1299
        %v2045 = vunpack.c.l.b16 %v1300
        %v2046 = vunpack.c.h.b16 %v1300
        %v2047 = vunpack.c.l.b16 %v1301
        %v2048 = vunpack.c.l.b16 %v1302
        %v2049 = vunpack.c.h.b16 %v1302
        %v2050 = vunpack.c.l.b16 %v1303
        %v2051 = vunpack.c.l.b16 %v1304
        %v2052 = vunpack.c.h.b16 %v1304
        %v2053 = vunpack.c.l.b16 %v1305
        %v2054 = vunpack.c.l.b16 %v1306
        %v2055 = vunpack.c.h.b16 %v1306
        %v2056 = vunpack.c.l.b16 %v1307
        %v2057 = vunpack.c.l.b16 %v1308
        %v2058 = vunpack.c.h.b16 %v1308
        %v2059 = vunpack.c.l.b16 %v1309
        %v2060 = vunpack.c.l.b16 %v1310
        %v2061 = vunpack.c.h.b16 %v1310
        %v2062 = vunpack.c.l.b16 %v1311
        %v2063 = vunpack.c.l.b16 %v1312
        %v2064 = vunpack.c.h.b16 %v1312
        %v2065 = vunpack.c.l.b16 %v1313
        %v2066 = vunpack.c.l.b16 %v1314
        %v2067 = vunpack.c.h.b16 %v1314
        %v2068 = vunpack.c.l.b16 %v1315
        %v2069 = vunpack.c.l.b16 %v1316
        %v2070 = vunpack.c.h.b16 %v1316
        %v2071 = vunpack.c.l.b16 %v1317
        %v2072 = vunpack.c.l.b16 %v1318
        %v2073 = vunpack.c.h.b16 %v1318
        %v2074 = vunpack.c.l.b16 %v1319
        %v2075 = vunpack.c.l.b16 %v1320
        %v2076 = vunpack.c.h.b16 %v1320
        %v2077 = vunpack.c.l.b16 %v1321
        %v2078 = vunpack.c.l.b16 %v1322
        %v2079 = vunpack.c.h.b16 %v1322
        %v2080 = vunpack.c.l.b16 %v1323
        %v2081 = vunpack.c.l.b16 %v1324
        %v2082 = vunpack.c.h.b16 %v1324
        %v2083 = vunpack.c.l.b16 %v1325
        %v2084 = vunpack.c.l.b16 %v1326
        %v2085 = vunpack.c.h.b16 %v1326
        %v2086 = vunpack.c.l.b16 %v1327
        %v2087 = vunpack.c.l.b16 %v1328
        %v2088 = vunpack.c.h.b16 %v1328
        %v2089 = vunpack.c.l.b16 %v1329
        %v2090 = vunpack.c.l.b16 %v1330
        %v2091 = vunpack.c.h.b16 %v1330
        %v2092 = vunpack.c.l.b16 %v1331
        %v2093 = vunpack.c.l.b16 %v1332
        %v2094 = vunpack.c.h.b16 %v1332
        %v2095 = vunpack.c.l.b16 %v1333
        %v2096 = vunpack.c.l.b16 %v1334
        %v2097 = vunpack.c.h.b16 %v1334
        %v2098 = vunpack.c.l.b16 %v1335
        %v2099 = vunpack.c.l.b16 %v1336
        %v2100 = vunpack.c.h.b16 %v1336
        %v2101 = vunpack.c.l.b16 %v1337
        %v2102 = vunpack.c.l.b16 %v1338
        %v2103 = vunpack.c.h.b16 %v1338
        %v2104 = vunpack.c.l.b16 %v1339
        %v2105 = vunpack.c.l.b16 %v1340
        %v2106 = vunpack.c.h.b16 %v1340
        %v2107 = vunpack.c.l.b16 %v1341
        %v2108 = vunpack.c.l.b16 %v1342
        %v2109 = vunpack.c.h.b16 %v1342
        %v2110 = vunpack.c.l.b16 %v1343
        %v2111 = vunpack.c.l.b16 %v1344
        %v2112 = vunpack.c.h.b16 %v1344
        %v2113 = vunpack.c.l.b16 %v1345
        %v2114 = vunpack.c.l.b16 %v1346
        %v2115 = vunpack.c.h.b16 %v1346
        %v2116 = vunpack.c.l.b16 %v1347
        %v2117 = vunpack.c.l.b16 %v1348
        %v2118 = vunpack.c.h.b16 %v1348
        %v2119 = vunpack.c.l.b16 %v1349
        %v2120 = vunpack.c.l.b16 %v1350
        %v2121 = vunpack.c.h.b16 %v1350
        %v2122 = vunpack.c.l.b16 %v1351
        %v2123 = vunpack.c.l.b16 %v1352
        %v2124 = vunpack.c.h.b16 %v1352
        %v2125 = vunpack.c.l.b16 %v1353
        %v2126 = vunpack.c.l.b16 %v1354
        %v2127 = vunpack.c.h.b16 %v1354
        %v2128 = vunpack.c.l.b16 %v1355
        %v2129 = vunpack.c.l.b16 %v1356
        %v2130 = vunpack.c.h.b16 %v1356
        %v2131 = vunpack.c.l.b16 %v1357
        %v2132 = vunpack.c.l.b16 %v1358
        %v2133 = vunpack.c.h.b16 %v1358
        %v2134 = vunpack.c.l.b16 %v1359
        %v2135 = vunpack.c.l.b16 %v1360
        %v2136 = vunpack.c.h.b16 %v1360
        %v2137 = vunpack.c.l.b16 %v1361
        %v2138 = vunpack.c.l.b16 %v1362
        %v2139 = vunpack.c.h.b16 %v1362
        %v2140 = vunpack.c.l.b16 %v1363
        %v2141 = vunpack.c.l.b16 %v1364
        %v2142 = vunpack.c.h.b16 %v1364
        %v2143 = vunpack.c.l.b16 %v1365
        %v2144 = vunpack.c.l.b16 %v1366
        %v2145 = vunpack.c.h.b16 %v1366
        %v2146 = vunpack.c.l.b16 %v1367
        %v2147 = vunpack.c.l.b16 %v1368
        %v2148 = vunpack.c.h.b16 %v1368
        %v2149 = vunpack.c.l.b16 %v1369
        %v2150 = vunpack.c.l.b16 %v1370
        %v2151 = vunpack.c.h.b16 %v1370
        %v2152 = vunpack.c.l.b16 %v1371
        %v2153 = vunpack.c.l.b16 %v1372
        %v2154 = vunpack.c.h.b16 %v1372
        %v2155 = vunpack.c.l.b16 %v1373
        %v2156 = vunpack.c.l.b16 %v1374
        %v2157 = vunpack.c.h.b16 %v1374
        %v2158 = vunpack.c.l.b16 %v1375
        %v2159 = vunpack.c.l.b16 %v1376
        %v2160 = vunpack.c.h.b16 %v1376
        %v2161 = vunpack.c.l.b16 %v1377
        %v2162 = vunpack.c.l.b16 %v1378
        %v2163 = vunpack.c.h.b16 %v1378
        %v2164 = vunpack.c.l.b16 %v1379
        %v2165 = vunpack.c.l.b16 %v1380
        %v2166 = vunpack.c.h.b16 %v1380
        %v2167 = vunpack.c.l.b16 %v1381
        %v2168 = vunpack.c.l.b16 %v1382
        %v2169 = vunpack.c.h.b16 %v1382
        %v2170 = vunpack.c.l.b16 %v1383
        %v2171 = vunpack.c.l.b16 %v1384
        %v2172 = vunpack.c.h.b16 %v1384
        %v2173 = vunpack.c.l.b16 %v1385
        %v2174 = vunpack.c.l.b16 %v1386
        %v2175 = vunpack.c.h.b16 %v1386
        %v2176 = vunpack.c.l.b16 %v1387
        %v2177 = vunpack.c.l.b16 %v1388
        %v2178 = vunpack.c.h.b16 %v1388
        %v2179 = vunpack.c.l.b16 %v1389
        %v2180 = vunpack.c.l.b16 %v1390
        %v2181 = vunpack.c.h.b16 %v1390
        %v2182 = vunpack.c.l.b16 %v1391
        %v2183 = vunpack.c.l.b16 %v1392
        %v2184 = vunpack.c.h.b16 %v1392
        %v2185 = vunpack.c.l.b16 %v1393
        %v2186 = vunpack.c.l.b16 %v1394
        %v2187 = vunpack.c.h.b16 %v1394
        %v2188 = vunpack.c.l.b16 %v1395
        %v2189 = vunpack.c.l.b16 %v1396
        %v2190 = vunpack.c.h.b16 %v1396
        %v2191 = vunpack.c.l.b16 %v1397
        %v2192 = vunpack.c.l.b16 %v1398
        %v2193 = vunpack.c.h.b16 %v1398
        %v2194 = vunpack.c.l.b16 %v1399
        %v2195 = vunpack.c.l.b16 %v1400
        %v2196 = vunpack.c.h.b16 %v1400
        %v2197 = vunpack.c.l.b16 %v1401
        %v2198 = vunpack.c.l.b16 %v1402
        %v2199 = vunpack.c.h.b16 %v1402
        %v2200 = vunpack.c.l.b16 %v1403
        %v2201 = vunpack.c.l.b16 %v1404
        %v2202 = vunpack.c.h.b16 %v1404
        %v2203 = vunpack.c.l.b16 %v1405
        %v2204 = vunpack.c.l.b16 %v1406
        %v2205 = vunpack.c.h.b16 %v1406
        %v2206 = vunpack.c.l.b16 %v1407
        %v2207 = vunpack.c.l.b16 %v1408
        %v2208 = vunpack.c.h.b16 %v1408
        %v2209 = vunpack.c.l.b16 %v1409
        %v2210 = vunpack.c.l.b16 %v1410
        %v2211 = vunpack.c.h.b16 %v1410
        %v2212 = vunpack.c.l.b16 %v1411
        %v2213 = vunpack.c.l.b16 %v1412
        %v2214 = vunpack.c.h.b16 %v1412
        %v2215 = vunpack.c.l.b16 %v1413
        %v2216 = vunpack.c.l.b16 %v1414
        %v2217 = vunpack.c.h.b16 %v1414
        %v2218 = vunpack.c.l.b16 %v1415
        %v2219 = vunpack.c.l.b16 %v1416
        %v2220 = vunpack.c.h.b16 %v1416
        %v2221 = vunpack.c.l.b16 %v1417
        %v2222 = vunpack.c.l.b16 %v1418
        %v2223 = vunpack.c.h.b16 %v1418
        %v2224 = vunpack.c.l.b16 %v1419
        %v2225 = vunpack.c.l.b16 %v1420
        %v2226 = vunpack.c.h.b16 %v1420
        %v2227 = vunpack.c.l.b16 %v1421
        %v2228 = vunpack.c.l.b16 %v1422
        %v2229 = vunpack.c.h.b16 %v1422
        %v2230 = vunpack.c.l.b16 %v1423
        %v2231 = vunpack.c.l.b16 %v1424
        %v2232 = vunpack.c.h.b16 %v1424
        %v2233 = vunpack.c.l.b16 %v1425
        %v2234 = vunpack.c.l.b16 %v1426
        %v2235 = vunpack.c.h.b16 %v1426
        %v2236 = vunpack.c.l.b16 %v1427
        %v2237 = vunpack.c.l.b16 %v1428
        %v2238 = vunpack.c.h.b16 %v1428
        %v2239 = vunpack.c.l.b16 %v1429
        %v2240 = vunpack.c.l.b16 %v1430
        %v2241 = vunpack.c.h.b16 %v1430
        %v2242 = vunpack.c.l.b16 %v1431
        %v2243 = vunpack.c.l.b16 %v1432
        %v2244 = vunpack.c.h.b16 %v1432
        %v2245 = vunpack.c.l.b16 %v1433
        %v2246 = vunpack.c.l.b16 %v1434
        %v2247 = vunpack.c.h.b16 %v1434
        %v2248 = vunpack.c.l.b16 %v1435
        %v2249 = vunpack.c.l.b16 %v1436
        %v2250 = vunpack.c.h.b16 %v1436
        %v2251 = vunpack.c.l.b16 %v1437
        %v2252 = vunpack.c.l.b16 %v1438
        %v2253 = vunpack.c.h.b16 %v1438
        %v2254 = vunpack.c.l.b16 %v1439
        %v2255 = vunpack.c.l.b16 %v1440
        %v2256 = vunpack.c.h.b16 %v1440
        %v2257 = vunpack.c.l.b16 %v1441
        %v2258 = vunpack.c.l.b16 %v1442
        %v2259 = vunpack.c.h.b16 %v1442
        %v2260 = vunpack.c.l.b16 %v1443
        %v2261 = vpack.c.b16 %v1784, %v1781
        %v2262 = vpack.c.b16 %v1785, %v1782
        %v2263 = vpack.c.b16 %v1786, %v1783
        %v2264 = vpack.c.b16 %v1790, %v1787
        %v2265 = vpack.c.b16 %v1791, %v1788
        %v2266 = vpack.c.b16 %v1792, %v1789
        %v2267 = vpack.c.b16 %v1796, %v1793
        %v2268 = vpack.c.b16 %v1797, %v1794
        %v2269 = vpack.c.b16 %v1798, %v1795
        %v2270 = vpack.c.b16 %v1802, %v1799
        %v2271 = vpack.c.b16 %v1803, %v1800
        %v2272 = vpack.c.b16 %v1804, %v1801
        %v2273 = vpack.c.b16 %v1808, %v1805
        %v2274 = vpack.c.b16 %v1809, %v1806
        %v2275 = vpack.c.b16 %v1810, %v1807
        %v2276 = vpack.c.b16 %v1814, %v1811
        %v2277 = vpack.c.b16 %v1815, %v1812
        %v2278 = vpack.c.b16 %v1816, %v1813
        %v2279 = vpack.c.b16 %v1820, %v1817
        %v2280 = vpack.c.b16 %v1821, %v1818
        %v2281 = vpack.c.b16 %v1822, %v1819
        %v2282 = vpack.c.b16 %v1826, %v1823
        %v2283 = vpack.c.b16 %v1827, %v1824
        %v2284 = vpack.c.b16 %v1828, %v1825
        %v2285 = vpack.c.b16 %v1832, %v1829
        %v2286 = vpack.c.b16 %v1833, %v1830
        %v2287 = vpack.c.b16 %v1834, %v1831
        %v2288 = vpack.c.b16 %v1838, %v1835
        %v2289 = vpack.c.b16 %v1839, %v1836
        %v2290 = vpack.c.b16 %v1840, %v1837
        %v2291 = vpack.c.b16 %v1844, %v1841
        %v2292 = vpack.c.b16 %v1845, %v1842
        %v2293 = vpack.c.b16 %v1846, %v1843
        %v2294 = vpack.c.b16 %v1850, %v1847
        %v2295 = vpack.c.b16 %v1851, %v1848
        %v2296 = vpack.c.b16 %v1852, %v1849
        %v2297 = vpack.c.b16 %v1856, %v1853
        %v2298 = vpack.c.b16 %v1857, %v1854
        %v2299 = vpack.c.b16 %v1858, %v1855
        %v2300 = vpack.c.b16 %v1862, %v1859
        %v2301 = vpack.c.b16 %v1863, %v1860
        %v2302 = vpack.c.b16 %v1864, %v1861
        %v2303 = vpack.c.b16 %v1868, %v1865
        %v2304 = vpack.c.b16 %v1869, %v1866
        %v2305 = vpack.c.b16 %v1870, %v1867
        %v2306 = vpack.c.b16 %v1874, %v1871
        %v2307 = vpack.c.b16 %v1875, %v1872
        %v2308 = vpack.c.b16 %v1876, %v1873
        %v2309 = vpack.c.b16 %v1880, %v1877
        %v2310 = vpack.c.b16 %v1881, %v1878
        %v2311 = vpack.c.b16 %v1882, %v1879
        %v2312 = vpack.c.b16 %v1886, %v1883
        %v2313 = vpack.c.b16 %v1887, %v1884
        %v2314 = vpack.c.b16 %v1888, %v1885
        %v2315 = vpack.c.b16 %v1892, %v1889
        %v2316 = vpack.c.b16 %v1893, %v1890
        %v2317 = vpack.c.b16 %v1894, %v1891
        %v2318 = vpack.c.b16 %v1898, %v1895
        %v2319 = vpack.c.b16 %v1899, %v1896
        %v2320 = vpack.c.b16 %v1900, %v1897
        %v2321 = vpack.c.b16 %v1904, %v1901
        %v2322 = vpack.c.b16 %v1905, %v1902
        %v2323 = vpack.c.b16 %v1906, %v1903
        %v2324 = vpack.c.b16 %v1910, %v1907
        %v2325 = vpack.c.b16 %v1911, %v1908
        %v2326 = vpack.c.b16 %v1912, %v1909
        %v2327 = vpack.c.b16 %v1916, %v1913
        %v2328 = vpack.c.b16 %v1917, %v1914
        %v2329 = vpack.c.b16 %v1918, %v1915
        %v2330 = vpack.c.b16 %v1922, %v1919
        %v2331 = vpack.c.b16 %v1923, %v1920
        %v2332 = vpack.c.b16 %v1924, %v1921
        %v2333 = vpack.c.b16 %v1928, %v1925
        %v2334 = vpack.c.b16 %v1929, %v1926
        %v2335 = vpack.c.b16 %v1930, %v1927
        %v2336 = vpack.c.b16 %v1934, %v1931
        %v2337 = vpack.c.b16 %v1935, %v1932
        %v2338 = vpack.c.b16 %v1936, %v1933
        %v2339 = vpack.c.b16 %v1940, %v1937
        %v2340 = vpack.c.b16 %v1941, %v1938
        %v2341 = vpack.c.b16 %v1942, %v1939
        %v2342 = vpack.c.b16 %v1946, %v1943
        %v2343 = vpack.c.b16 %v1947, %v1944
        %v2344 = vpack.c.b16 %v1948, %v1945
        %v2345 = vpack.c.b16 %v1952, %v1949
        %v2346 = vpack.c.b16 %v1953, %v1950
        %v2347 = vpack.c.b16 %v1954, %v1951
        %v2348 = vpack.c.b16 %v1958, %v1955
        %v2349 = vpack.c.b16 %v1959, %v1956
        %v2350 = vpack.c.b16 %v1960, %v1957
        %v2351 = vpack.c.b16 %v1964, %v1961
        %v2352 = vpack.c.b16 %v1965, %v1962
        %v2353 = vpack.c.b16 %v1966, %v1963
        %v2354 = vpack.c.b16 %v1970, %v1967
        %v2355 = vpack.c.b16 %v1971, %v1968
        %v2356 = vpack.c.b16 %v1972, %v1969
        %v2357 = vpack.c.b16 %v1976, %v1973
        %v2358 = vpack.c.b16 %v1977, %v1974
        %v2359 = vpack.c.b16 %v1978, %v1975
        %v2360 = vpack.c.b16 %v1982, %v1979
        %v2361 = vpack.c.b16 %v1983, %v1980
        %v2362 = vpack.c.b16 %v1984, %v1981
        %v2363 = vpack.c.b16 %v1988, %v1985
        %v2364 = vpack.c.b16 %v1989, %v1986
        %v2365 = vpack.c.b16 %v1990, %v1987
        %v2366 = vpack.c.b16 %v1994, %v1991
        %v2367 = vpack.c.b16 %v1995, %v1992
        %v2368 = vpack.c.b16 %v1996, %v1993
        %v2369 = vpack.c.b16 %v2000, %v1997
        %v2370 = vpack.c.b16 %v2001, %v1998
        %v2371 = vpack.c.b16 %v2002, %v1999
        %v2372 = vpack.c.b16 %v2006, %v2003
        %v2373 = vpack.c.b16 %v2007, %v2004
        %v2374 = vpack.c.b16 %v2008, %v2005
        %v2375 = vpack.c.b16 %v2012, %v2009
        %v2376 = vpack.c.b16 %v2013, %v2010
        %v2377 = vpack.c.b16 %v2014, %v2011
        %v2378 = vpack.c.b16 %v2018, %v2015
        %v2379 = vpack.c.b16 %v2019, %v2016
        %v2380 = vpack.c.b16 %v2020, %v2017
        %v2381 = vpack.c.b16 %v2024, %v2021
        %v2382 = vpack.c.b16 %v2025, %v2022
        %v2383 = vpack.c.b16 %v2026, %v2023
        %v2384 = vpack.c.b16 %v2030, %v2027
        %v2385 = vpack.c.b16 %v2031, %v2028
        %v2386 = vpack.c.b16 %v2032, %v2029
        %v2387 = vpack.c.b16 %v2036, %v2033
        %v2388 = vpack.c.b16 %v2037, %v2034
        %v2389 = vpack.c.b16 %v2038, %v2035
        %v2390 = vpack.c.b16 %v2042, %v2039
        %v2391 = vpack.c.b16 %v2043, %v2040
        %v2392 = vpack.c.b16 %v2044, %v2041
        %v2393 = vpack.c.b16 %v2048, %v2045
        %v2394 = vpack.c.b16 %v2049, %v2046
        %v2395 = vpack.c.b16 %v2050, %v2047
        %v2396 = vpack.c.b16 %v2054, %v2051
        %v2397 = vpack.c.b16 %v2055, %v2052
        %v2398 = vpack.c.b16 %v2056, %v2053
        %v2399 = vpack.c.b16 %v2060, %v2057
        %v2400 = vpack.c.b16 %v2061, %v2058
        %v2401 = vpack.c.b16 %v2062, %v2059
        %v2402 = vpack.c.b16 %v2066, %v2063
        %v2403 = vpack.c.b16 %v2067, %v2064
        %v2404 = vpack.c.b16 %v2068, %v2065
        %v2405 = vpack.c.b16 %v2072, %v2069
        %v2406 = vpack.c.b16 %v2073, %v2070
        %v2407 = vpack.c.b16 %v2074, %v2071
        %v2408 = vpack.c.b16 %v2078, %v2075
        %v2409 = vpack.c.b16 %v2079, %v2076
        %v2410 = vpack.c.b16 %v2080, %v2077
        %v2411 = vpack.c.b16 %v2084, %v2081
        %v2412 = vpack.c.b16 %v2085, %v2082
        %v2413 = vpack.c.b16 %v2086, %v2083
        %v2414 = vpack.c.b16 %v2090, %v2087
        %v2415 = vpack.c.b16 %v2091, %v2088
        %v2416 = vpack.c.b16 %v2092, %v2089
        %v2417 = vpack.c.b16 %v2096, %v2093
        %v2418 = vpack.c.b16 %v2097, %v2094
        %v2419 = vpack.c.b16 %v2098, %v2095
        %v2420 = vpack.c.b16 %v2102, %v2099
        %v2421 = vpack.c.b16 %v2103, %v2100
        %v2422 = vpack.c.b16 %v2104, %v2101
        %v2423 = vpack.c.b16 %v2108, %v2105
        %v2424 = vpack.c.b16 %v2109, %v2106
        %v2425 = vpack.c.b16 %v2110, %v2107
        %v2426 = vpack.c.b16 %v2114, %v2111
        %v2427 = vpack.c.b16 %v2115, %v2112
        %v2428 = vpack.c.b16 %v2116, %v2113
        %v2429 = vpack.c.b16 %v2120, %v2117
        %v2430 = vpack.c.b16 %v2121, %v2118
        %v2431 = vpack.c.b16 %v2122, %v2119
        %v2432 = vpack.c.b16 %v2126, %v2123
        %v2433 = vpack.c.b16 %v2127, %v2124
        %v2434 = vpack.c.b16 %v2128, %v2125
        %v2435 = vpack.c.b16 %v2132, %v2129
        %v2436 = vpack.c.b16 %v2133, %v2130
        %v2437 = vpack.c.b16 %v2134, %v2131
        %v2438 = vpack.c.b16 %v2138, %v2135
        %v2439 = vpack.c.b16 %v2139, %v2136
        %v2440 = vpack.c.b16 %v2140, %v2137
        %v2441 = vpack.c.b16 %v2144, %v2141
        %v2442 = vpack.c.b16 %v2145, %v2142
        %v2443 = vpack.c.b16 %v2146, %v2143
        %v2444 = vpack.c.b16 %v2150, %v2147
        %v2445 = vpack.c.b16 %v2151, %v2148
        %v2446 = vpack.c.b16 %v2152, %v2149
        %v2447 = vpack.c.b16 %v2156, %v2153
        %v2448 = vpack.c.b16 %v2157, %v2154
        %v2449 = vpack.c.b16 %v2158, %v2155
        %v2450 = vpack.c.b16 %v2162, %v2159
        %v2451 = vpack.c.b16 %v2163, %v2160
        %v2452 = vpack.c.b16 %v2164, %v2161
        %v2453 = vpack.c.b16 %v2168, %v2165
        %v2454 = vpack.c.b16 %v2169, %v2166
        %v2455 = vpack.c.b16 %v2170, %v2167
        %v2456 = vpack.c.b16 %v2174, %v2171
        %v2457 = vpack.c.b16 %v2175, %v2172
        %v2458 = vpack.c.b16 %v2176, %v2173
        %v2459 = vpack.c.b16 %v2180, %v2177
        %v2460 = vpack.c.b16 %v2181, %v2178
        %v2461 = vpack.c.b16 %v2182, %v2179
        %v2462 = vpack.c.b16 %v2186, %v2183
        %v2463 = vpack.c.b16 %v2187, %v2184
        %v2464 = vpack.c.b16 %v2188, %v2185
        %v2465 = vpack.c.b16 %v2192, %v2189
        %v2466 = vpack.c.b16 %v2193, %v2190
        %v2467 = vpack.c.b16 %v2194, %v2191
        %v2468 = vpack.c.b16 %v2198, %v2195
        %v2469 = vpack.c.b16 %v2199, %v2196
        %v2470 = vpack.c.b16 %v2200, %v2197
        %v2471 = vpack.c.b16 %v2204, %v2201
        %v2472 = vpack.c.b16 %v2205, %v2202
        %v2473 = vpack.c.b16 %v2206, %v2203
        %v2474 = vpack.c.b16 %v2210, %v2207
        %v2475 = vpack.c.b16 %v2211, %v2208
        %v2476 = vpack.c.b16 %v2212, %v2209
        %v2477 = vpack.c.b16 %v2216, %v2213
        %v2478 = vpack.c.b16 %v2217, %v2214
        %v2479 = vpack.c.b16 %v2218, %v2215
        %v2480 = vpack.c.b16 %v2222, %v2219
        %v2481 = vpack.c.b16 %v2223, %v2220
        %v2482 = vpack.c.b16 %v2224, %v2221
        %v2483 = vpack.c.b16 %v2228, %v2225
        %v2484 = vpack.c.b16 %v2229, %v2226
        %v2485 = vpack.c.b16 %v2230, %v2227
        %v2486 = vpack.c.b16 %v2234, %v2231
        %v2487 = vpack.c.b16 %v2235, %v2232
        %v2488 = vpack.c.b16 %v2236, %v2233
        %v2489 = vpack.c.b16 %v2240, %v2237
        %v2490 = vpack.c.b16 %v2241, %v2238
        %v2491 = vpack.c.b16 %v2242, %v2239
        %v2492 = vpack.c.b16 %v2246, %v2243
        %v2493 = vpack.c.b16 %v2247, %v2244
        %v2494 = vpack.c.b16 %v2248, %v2245
        %v2495 = vpack.c.b16 %v2252, %v2249
        %v2496 = vpack.c.b16 %v2253, %v2250
        %v2497 = vpack.c.b16 %v2254, %v2251
        %v2498 = vpack.c.b16 %v2258, %v2255
        %v2499 = vpack.c.b16 %v2259, %v2256
        %v2500 = vpack.c.b16 %v2260, %v2257
        %2741 = vmatprep.subr.bf16.mxu0 %v2262
        %2742 = vmatpush1.bf16.msra.mxu0 %v2261
        %2743 = vmatprep.subr.bf16.mxu0 %v2265
        %2744 = vmatpush1.bf16.msra.mxu0 %v2264
        %2745 = vmatprep.subr.bf16.mxu0 %v2268
        %2746 = vmatpush1.bf16.msra.mxu0 %v2267
        %2747 = vmatprep.subr.bf16.mxu0 %v2271
        %2748 = vmatpush1.bf16.msra.mxu0 %v2270
        %2749 = vmatprep.subr.bf16.mxu0 %v2274
        %2750 = vmatpush1.bf16.msra.mxu0 %v2273
        %2751 = vmatprep.subr.bf16.mxu0 %v2277
        %2752 = vmatpush1.bf16.msra.mxu0 %v2276
        %2753 = vmatprep.subr.bf16.mxu0 %v2280
        %2754 = vmatpush1.bf16.msra.mxu0 %v2279
        %2755 = vmatprep.subr.bf16.mxu0 %v2283
        %2756 = vmatpush1.bf16.msra.mxu0 %v2282
        %2757 = vmatprep.subr.bf16.mxu0 %v2286
        %2758 = vmatpush1.bf16.msra.mxu0 %v2285
        %2759 = vmatprep.subr.bf16.mxu0 %v2289
        %2760 = vmatpush1.bf16.msra.mxu0 %v2288
        %2761 = vmatprep.subr.bf16.mxu0 %v2292
        %2762 = vmatpush1.bf16.msra.mxu0 %v2291
        %2763 = vmatprep.subr.bf16.mxu0 %v2295
        %2764 = vmatpush1.bf16.msra.mxu0 %v2294
        %2765 = vmatprep.subr.bf16.mxu0 %v2298
        %2766 = vmatpush1.bf16.msra.mxu0 %v2297
        %2767 = vmatprep.subr.bf16.mxu0 %v2301
        %2768 = vmatpush1.bf16.msra.mxu0 %v2300
        %2769 = vmatprep.subr.bf16.mxu0 %v2304
        %2770 = vmatpush1.bf16.msra.mxu0 %v2303
        %2771 = vmatprep.subr.bf16.mxu0 %v2307
        %2772 = vmatpush1.bf16.msra.mxu0 %v2306
        %2773 = vmatprep.mubr.bf16.mxu0 %v1055
        %2774 = vmatmul.mubr.bf16.gmra.mrb[0].mxu0 %v1054
        %v2775 = vpop.f32.mrb[0].mxu0
        %v2776 = vadd.f32 %v1449, %v2775
        %v2777 = vpop.f32.mrb[0].mxu0
        %v2778 = vadd.f32 %v1453, %v2777
        %v2779 = vpop.f32.mrb[0].mxu0
        %v2780 = vadd.f32 %v1449, %v2779
        %v2781 = vpop.f32.mrb[0].mxu0
        %v2782 = vadd.f32 %v1453, %v2781
        %2783 = vmatprep.mubr.bf16.mxu0 %v1065
        %2784 = vmatmul.mubr.bf16.gmra.mrb[0].mxu0 %v1064
        %v2785 = vpop.f32.mrb[0].mxu0
        %v2786 = vadd.f32 %v1449, %v2785
        %v2787 = vpop.f32.mrb[0].mxu0
        %v2788 = vadd.f32 %v1453, %v2787
        %v2789 = vpop.f32.mrb[0].mxu0
        %v2790 = vadd.f32 %v1449, %v2789
        %v2791 = vpop.f32.mrb[0].mxu0
        %v2792 = vadd.f32 %v1453, %v2791
        %2793 = vmatprep.mubr.bf16.mxu0 %v1075
        %2794 = vmatmul.mubr.bf16.gmra.mrb[0].mxu0 %v1074
        %v2795 = vpop.f32.mrb[0].mxu0
        %v2796 = vadd.f32 %v1449, %v2795
        %v2797 = vpop.f32.mrb[0].mxu0
        %v2798 = vadd.f32 %v1453, %v2797
        %v2799 = vpop.f32.mrb[0].mxu0
        %v2800 = vadd.f32 %v1449, %v2799
        %v2801 = vpop.f32.mrb[0].mxu0
        %v2802 = vadd.f32 %v1453, %v2801
        %2803 = vmatprep.mubr.bf16.mxu0 %v1085
        %2804 = vmatmul.mubr.bf16.gmra.mrb[0].mxu0 %v1084
        %v2805 = vpop.f32.mrb[0].mxu0
        %v2806 = vadd.f32 %v1449, %v2805
        %v2807 = vpop.f32.mrb[0].mxu0
        %v2808 = vadd.f32 %v1453, %v2807
        %v2809 = vpop.f32.mrb[0].mxu0
        %v2810 = vadd.f32 %v1449, %v2809
        %v2811 = vpop.f32.mrb[0].mxu0
        %v2812 = vadd.f32 %v1453, %v2811
        %2813 = vmatprep.mubr.bf16.mxu0 %v1095
        %2814 = vmatmul.mubr.bf16.gmra.mrb[0].mxu0 %v1094
        %v2815 = vpop.f32.mrb[0].mxu0
        %v2816 = vadd.f32 %v1449, %v2815
        %v2817 = vpop.f32.mrb[0].mxu0
        %v2818 = vadd.f32 %v1453, %v2817
        %v2819 = vpop.f32.mrb[0].mxu0
        %v2820 = vadd.f32 %v1449, %v2819
        %v2821 = vpop.f32.mrb[0].mxu0
        %v2822 = vadd.f32 %v1453, %v2821
        %2823 = vmatprep.mubr.bf16.mxu0 %v1105
        %2824 = vmatmul.mubr.bf16.gmra.mrb[0].mxu0 %v1104
        %v2825 = vpop.f32.mrb[0].mxu0
        %v2826 = vadd.f32 %v1449, %v2825
        %v2827 = vpop.f32.mrb[0].mxu0
        %v2828 = vadd.f32 %v1453, %v2827
        %v2829 = vpop.f32.mrb[0].mxu0
        %v2830 = vadd.f32 %v1449, %v2829
        %v2831 = vpop.f32.mrb[0].mxu0
        %v2832 = vadd.f32 %v1453, %v2831
        %2833 = vmatprep.mubr.bf16.mxu0 %v1115
        %2834 = vmatmul.mubr.bf16.gmra.mrb[0].mxu0 %v1114
        %v2835 = vpop.f32.mrb[0].mxu0
        %v2836 = vadd.f32 %v1449, %v2835
        %v2837 = vpop.f32.mrb[0].mxu0
        %v2838 = vadd.f32 %v1453, %v2837
        %v2839 = vpop.f32.mrb[0].mxu0
        %v2840 = vpop.f32.mrb[0].mxu0
        %2841 = vdwg.mxu0
        %2842 = vmatprep.subr.bf16.mxu0 %v2310
        %2843 = vmatpush1.bf16.msra.mxu0 %v2309
        %2844 = vmatprep.subr.bf16.mxu0 %v2313
        %2845 = vmatpush1.bf16.msra.mxu0 %v2312
        %2846 = vmatprep.subr.bf16.mxu0 %v2316
        %2847 = vmatpush1.bf16.msra.mxu0 %v2315
        %2848 = vmatprep.subr.bf16.mxu0 %v2319
        %2849 = vmatpush1.bf16.msra.mxu0 %v2318
        %2850 = vmatprep.subr.bf16.mxu0 %v2322
        %2851 = vmatpush1.bf16.msra.mxu0 %v2321
        %2852 = vmatprep.subr.bf16.mxu0 %v2325
        %2853 = vmatpush1.bf16.msra.mxu0 %v2324
        %2854 = vmatprep.subr.bf16.mxu0 %v2328
        %2855 = vmatpush1.bf16.msra.mxu0 %v2327
        %2856 = vmatprep.subr.bf16.mxu0 %v2331
        %2857 = vmatpush1.bf16.msra.mxu0 %v2330
        %2858 = vmatprep.subr.bf16.mxu0 %v2334
        %2859 = vmatpush1.bf16.msra.mxu0 %v2333
        %2860 = vmatprep.subr.bf16.mxu0 %v2337
        %2861 = vmatpush1.bf16.msra.mxu0 %v2336
        %2862 = vmatprep.subr.bf16.mxu0 %v2340
        %2863 = vmatpush1.bf16.msra.mxu0 %v2339
        %2864 = vmatprep.subr.bf16.mxu0 %v2343
        %2865 = vmatpush1.bf16.msra.mxu0 %v2342
        %2866 = vmatprep.subr.bf16.mxu0 %v2346
        %2867 = vmatpush1.bf16.msra.mxu0 %v2345
        %2868 = vmatprep.subr.bf16.mxu0 %v2349
        %2869 = vmatpush1.bf16.msra.mxu0 %v2348
        %2870 = vmatprep.subr.bf16.mxu0 %v2352
        %2871 = vmatpush1.bf16.msra.mxu0 %v2351
        %2872 = vmatprep.subr.bf16.mxu0 %v2355
        %2873 = vmatpush1.bf16.msra.mxu0 %v2354
        %2874 = vmatprep.mubr.bf16.mxu0 %v1057
        %2875 = vmatmul.mubr.bf16.gmra.mrb[0].mxu0 %v1056
        %v2876 = vpop.f32.mrb[0].mxu0
        %v2877 = vadd.f32 %v2776, %v2876
        %v2878 = vpop.f32.mrb[0].mxu0
        %v2879 = vadd.f32 %v2778, %v2878
        %v2880 = vpop.f32.mrb[0].mxu0
        %v2881 = vadd.f32 %v2780, %v2880
        %v2882 = vpop.f32.mrb[0].mxu0
        %v2883 = vadd.f32 %v2782, %v2882
        %2884 = vmatprep.mubr.bf16.mxu0 %v1067
        %2885 = vmatmul.mubr.bf16.gmra.mrb[0].mxu0 %v1066
        %v2886 = vpop.f32.mrb[0].mxu0
        %v2887 = vadd.f32 %v2786, %v2886
        %v2888 = vpop.f32.mrb[0].mxu0
        %v2889 = vadd.f32 %v2788, %v2888
        %v2890 = vpop.f32.mrb[0].mxu0
        %v2891 = vadd.f32 %v2790, %v2890
        %v2892 = vpop.f32.mrb[0].mxu0
        %v2893 = vadd.f32 %v2792, %v2892
        %2894 = vmatprep.mubr.bf16.mxu0 %v1077
        %2895 = vmatmul.mubr.bf16.gmra.mrb[0].mxu0 %v1076
        %v2896 = vpop.f32.mrb[0].mxu0
        %v2897 = vadd.f32 %v2796, %v2896
        %v2898 = vpop.f32.mrb[0].mxu0
        %v2899 = vadd.f32 %v2798, %v2898
        %v2900 = vpop.f32.mrb[0].mxu0
        %v2901 = vadd.f32 %v2800, %v2900
        %v2902 = vpop.f32.mrb[0].mxu0
        %v2903 = vadd.f32 %v2802, %v2902
        %2904 = vmatprep.mubr.bf16.mxu0 %v1087
        %2905 = vmatmul.mubr.bf16.gmra.mrb[0].mxu0 %v1086
        %v2906 = vpop.f32.mrb[0].mxu0
        %v2907 = vadd.f32 %v2806, %v2906
        %v2908 = vpop.f32.mrb[0].mxu0
        %v2909 = vadd.f32 %v2808, %v2908
        %v2910 = vpop.f32.mrb[0].mxu0
        %v2911 = vadd.f32 %v2810, %v2910
        %v2912 = vpop.f32.mrb[0].mxu0
        %v2913 = vadd.f32 %v2812, %v2912
        %2914 = vmatprep.mubr.bf16.mxu0 %v1097
        %2915 = vmatmul.mubr.bf16.gmra.mrb[0].mxu0 %v1096
        %v2916 = vpop.f32.mrb[0].mxu0
        %v2917 = vadd.f32 %v2816, %v2916
        %v2918 = vpop.f32.mrb[0].mxu0
        %v2919 = vadd.f32 %v2818, %v2918
        %v2920 = vpop.f32.mrb[0].mxu0
        %v2921 = vadd.f32 %v2820, %v2920
        %v2922 = vpop.f32.mrb[0].mxu0
        %v2923 = vadd.f32 %v2822, %v2922
        %2924 = vmatprep.mubr.bf16.mxu0 %v1107
        %2925 = vmatmul.mubr.bf16.gmra.mrb[0].mxu0 %v1106
        %v2926 = vpop.f32.mrb[0].mxu0
        %v2927 = vadd.f32 %v2826, %v2926
        %v2928 = vpop.f32.mrb[0].mxu0
        %v2929 = vadd.f32 %v2828, %v2928
        %v2930 = vpop.f32.mrb[0].mxu0
        %v2931 = vadd.f32 %v2830, %v2930
        %v2932 = vpop.f32.mrb[0].mxu0
        %v2933 = vadd.f32 %v2832, %v2932
        %2934 = vmatprep.mubr.bf16.mxu0 %v1117
        %2935 = vmatmul.mubr.bf16.gmra.mrb[0].mxu0 %v1116
        %v2936 = vpop.f32.mrb[0].mxu0
        %v2937 = vadd.f32 %v2836, %v2936
        %v2938 = vpop.f32.mrb[0].mxu0
        %v2939 = vadd.f32 %v2838, %v2938
        %v2940 = vpop.f32.mrb[0].mxu0
        %v2941 = vpop.f32.mrb[0].mxu0
        %2942 = vdwg.mxu0
        %2943 = vmatprep.subr.bf16.mxu0 %v2358
        %2944 = vmatpush1.bf16.msra.mxu0 %v2357
        %2945 = vmatprep.subr.bf16.mxu0 %v2361
        %2946 = vmatpush1.bf16.msra.mxu0 %v2360
        %2947 = vmatprep.subr.bf16.mxu0 %v2364
        %2948 = vmatpush1.bf16.msra.mxu0 %v2363
        %2949 = vmatprep.subr.bf16.mxu0 %v2367
        %2950 = vmatpush1.bf16.msra.mxu0 %v2366
        %2951 = vmatprep.subr.bf16.mxu0 %v2370
        %2952 = vmatpush1.bf16.msra.mxu0 %v2369
        %2953 = vmatprep.subr.bf16.mxu0 %v2373
        %2954 = vmatpush1.bf16.msra.mxu0 %v2372
        %2955 = vmatprep.subr.bf16.mxu0 %v2376
        %2956 = vmatpush1.bf16.msra.mxu0 %v2375
        %2957 = vmatprep.subr.bf16.mxu0 %v2379
        %2958 = vmatpush1.bf16.msra.mxu0 %v2378
        %2959 = vmatprep.subr.bf16.mxu0 %v2382
        %2960 = vmatpush1.bf16.msra.mxu0 %v2381
        %2961 = vmatprep.subr.bf16.mxu0 %v2385
        %2962 = vmatpush1.bf16.msra.mxu0 %v2384
        %2963 = vmatprep.subr.bf16.mxu0 %v2388
        %2964 = vmatpush1.bf16.msra.mxu0 %v2387
        %2965 = vmatprep.subr.bf16.mxu0 %v2391
        %2966 = vmatpush1.bf16.msra.mxu0 %v2390
        %2967 = vmatprep.subr.bf16.mxu0 %v2394
        %2968 = vmatpush1.bf16.msra.mxu0 %v2393
        %2969 = vmatprep.subr.bf16.mxu0 %v2397
        %2970 = vmatpush1.bf16.msra.mxu0 %v2396
        %2971 = vmatprep.subr.bf16.mxu0 %v2400
        %2972 = vmatpush1.bf16.msra.mxu0 %v2399
        %2973 = vmatprep.subr.bf16.mxu0 %v2403
        %2974 = vmatpush1.bf16.msra.mxu0 %v2402
        %2975 = vmatprep.mubr.bf16.mxu0 %v1059
        %2976 = vmatmul.mubr.bf16.gmra.mrb[0].mxu0 %v1058
        %v2977 = vpop.f32.mrb[0].mxu0
        %v2978 = vadd.f32 %v2877, %v2977
        %v2979 = vpop.f32.mrb[0].mxu0
        %v2980 = vadd.f32 %v2879, %v2979
        %v2981 = vpop.f32.mrb[0].mxu0
        %v2982 = vadd.f32 %v2881, %v2981
        %v2983 = vpop.f32.mrb[0].mxu0
        %v2984 = vadd.f32 %v2883, %v2983
        %2985 = vmatprep.mubr.bf16.mxu0 %v1069
        %2986 = vmatmul.mubr.bf16.gmra.mrb[0].mxu0 %v1068
        %v2987 = vpop.f32.mrb[0].mxu0
        %v2988 = vadd.f32 %v2887, %v2987
        %v2989 = vpop.f32.mrb[0].mxu0
        %v2990 = vadd.f32 %v2889, %v2989
        %v2991 = vpop.f32.mrb[0].mxu0
        %v2992 = vadd.f32 %v2891, %v2991
        %v2993 = vpop.f32.mrb[0].mxu0
        %v2994 = vadd.f32 %v2893, %v2993
        %2995 = vmatprep.mubr.bf16.mxu0 %v1079
        %2996 = vmatmul.mubr.bf16.gmra.mrb[0].mxu0 %v1078
        %v2997 = vpop.f32.mrb[0].mxu0
        %v2998 = vadd.f32 %v2897, %v2997
        %v2999 = vpop.f32.mrb[0].mxu0
        %v3000 = vadd.f32 %v2899, %v2999
        %v3001 = vpop.f32.mrb[0].mxu0
        %v3002 = vadd.f32 %v2901, %v3001
        %v3003 = vpop.f32.mrb[0].mxu0
        %v3004 = vadd.f32 %v2903, %v3003
        %3005 = vmatprep.mubr.bf16.mxu0 %v1089
        %3006 = vmatmul.mubr.bf16.gmra.mrb[0].mxu0 %v1088
        %v3007 = vpop.f32.mrb[0].mxu0
        %v3008 = vadd.f32 %v2907, %v3007
        %v3009 = vpop.f32.mrb[0].mxu0
        %v3010 = vadd.f32 %v2909, %v3009
        %v3011 = vpop.f32.mrb[0].mxu0
        %v3012 = vadd.f32 %v2911, %v3011
        %v3013 = vpop.f32.mrb[0].mxu0
        %v3014 = vadd.f32 %v2913, %v3013
        %3015 = vmatprep.mubr.bf16.mxu0 %v1099
        %3016 = vmatmul.mubr.bf16.gmra.mrb[0].mxu0 %v1098
        %v3017 = vpop.f32.mrb[0].mxu0
        %v3018 = vadd.f32 %v2917, %v3017
        %v3019 = vpop.f32.mrb[0].mxu0
        %v3020 = vadd.f32 %v2919, %v3019
        %v3021 = vpop.f32.mrb[0].mxu0
        %v3022 = vadd.f32 %v2921, %v3021
        %v3023 = vpop.f32.mrb[0].mxu0
        %v3024 = vadd.f32 %v2923, %v3023
        %3025 = vmatprep.mubr.bf16.mxu0 %v1109
        %3026 = vmatmul.mubr.bf16.gmra.mrb[0].mxu0 %v1108
        %v3027 = vpop.f32.mrb[0].mxu0
        %v3028 = vadd.f32 %v2927, %v3027
        %v3029 = vpop.f32.mrb[0].mxu0
        %v3030 = vadd.f32 %v2929, %v3029
        %v3031 = vpop.f32.mrb[0].mxu0
        %v3032 = vadd.f32 %v2931, %v3031
        %v3033 = vpop.f32.mrb[0].mxu0
        %v3034 = vadd.f32 %v2933, %v3033
        %3035 = vmatprep.mubr.bf16.mxu0 %v1119
        %3036 = vmatmul.mubr.bf16.gmra.mrb[0].mxu0 %v1118
        %v3037 = vpop.f32.mrb[0].mxu0
        %v3038 = vadd.f32 %v2937, %v3037
        %v3039 = vpop.f32.mrb[0].mxu0
        %v3040 = vadd.f32 %v2939, %v3039
        %v3041 = vpop.f32.mrb[0].mxu0
        %v3042 = vpop.f32.mrb[0].mxu0
        %3043 = vdwg.mxu0
        %3044 = vmatprep.subr.bf16.mxu0 %v2406
        %3045 = vmatpush1.bf16.msra.mxu0 %v2405
        %3046 = vmatprep.subr.bf16.mxu0 %v2409
        %3047 = vmatpush1.bf16.msra.mxu0 %v2408
        %3048 = vmatprep.subr.bf16.mxu0 %v2412
        %3049 = vmatpush1.bf16.msra.mxu0 %v2411
        %3050 = vmatprep.subr.bf16.mxu0 %v2415
        %3051 = vmatpush1.bf16.msra.mxu0 %v2414
        %3052 = vmatprep.subr.bf16.mxu0 %v2418
        %3053 = vmatpush1.bf16.msra.mxu0 %v2417
        %3054 = vmatprep.subr.bf16.mxu0 %v2421
        %3055 = vmatpush1.bf16.msra.mxu0 %v2420
        %3056 = vmatprep.subr.bf16.mxu0 %v2424
        %3057 = vmatpush1.bf16.msra.mxu0 %v2423
        %3058 = vmatprep.subr.bf16.mxu0 %v2427
        %3059 = vmatpush1.bf16.msra.mxu0 %v2426
        %3060 = vmatprep.subr.bf16.mxu0 %v2430
        %3061 = vmatpush1.bf16.msra.mxu0 %v2429
        %3062 = vmatprep.subr.bf16.mxu0 %v2433
        %3063 = vmatpush1.bf16.msra.mxu0 %v2432
        %3064 = vmatprep.subr.bf16.mxu0 %v2436
        %3065 = vmatpush1.bf16.msra.mxu0 %v2435
        %3066 = vmatprep.subr.bf16.mxu0 %v2439
        %3067 = vmatpush1.bf16.msra.mxu0 %v2438
        %3068 = vmatprep.subr.bf16.mxu0 %v2442
        %3069 = vmatpush1.bf16.msra.mxu0 %v2441
        %3070 = vmatprep.subr.bf16.mxu0 %v2445
        %3071 = vmatpush1.bf16.msra.mxu0 %v2444
        %3072 = vmatprep.subr.bf16.mxu0 %v2448
        %3073 = vmatpush1.bf16.msra.mxu0 %v2447
        %3074 = vmatprep.subr.bf16.mxu0 %v2451
        %3075 = vmatpush1.bf16.msra.mxu0 %v2450
        %3076 = vmatprep.mubr.bf16.mxu0 %v1061
        %3077 = vmatmul.mubr.bf16.gmra.mrb[0].mxu0 %v1060
        %v3078 = vpop.f32.mrb[0].mxu0
        %v3079 = vadd.f32 %v2978, %v3078
        %v3080 = vpop.f32.mrb[0].mxu0
        %v3081 = vadd.f32 %v2980, %v3080
        %v3082 = vpop.f32.mrb[0].mxu0
        %v3083 = vadd.f32 %v2982, %v3082
        %v3084 = vpop.f32.mrb[0].mxu0
        %v3085 = vadd.f32 %v2984, %v3084
        %3086 = vmatprep.mubr.bf16.mxu0 %v1071
        %3087 = vmatmul.mubr.bf16.gmra.mrb[0].mxu0 %v1070
        %v3088 = vpop.f32.mrb[0].mxu0
        %v3089 = vadd.f32 %v2988, %v3088
        %v3090 = vpop.f32.mrb[0].mxu0
        %v3091 = vadd.f32 %v2990, %v3090
        %v3092 = vpop.f32.mrb[0].mxu0
        %v3093 = vadd.f32 %v2992, %v3092
        %v3094 = vpop.f32.mrb[0].mxu0
        %v3095 = vadd.f32 %v2994, %v3094
        %3096 = vmatprep.mubr.bf16.mxu0 %v1081
        %3097 = vmatmul.mubr.bf16.gmra.mrb[0].mxu0 %v1080
        %v3098 = vpop.f32.mrb[0].mxu0
        %v3099 = vadd.f32 %v2998, %v3098
        %v3100 = vpop.f32.mrb[0].mxu0
        %v3101 = vadd.f32 %v3000, %v3100
        %v3102 = vpop.f32.mrb[0].mxu0
        %v3103 = vadd.f32 %v3002, %v3102
        %v3104 = vpop.f32.mrb[0].mxu0
        %v3105 = vadd.f32 %v3004, %v3104
        %3106 = vmatprep.mubr.bf16.mxu0 %v1091
        %3107 = vmatmul.mubr.bf16.gmra.mrb[0].mxu0 %v1090
        %v3108 = vpop.f32.mrb[0].mxu0
        %v3109 = vadd.f32 %v3008, %v3108
        %v3110 = vpop.f32.mrb[0].mxu0
        %v3111 = vadd.f32 %v3010, %v3110
        %v3112 = vpop.f32.mrb[0].mxu0
        %v3113 = vadd.f32 %v3012, %v3112
        %v3114 = vpop.f32.mrb[0].mxu0
        %v3115 = vadd.f32 %v3014, %v3114
        %3116 = vmatprep.mubr.bf16.mxu0 %v1101
        %3117 = vmatmul.mubr.bf16.gmra.mrb[0].mxu0 %v1100
        %v3118 = vpop.f32.mrb[0].mxu0
        %v3119 = vadd.f32 %v3018, %v3118
        %v3120 = vpop.f32.mrb[0].mxu0
        %v3121 = vadd.f32 %v3020, %v3120
        %v3122 = vpop.f32.mrb[0].mxu0
        %v3123 = vadd.f32 %v3022, %v3122
        %v3124 = vpop.f32.mrb[0].mxu0
        %v3125 = vadd.f32 %v3024, %v3124
        %3126 = vmatprep.mubr.bf16.mxu0 %v1111
        %3127 = vmatmul.mubr.bf16.gmra.mrb[0].mxu0 %v1110
        %v3128 = vpop.f32.mrb[0].mxu0
        %v3129 = vadd.f32 %v3028, %v3128
        %v3130 = vpop.f32.mrb[0].mxu0
        %v3131 = vadd.f32 %v3030, %v3130
        %v3132 = vpop.f32.mrb[0].mxu0
        %v3133 = vadd.f32 %v3032, %v3132
        %v3134 = vpop.f32.mrb[0].mxu0
        %v3135 = vadd.f32 %v3034, %v3134
        %3136 = vmatprep.mubr.bf16.mxu0 %v1121
        %3137 = vmatmul.mubr.bf16.gmra.mrb[0].mxu0 %v1120
        %v3138 = vpop.f32.mrb[0].mxu0
        %v3139 = vadd.f32 %v3038, %v3138
        %v3140 = vpop.f32.mrb[0].mxu0
        %v3141 = vadd.f32 %v3040, %v3140
        %v3142 = vpop.f32.mrb[0].mxu0
        %v3143 = vpop.f32.mrb[0].mxu0
        %3144 = vdwg.mxu0
        %3145 = vmatprep.subr.bf16.mxu0 %v2454
        %3146 = vmatpush1.bf16.msra.mxu0 %v2453
        %3147 = vmatprep.subr.bf16.mxu0 %v2457
        %3148 = vmatpush1.bf16.msra.mxu0 %v2456
        %3149 = vmatprep.subr.bf16.mxu0 %v2460
        %3150 = vmatpush1.bf16.msra.mxu0 %v2459
        %3151 = vmatprep.subr.bf16.mxu0 %v2463
        %3152 = vmatpush1.bf16.msra.mxu0 %v2462
        %3153 = vmatprep.subr.bf16.mxu0 %v2466
        %3154 = vmatpush1.bf16.msra.mxu0 %v2465
        %3155 = vmatprep.subr.bf16.mxu0 %v2469
        %3156 = vmatpush1.bf16.msra.mxu0 %v2468
        %3157 = vmatprep.subr.bf16.mxu0 %v2472
        %3158 = vmatpush1.bf16.msra.mxu0 %v2471
        %3159 = vmatprep.subr.bf16.mxu0 %v2475
        %3160 = vmatpush1.bf16.msra.mxu0 %v2474
        %3161 = vmatprep.subr.bf16.mxu0 %v2478
        %3162 = vmatpush1.bf16.msra.mxu0 %v2477
        %3163 = vmatprep.subr.bf16.mxu0 %v2481
        %3164 = vmatpush1.bf16.msra.mxu0 %v2480
        %3165 = vmatprep.subr.bf16.mxu0 %v2484
        %3166 = vmatpush1.bf16.msra.mxu0 %v2483
        %3167 = vmatprep.subr.bf16.mxu0 %v2487
        %3168 = vmatpush1.bf16.msra.mxu0 %v2486
        %3169 = vmatprep.subr.bf16.mxu0 %v2490
        %3170 = vmatpush1.bf16.msra.mxu0 %v2489
        %3171 = vmatprep.subr.bf16.mxu0 %v2493
        %3172 = vmatpush1.bf16.msra.mxu0 %v2492
        %3173 = vmatprep.subr.bf16.mxu0 %v2496
        %3174 = vmatpush1.bf16.msra.mxu0 %v2495
        %3175 = vmatprep.subr.bf16.mxu0 %v2499
        %3176 = vmatpush1.bf16.msra.mxu0 %v2498
        %3177 = vmatprep.mubr.bf16.mxu0 %v1063
        %3178 = vmatmul.mubr.bf16.gmra.mrb[0].mxu0 %v1062
        %v3179 = vpop.f32.mrb[0].mxu0
        %v3180 = vadd.f32 %v3079, %v3179
        %v3181 = vpop.f32.mrb[0].mxu0
        %v3182 = vadd.f32 %v3081, %v3181
        %v3183 = vpop.f32.mrb[0].mxu0
        %v3184 = vadd.f32 %v3083, %v3183
        %v3185 = vpop.f32.mrb[0].mxu0
        %v3186 = vadd.f32 %v3085, %v3185
        %3187 = vmatprep.mubr.bf16.mxu0 %v1073
        %3188 = vmatmul.mubr.bf16.gmra.mrb[0].mxu0 %v1072
        %v3189 = vpop.f32.mrb[0].mxu0
        %v3190 = vadd.f32 %v3089, %v3189
        %v3191 = vpop.f32.mrb[0].mxu0
        %v3192 = vadd.f32 %v3091, %v3191
        %v3193 = vpop.f32.mrb[0].mxu0
        %v3194 = vadd.f32 %v3093, %v3193
        %v3195 = vpop.f32.mrb[0].mxu0
        %v3196 = vadd.f32 %v3095, %v3195
        %3197 = vmatprep.mubr.bf16.mxu0 %v1083
        %3198 = vmatmul.mubr.bf16.gmra.mrb[0].mxu0 %v1082
        %v3199 = vpop.f32.mrb[0].mxu0
        %v3200 = vadd.f32 %v3099, %v3199
        %v3201 = vpop.f32.mrb[0].mxu0
        %v3202 = vadd.f32 %v3101, %v3201
        %v3203 = vpop.f32.mrb[0].mxu0
        %v3204 = vadd.f32 %v3103, %v3203
        %v3205 = vpop.f32.mrb[0].mxu0
        %v3206 = vadd.f32 %v3105, %v3205
        %3207 = vmatprep.mubr.bf16.mxu0 %v1093
        %3208 = vmatmul.mubr.bf16.gmra.mrb[0].mxu0 %v1092
        %v3209 = vpop.f32.mrb[0].mxu0
        %v3210 = vadd.f32 %v3109, %v3209
        %v3211 = vpop.f32.mrb[0].mxu0
        %v3212 = vadd.f32 %v3111, %v3211
        %v3213 = vpop.f32.mrb[0].mxu0
        %v3214 = vadd.f32 %v3113, %v3213
        %v3215 = vpop.f32.mrb[0].mxu0
        %v3216 = vadd.f32 %v3115, %v3215
        %3217 = vmatprep.mubr.bf16.mxu0 %v1103
        %3218 = vmatmul.mubr.bf16.gmra.mrb[0].mxu0 %v1102
        %v3219 = vpop.f32.mrb[0].mxu0
        %v3220 = vadd.f32 %v3119, %v3219
        %v3221 = vpop.f32.mrb[0].mxu0
        %v3222 = vadd.f32 %v3121, %v3221
        %v3223 = vpop.f32.mrb[0].mxu0
        %v3224 = vadd.f32 %v3123, %v3223
        %v3225 = vpop.f32.mrb[0].mxu0
        %v3226 = vadd.f32 %v3125, %v3225
        %3227 = vmatprep.mubr.bf16.mxu0 %v1113
        %3228 = vmatmul.mubr.bf16.gmra.mrb[0].mxu0 %v1112
        %v3229 = vpop.f32.mrb[0].mxu0
        %v3230 = vadd.f32 %v3129, %v3229
        %v3231 = vpop.f32.mrb[0].mxu0
        %v3232 = vadd.f32 %v3131, %v3231
        %v3233 = vpop.f32.mrb[0].mxu0
        %v3234 = vadd.f32 %v3133, %v3233
        %v3235 = vpop.f32.mrb[0].mxu0
        %v3236 = vadd.f32 %v3135, %v3235
        %3237 = vmatprep.mubr.bf16.mxu0 %v1123
        %3238 = vmatmul.mubr.bf16.gmra.mrb[0].mxu0 %v1122
        %v3239 = vpop.f32.mrb[0].mxu0
        %v3240 = vadd.f32 %v3139, %v3239
        %v3241 = vpop.f32.mrb[0].mxu0
        %v3242 = vadd.f32 %v3141, %v3241
        %v3243 = vpop.f32.mrb[0].mxu0
        %v3244 = vpop.f32.mrb[0].mxu0
        %3245 = vdwg.mxu0
        %3246 = vmatprep.subr.bf16.mxu0 0
        %3247 = vmatpush1.bf16.msra.mxu0 %v2263
        %3248 = vmatprep.subr.bf16.mxu0 0
        %3249 = vmatpush1.bf16.msra.mxu0 %v2266
        %3250 = vmatprep.subr.bf16.mxu0 0
        %3251 = vmatpush1.bf16.msra.mxu0 %v2269
        %3252 = vmatprep.subr.bf16.mxu0 0
        %3253 = vmatpush1.bf16.msra.mxu0 %v2272
        %3254 = vmatprep.subr.bf16.mxu0 0
        %3255 = vmatpush1.bf16.msra.mxu0 %v2275
        %3256 = vmatprep.subr.bf16.mxu0 0
        %3257 = vmatpush1.bf16.msra.mxu0 %v2278
        %3258 = vmatprep.subr.bf16.mxu0 0
        %3259 = vmatpush1.bf16.msra.mxu0 %v2281
        %3260 = vmatprep.subr.bf16.mxu0 0
        %3261 = vmatpush1.bf16.msra.mxu0 %v2284
        %3262 = vmatprep.subr.bf16.mxu0 0
        %3263 = vmatpush1.bf16.msra.mxu0 %v2287
        %3264 = vmatprep.subr.bf16.mxu0 0
        %3265 = vmatpush1.bf16.msra.mxu0 %v2290
        %3266 = vmatprep.subr.bf16.mxu0 0
        %3267 = vmatpush1.bf16.msra.mxu0 %v2293
        %3268 = vmatprep.subr.bf16.mxu0 0
        %3269 = vmatpush1.bf16.msra.mxu0 %v2296
        %3270 = vmatprep.subr.bf16.mxu0 0
        %3271 = vmatpush1.bf16.msra.mxu0 %v2299
        %3272 = vmatprep.subr.bf16.mxu0 0
        %3273 = vmatpush1.bf16.msra.mxu0 %v2302
        %3274 = vmatprep.subr.bf16.mxu0 0
        %3275 = vmatpush1.bf16.msra.mxu0 %v2305
        %3276 = vmatprep.subr.bf16.mxu0 0
        %3277 = vmatpush1.bf16.msra.mxu0 %v2308
        %3278 = vmatprep.mubr.bf16.mxu0 %v1055
        %3279 = vmatmul.mubr.bf16.gmra.mrb[0].mxu0 %v1054
        %v3280 = vpop.f32.mrb[0].mxu0
        %v3281 = vadd.f32 %v1457, %v3280
        %v3282 = vpop.f32.mrb[0].mxu0
        %v3283 = vpop.f32.mrb[0].mxu0
        %v3284 = vadd.f32 %v1457, %v3283
        %v3285 = vpop.f32.mrb[0].mxu0
        %3286 = vmatprep.mubr.bf16.mxu0 %v1065
        %3287 = vmatmul.mubr.bf16.gmra.mrb[0].mxu0 %v1064
        %v3288 = vpop.f32.mrb[0].mxu0
        %v3289 = vadd.f32 %v1457, %v3288
        %v3290 = vpop.f32.mrb[0].mxu0
        %v3291 = vpop.f32.mrb[0].mxu0
        %v3292 = vadd.f32 %v1457, %v3291
        %v3293 = vpop.f32.mrb[0].mxu0
        %3294 = vmatprep.mubr.bf16.mxu0 %v1075
        %3295 = vmatmul.mubr.bf16.gmra.mrb[0].mxu0 %v1074
        %v3296 = vpop.f32.mrb[0].mxu0
        %v3297 = vadd.f32 %v1457, %v3296
        %v3298 = vpop.f32.mrb[0].mxu0
        %v3299 = vpop.f32.mrb[0].mxu0
        %v3300 = vadd.f32 %v1457, %v3299
        %v3301 = vpop.f32.mrb[0].mxu0
        %3302 = vmatprep.mubr.bf16.mxu0 %v1085
        %3303 = vmatmul.mubr.bf16.gmra.mrb[0].mxu0 %v1084
        %v3304 = vpop.f32.mrb[0].mxu0
        %v3305 = vadd.f32 %v1457, %v3304
        %v3306 = vpop.f32.mrb[0].mxu0
        %v3307 = vpop.f32.mrb[0].mxu0
        %v3308 = vadd.f32 %v1457, %v3307
        %v3309 = vpop.f32.mrb[0].mxu0
        %3310 = vmatprep.mubr.bf16.mxu0 %v1095
        %3311 = vmatmul.mubr.bf16.gmra.mrb[0].mxu0 %v1094
        %v3312 = vpop.f32.mrb[0].mxu0
        %v3313 = vadd.f32 %v1457, %v3312
        %v3314 = vpop.f32.mrb[0].mxu0
        %v3315 = vpop.f32.mrb[0].mxu0
        %v3316 = vadd.f32 %v1457, %v3315
        %v3317 = vpop.f32.mrb[0].mxu0
        %3318 = vmatprep.mubr.bf16.mxu0 %v1105
        %3319 = vmatmul.mubr.bf16.gmra.mrb[0].mxu0 %v1104
        %v3320 = vpop.f32.mrb[0].mxu0
        %v3321 = vadd.f32 %v1457, %v3320
        %v3322 = vpop.f32.mrb[0].mxu0
        %v3323 = vpop.f32.mrb[0].mxu0
        %v3324 = vadd.f32 %v1457, %v3323
        %v3325 = vpop.f32.mrb[0].mxu0
        %3326 = vmatprep.mubr.bf16.mxu0 %v1115
        %3327 = vmatmul.mubr.bf16.gmra.mrb[0].mxu0 %v1114
        %v3328 = vpop.f32.mrb[0].mxu0
        %v3329 = vadd.f32 %v1457, %v3328
        %v3330 = vpop.f32.mrb[0].mxu0
        %v3331 = vpop.f32.mrb[0].mxu0
        %v3332 = vpop.f32.mrb[0].mxu0
        %3333 = vdwg.mxu0
        %3334 = vmatprep.subr.bf16.mxu0 0
        %3335 = vmatpush1.bf16.msra.mxu0 %v2311
        %3336 = vmatprep.subr.bf16.mxu0 0
        %3337 = vmatpush1.bf16.msra.mxu0 %v2314
        %3338 = vmatprep.subr.bf16.mxu0 0
        %3339 = vmatpush1.bf16.msra.mxu0 %v2317
        %3340 = vmatprep.subr.bf16.mxu0 0
        %3341 = vmatpush1.bf16.msra.mxu0 %v2320
        %3342 = vmatprep.subr.bf16.mxu0 0
        %3343 = vmatpush1.bf16.msra.mxu0 %v2323
        %3344 = vmatprep.subr.bf16.mxu0 0
        %3345 = vmatpush1.bf16.msra.mxu0 %v2326
        %3346 = vmatprep.subr.bf16.mxu0 0
        %3347 = vmatpush1.bf16.msra.mxu0 %v2329
        %3348 = vmatprep.subr.bf16.mxu0 0
        %3349 = vmatpush1.bf16.msra.mxu0 %v2332
        %3350 = vmatprep.subr.bf16.mxu0 0
        %3351 = vmatpush1.bf16.msra.mxu0 %v2335
        %3352 = vmatprep.subr.bf16.mxu0 0
        %3353 = vmatpush1.bf16.msra.mxu0 %v2338
        %3354 = vmatprep.subr.bf16.mxu0 0
        %3355 = vmatpush1.bf16.msra.mxu0 %v2341
        %3356 = vmatprep.subr.bf16.mxu0 0
        %3357 = vmatpush1.bf16.msra.mxu0 %v2344
        %3358 = vmatprep.subr.bf16.mxu0 0
        %3359 = vmatpush1.bf16.msra.mxu0 %v2347
        %3360 = vmatprep.subr.bf16.mxu0 0
        %3361 = vmatpush1.bf16.msra.mxu0 %v2350
        %3362 = vmatprep.subr.bf16.mxu0 0
        %3363 = vmatpush1.bf16.msra.mxu0 %v2353
        %3364 = vmatprep.subr.bf16.mxu0 0
        %3365 = vmatpush1.bf16.msra.mxu0 %v2356
        %3366 = vmatprep.mubr.bf16.mxu0 %v1057
        %3367 = vmatmul.mubr.bf16.gmra.mrb[0].mxu0 %v1056
        %v3368 = vpop.f32.mrb[0].mxu0
        %v3369 = vadd.f32 %v3281, %v3368
        %v3370 = vpop.f32.mrb[0].mxu0
        %v3371 = vpop.f32.mrb[0].mxu0
        %v3372 = vadd.f32 %v3284, %v3371
        %v3373 = vpop.f32.mrb[0].mxu0
        %3374 = vmatprep.mubr.bf16.mxu0 %v1067
        %3375 = vmatmul.mubr.bf16.gmra.mrb[0].mxu0 %v1066
        %v3376 = vpop.f32.mrb[0].mxu0
        %v3377 = vadd.f32 %v3289, %v3376
        %v3378 = vpop.f32.mrb[0].mxu0
        %v3379 = vpop.f32.mrb[0].mxu0
        %v3380 = vadd.f32 %v3292, %v3379
        %v3381 = vpop.f32.mrb[0].mxu0
        %3382 = vmatprep.mubr.bf16.mxu0 %v1077
        %3383 = vmatmul.mubr.bf16.gmra.mrb[0].mxu0 %v1076
        %v3384 = vpop.f32.mrb[0].mxu0
        %v3385 = vadd.f32 %v3297, %v3384
        %v3386 = vpop.f32.mrb[0].mxu0
        %v3387 = vpop.f32.mrb[0].mxu0
        %v3388 = vadd.f32 %v3300, %v3387
        %v3389 = vpop.f32.mrb[0].mxu0
        %3390 = vmatprep.mubr.bf16.mxu0 %v1087
        %3391 = vmatmul.mubr.bf16.gmra.mrb[0].mxu0 %v1086
        %v3392 = vpop.f32.mrb[0].mxu0
        %v3393 = vadd.f32 %v3305, %v3392
        %v3394 = vpop.f32.mrb[0].mxu0
        %v3395 = vpop.f32.mrb[0].mxu0
        %v3396 = vadd.f32 %v3308, %v3395
        %v3397 = vpop.f32.mrb[0].mxu0
        %3398 = vmatprep.mubr.bf16.mxu0 %v1097
        %3399 = vmatmul.mubr.bf16.gmra.mrb[0].mxu0 %v1096
        %v3400 = vpop.f32.mrb[0].mxu0
        %v3401 = vadd.f32 %v3313, %v3400
        %v3402 = vpop.f32.mrb[0].mxu0
        %v3403 = vpop.f32.mrb[0].mxu0
        %v3404 = vadd.f32 %v3316, %v3403
        %v3405 = vpop.f32.mrb[0].mxu0
        %3406 = vmatprep.mubr.bf16.mxu0 %v1107
        %3407 = vmatmul.mubr.bf16.gmra.mrb[0].mxu0 %v1106
        %v3408 = vpop.f32.mrb[0].mxu0
        %v3409 = vadd.f32 %v3321, %v3408
        %v3410 = vpop.f32.mrb[0].mxu0
        %v3411 = vpop.f32.mrb[0].mxu0
        %v3412 = vadd.f32 %v3324, %v3411
        %v3413 = vpop.f32.mrb[0].mxu0
        %3414 = vmatprep.mubr.bf16.mxu0 %v1117
        %3415 = vmatmul.mubr.bf16.gmra.mrb[0].mxu0 %v1116
        %v3416 = vpop.f32.mrb[0].mxu0
        %v3417 = vadd.f32 %v3329, %v3416
        %v3418 = vpop.f32.mrb[0].mxu0
        %v3419 = vpop.f32.mrb[0].mxu0
        %v3420 = vpop.f32.mrb[0].mxu0
        %3421 = vdwg.mxu0
        %3422 = vmatprep.subr.bf16.mxu0 0
        %3423 = vmatpush1.bf16.msra.mxu0 %v2359
        %3424 = vmatprep.subr.bf16.mxu0 0
        %3425 = vmatpush1.bf16.msra.mxu0 %v2362
        %3426 = vmatprep.subr.bf16.mxu0 0
        %3427 = vmatpush1.bf16.msra.mxu0 %v2365
        %3428 = vmatprep.subr.bf16.mxu0 0
        %3429 = vmatpush1.bf16.msra.mxu0 %v2368
        %3430 = vmatprep.subr.bf16.mxu0 0
        %3431 = vmatpush1.bf16.msra.mxu0 %v2371
        %3432 = vmatprep.subr.bf16.mxu0 0
        %3433 = vmatpush1.bf16.msra.mxu0 %v2374
        %3434 = vmatprep.subr.bf16.mxu0 0
        %3435 = vmatpush1.bf16.msra.mxu0 %v2377
        %3436 = vmatprep.subr.bf16.mxu0 0
        %3437 = vmatpush1.bf16.msra.mxu0 %v2380
        %3438 = vmatprep.subr.bf16.mxu0 0
        %3439 = vmatpush1.bf16.msra.mxu0 %v2383
        %3440 = vmatprep.subr.bf16.mxu0 0
        %3441 = vmatpush1.bf16.msra.mxu0 %v2386
        %3442 = vmatprep.subr.bf16.mxu0 0
        %3443 = vmatpush1.bf16.msra.mxu0 %v2389
        %3444 = vmatprep.subr.bf16.mxu0 0
        %3445 = vmatpush1.bf16.msra.mxu0 %v2392
        %3446 = vmatprep.subr.bf16.mxu0 0
        %3447 = vmatpush1.bf16.msra.mxu0 %v2395
        %3448 = vmatprep.subr.bf16.mxu0 0
        %3449 = vmatpush1.bf16.msra.mxu0 %v2398
        %3450 = vmatprep.subr.bf16.mxu0 0
        %3451 = vmatpush1.bf16.msra.mxu0 %v2401
        %3452 = vmatprep.subr.bf16.mxu0 0
        %3453 = vmatpush1.bf16.msra.mxu0 %v2404
        %3454 = vmatprep.mubr.bf16.mxu0 %v1059
        %3455 = vmatmul.mubr.bf16.gmra.mrb[0].mxu0 %v1058
        %v3456 = vpop.f32.mrb[0].mxu0
        %v3457 = vadd.f32 %v3369, %v3456
        %v3458 = vpop.f32.mrb[0].mxu0
        %v3459 = vpop.f32.mrb[0].mxu0
        %v3460 = vadd.f32 %v3372, %v3459
        %v3461 = vpop.f32.mrb[0].mxu0
        %3462 = vmatprep.mubr.bf16.mxu0 %v1069
        %3463 = vmatmul.mubr.bf16.gmra.mrb[0].mxu0 %v1068
        %v3464 = vpop.f32.mrb[0].mxu0
        %v3465 = vadd.f32 %v3377, %v3464
        %v3466 = vpop.f32.mrb[0].mxu0
        %v3467 = vpop.f32.mrb[0].mxu0
        %v3468 = vadd.f32 %v3380, %v3467
        %v3469 = vpop.f32.mrb[0].mxu0
        %3470 = vmatprep.mubr.bf16.mxu0 %v1079
        %3471 = vmatmul.mubr.bf16.gmra.mrb[0].mxu0 %v1078
        %v3472 = vpop.f32.mrb[0].mxu0
        %v3473 = vadd.f32 %v3385, %v3472
        %v3474 = vpop.f32.mrb[0].mxu0
        %v3475 = vpop.f32.mrb[0].mxu0
        %v3476 = vadd.f32 %v3388, %v3475
        %v3477 = vpop.f32.mrb[0].mxu0
        %3478 = vmatprep.mubr.bf16.mxu0 %v1089
        %3479 = vmatmul.mubr.bf16.gmra.mrb[0].mxu0 %v1088
        %v3480 = vpop.f32.mrb[0].mxu0
        %v3481 = vadd.f32 %v3393, %v3480
        %v3482 = vpop.f32.mrb[0].mxu0
        %v3483 = vpop.f32.mrb[0].mxu0
        %v3484 = vadd.f32 %v3396, %v3483
        %v3485 = vpop.f32.mrb[0].mxu0
        %3486 = vmatprep.mubr.bf16.mxu0 %v1099
        %3487 = vmatmul.mubr.bf16.gmra.mrb[0].mxu0 %v1098
        %v3488 = vpop.f32.mrb[0].mxu0
        %v3489 = vadd.f32 %v3401, %v3488
        %v3490 = vpop.f32.mrb[0].mxu0
        %v3491 = vpop.f32.mrb[0].mxu0
        %v3492 = vadd.f32 %v3404, %v3491
        %v3493 = vpop.f32.mrb[0].mxu0
        %3494 = vmatprep.mubr.bf16.mxu0 %v1109
        %3495 = vmatmul.mubr.bf16.gmra.mrb[0].mxu0 %v1108
        %v3496 = vpop.f32.mrb[0].mxu0
        %v3497 = vadd.f32 %v3409, %v3496
        %v3498 = vpop.f32.mrb[0].mxu0
        %v3499 = vpop.f32.mrb[0].mxu0
        %v3500 = vadd.f32 %v3412, %v3499
        %v3501 = vpop.f32.mrb[0].mxu0
        %3502 = vmatprep.mubr.bf16.mxu0 %v1119
        %3503 = vmatmul.mubr.bf16.gmra.mrb[0].mxu0 %v1118
        %v3504 = vpop.f32.mrb[0].mxu0
        %v3505 = vadd.f32 %v3417, %v3504
        %v3506 = vpop.f32.mrb[0].mxu0
        %v3507 = vpop.f32.mrb[0].mxu0
        %v3508 = vpop.f32.mrb[0].mxu0
        %3509 = vdwg.mxu0
        %3510 = vmatprep.subr.bf16.mxu0 0
        %3511 = vmatpush1.bf16.msra.mxu0 %v2407
        %3512 = vmatprep.subr.bf16.mxu0 0
        %3513 = vmatpush1.bf16.msra.mxu0 %v2410
        %3514 = vmatprep.subr.bf16.mxu0 0
        %3515 = vmatpush1.bf16.msra.mxu0 %v2413
        %3516 = vmatprep.subr.bf16.mxu0 0
        %3517 = vmatpush1.bf16.msra.mxu0 %v2416
        %3518 = vmatprep.subr.bf16.mxu0 0
        %3519 = vmatpush1.bf16.msra.mxu0 %v2419
        %3520 = vmatprep.subr.bf16.mxu0 0
        %3521 = vmatpush1.bf16.msra.mxu0 %v2422
        %3522 = vmatprep.subr.bf16.mxu0 0
        %3523 = vmatpush1.bf16.msra.mxu0 %v2425
        %3524 = vmatprep.subr.bf16.mxu0 0
        %3525 = vmatpush1.bf16.msra.mxu0 %v2428
        %3526 = vmatprep.subr.bf16.mxu0 0
        %3527 = vmatpush1.bf16.msra.mxu0 %v2431
        %3528 = vmatprep.subr.bf16.mxu0 0
        %3529 = vmatpush1.bf16.msra.mxu0 %v2434
        %3530 = vmatprep.subr.bf16.mxu0 0
        %3531 = vmatpush1.bf16.msra.mxu0 %v2437
        %3532 = vmatprep.subr.bf16.mxu0 0
        %3533 = vmatpush1.bf16.msra.mxu0 %v2440
        %3534 = vmatprep.subr.bf16.mxu0 0
        %3535 = vmatpush1.bf16.msra.mxu0 %v2443
        %3536 = vmatprep.subr.bf16.mxu0 0
        %3537 = vmatpush1.bf16.msra.mxu0 %v2446
        %3538 = vmatprep.subr.bf16.mxu0 0
        %3539 = vmatpush1.bf16.msra.mxu0 %v2449
        %3540 = vmatprep.subr.bf16.mxu0 0
        %3541 = vmatpush1.bf16.msra.mxu0 %v2452
        %3542 = vmatprep.mubr.bf16.mxu0 %v1061
        %3543 = vmatmul.mubr.bf16.gmra.mrb[0].mxu0 %v1060
        %v3544 = vpop.f32.mrb[0].mxu0
        %v3545 = vadd.f32 %v3457, %v3544
        %v3546 = vpop.f32.mrb[0].mxu0
        %v3547 = vpop.f32.mrb[0].mxu0
        %v3548 = vadd.f32 %v3460, %v3547
        %v3549 = vpop.f32.mrb[0].mxu0
        %3550 = vmatprep.mubr.bf16.mxu0 %v1071
        %3551 = vmatmul.mubr.bf16.gmra.mrb[0].mxu0 %v1070
        %v3552 = vpop.f32.mrb[0].mxu0
        %v3553 = vadd.f32 %v3465, %v3552
        %v3554 = vpop.f32.mrb[0].mxu0
        %v3555 = vpop.f32.mrb[0].mxu0
        %v3556 = vadd.f32 %v3468, %v3555
        %v3557 = vpop.f32.mrb[0].mxu0
        %3558 = vmatprep.mubr.bf16.mxu0 %v1081
        %3559 = vmatmul.mubr.bf16.gmra.mrb[0].mxu0 %v1080
        %v3560 = vpop.f32.mrb[0].mxu0
        %v3561 = vadd.f32 %v3473, %v3560
        %v3562 = vpop.f32.mrb[0].mxu0
        %v3563 = vpop.f32.mrb[0].mxu0
        %v3564 = vadd.f32 %v3476, %v3563
        %v3565 = vpop.f32.mrb[0].mxu0
        %3566 = vmatprep.mubr.bf16.mxu0 %v1091
        %3567 = vmatmul.mubr.bf16.gmra.mrb[0].mxu0 %v1090
        %v3568 = vpop.f32.mrb[0].mxu0
        %v3569 = vadd.f32 %v3481, %v3568
        %v3570 = vpop.f32.mrb[0].mxu0
        %v3571 = vpop.f32.mrb[0].mxu0
        %v3572 = vadd.f32 %v3484, %v3571
        %v3573 = vpop.f32.mrb[0].mxu0
        %3574 = vmatprep.mubr.bf16.mxu0 %v1101
        %3575 = vmatmul.mubr.bf16.gmra.mrb[0].mxu0 %v1100
        %v3576 = vpop.f32.mrb[0].mxu0
        %v3577 = vadd.f32 %v3489, %v3576
        %v3578 = vpop.f32.mrb[0].mxu0
        %v3579 = vpop.f32.mrb[0].mxu0
        %v3580 = vadd.f32 %v3492, %v3579
        %v3581 = vpop.f32.mrb[0].mxu0
        %3582 = vmatprep.mubr.bf16.mxu0 %v1111
        %3583 = vmatmul.mubr.bf16.gmra.mrb[0].mxu0 %v1110
        %v3584 = vpop.f32.mrb[0].mxu0
        %v3585 = vadd.f32 %v3497, %v3584
        %v3586 = vpop.f32.mrb[0].mxu0
        %v3587 = vpop.f32.mrb[0].mxu0
        %v3588 = vadd.f32 %v3500, %v3587
        %v3589 = vpop.f32.mrb[0].mxu0
        %3590 = vmatprep.mubr.bf16.mxu0 %v1121
        %3591 = vmatmul.mubr.bf16.gmra.mrb[0].mxu0 %v1120
        %v3592 = vpop.f32.mrb[0].mxu0
        %v3593 = vadd.f32 %v3505, %v3592
        %v3594 = vpop.f32.mrb[0].mxu0
        %v3595 = vpop.f32.mrb[0].mxu0
        %v3596 = vpop.f32.mrb[0].mxu0
        %3597 = vdwg.mxu0
        %3598 = vmatprep.subr.bf16.mxu0 0
        %3599 = vmatpush1.bf16.msra.mxu0 %v2455
        %3600 = vmatprep.subr.bf16.mxu0 0
        %3601 = vmatpush1.bf16.msra.mxu0 %v2458
        %3602 = vmatprep.subr.bf16.mxu0 0
        %3603 = vmatpush1.bf16.msra.mxu0 %v2461
        %3604 = vmatprep.subr.bf16.mxu0 0
        %3605 = vmatpush1.bf16.msra.mxu0 %v2464
        %3606 = vmatprep.subr.bf16.mxu0 0
        %3607 = vmatpush1.bf16.msra.mxu0 %v2467
        %3608 = vmatprep.subr.bf16.mxu0 0
        %3609 = vmatpush1.bf16.msra.mxu0 %v2470
        %3610 = vmatprep.subr.bf16.mxu0 0
        %3611 = vmatpush1.bf16.msra.mxu0 %v2473
        %3612 = vmatprep.subr.bf16.mxu0 0
        %3613 = vmatpush1.bf16.msra.mxu0 %v2476
        %3614 = vmatprep.subr.bf16.mxu0 0
        %3615 = vmatpush1.bf16.msra.mxu0 %v2479
        %3616 = vmatprep.subr.bf16.mxu0 0
        %3617 = vmatpush1.bf16.msra.mxu0 %v2482
        %3618 = vmatprep.subr.bf16.mxu0 0
        %3619 = vmatpush1.bf16.msra.mxu0 %v2485
        %3620 = vmatprep.subr.bf16.mxu0 0
        %3621 = vmatpush1.bf16.msra.mxu0 %v2488
        %3622 = vmatprep.subr.bf16.mxu0 0
        %3623 = vmatpush1.bf16.msra.mxu0 %v2491
        %3624 = vmatprep.subr.bf16.mxu0 0
        %3625 = vmatpush1.bf16.msra.mxu0 %v2494
        %3626 = vmatprep.subr.bf16.mxu0 0
        %3627 = vmatpush1.bf16.msra.mxu0 %v2497
        %3628 = vmatprep.subr.bf16.mxu0 0
        %3629 = vmatpush1.bf16.msra.mxu0 %v2500
        %3630 = vmatprep.mubr.bf16.mxu0 %v1063
        %3631 = vmatmul.mubr.bf16.gmra.mrb[0].mxu0 %v1062
        %v3632 = vpop.f32.mrb[0].mxu0
        %v3633 = vadd.f32 %v3545, %v3632
        %v3634 = vpop.f32.mrb[0].mxu0
        %v3635 = vpop.f32.mrb[0].mxu0
        %v3636 = vadd.f32 %v3548, %v3635
        %v3637 = vpop.f32.mrb[0].mxu0
        %3638 = vmatprep.mubr.bf16.mxu0 %v1073
        %3639 = vmatmul.mubr.bf16.gmra.mrb[0].mxu0 %v1072
        %v3640 = vpop.f32.mrb[0].mxu0
        %v3641 = vadd.f32 %v3553, %v3640
        %v3642 = vpop.f32.mrb[0].mxu0
        %v3643 = vpop.f32.mrb[0].mxu0
        %v3644 = vadd.f32 %v3556, %v3643
        %v3645 = vpop.f32.mrb[0].mxu0
        %3646 = vmatprep.mubr.bf16.mxu0 %v1083
        %3647 = vmatmul.mubr.bf16.gmra.mrb[0].mxu0 %v1082
        %v3648 = vpop.f32.mrb[0].mxu0
        %v3649 = vadd.f32 %v3561, %v3648
        %v3650 = vpop.f32.mrb[0].mxu0
        %v3651 = vpop.f32.mrb[0].mxu0
        %v3652 = vadd.f32 %v3564, %v3651
        %v3653 = vpop.f32.mrb[0].mxu0
        %3654 = vmatprep.mubr.bf16.mxu0 %v1093
        %3655 = vmatmul.mubr.bf16.gmra.mrb[0].mxu0 %v1092
        %v3656 = vpop.f32.mrb[0].mxu0
        %v3657 = vadd.f32 %v3569, %v3656
        %v3658 = vpop.f32.mrb[0].mxu0
        %v3659 = vpop.f32.mrb[0].mxu0
        %v3660 = vadd.f32 %v3572, %v3659
        %v3661 = vpop.f32.mrb[0].mxu0
        %3662 = vmatprep.mubr.bf16.mxu0 %v1103
        %3663 = vmatmul.mubr.bf16.gmra.mrb[0].mxu0 %v1102
        %v3664 = vpop.f32.mrb[0].mxu0
        %v3665 = vadd.f32 %v3577, %v3664
        %v3666 = vpop.f32.mrb[0].mxu0
        %v3667 = vpop.f32.mrb[0].mxu0
        %v3668 = vadd.f32 %v3580, %v3667
        %v3669 = vpop.f32.mrb[0].mxu0
        %3670 = vmatprep.mubr.bf16.mxu0 %v1113
        %3671 = vmatmul.mubr.bf16.gmra.mrb[0].mxu0 %v1112
        %v3672 = vpop.f32.mrb[0].mxu0
        %v3673 = vadd.f32 %v3585, %v3672
        %v3674 = vpop.f32.mrb[0].mxu0
        %v3675 = vpop.f32.mrb[0].mxu0
        %v3676 = vadd.f32 %v3588, %v3675
        %v3677 = vpop.f32.mrb[0].mxu0
        %3678 = vmatprep.mubr.bf16.mxu0 %v1123
        %3679 = vmatmul.mubr.bf16.gmra.mrb[0].mxu0 %v1122
        %v3680 = vpop.f32.mrb[0].mxu0
        %v3681 = vadd.f32 %v3593, %v3680
        %v3682 = vpop.f32.mrb[0].mxu0
        %v3683 = vpop.f32.mrb[0].mxu0
        %v3684 = vpop.f32.mrb[0].mxu0
        %3685 = vdwg.mxu0
        %3686 = vst [vmem:[%s233] sm:$0xff] %v3180
        %3687 = vst [vmem:[%s233 + $0x8] sm:$0xff] %v3182
        %3688 = vst [vmem:[%s233 + $0x10] sm:$0xff] %v3633
        %3689 = vst [vmem:[%s233 + $0x18] sm:$0xff] %v3184
        %3690 = vst [vmem:[%s233 + $0x20] sm:$0xff] %v3186
        %3691 = vst [vmem:[%s233 + $0x28] sm:$0xff] %v3636
        %3692 = vst [vmem:[%s233 + $0x30] sm:$0xff] %v3190
        %3693 = vst [vmem:[%s233 + $0x38] sm:$0xff] %v3192
        %3694 = vst [vmem:[%s233 + $0x40] sm:$0xff] %v3641
        %3695 = vst [vmem:[%s233 + $0x48] sm:$0xff] %v3194
        %3696 = vst [vmem:[%s233 + $0x50] sm:$0xff] %v3196
        %3697 = vst [vmem:[%s233 + $0x58] sm:$0xff] %v3644
        %3698 = vst [vmem:[%s233 + $0x60] sm:$0xff] %v3200
        %3699 = vst [vmem:[%s233 + $0x68] sm:$0xff] %v3202
        %3700 = vst [vmem:[%s233 + $0x70] sm:$0xff] %v3649
        %3701 = vst [vmem:[%s233 + $0x78] sm:$0xff] %v3204
        %3702 = vst [vmem:[%s233 + $0x80] sm:$0xff] %v3206
        %3703 = vst [vmem:[%s233 + $0x88] sm:$0xff] %v3652
        %3704 = vst [vmem:[%s233 + $0x90] sm:$0xff] %v3210
        %3705 = vst [vmem:[%s233 + $0x98] sm:$0xff] %v3212
        %3706 = vst [vmem:[%s233 + $0xa0] sm:$0xff] %v3657
        %3707 = vst [vmem:[%s233 + $0xa8] sm:$0xff] %v3214
        %3708 = vst [vmem:[%s233 + $0xb0] sm:$0xff] %v3216
        %3709 = vst [vmem:[%s233 + $0xb8] sm:$0xff] %v3660
        %3710 = vst [vmem:[%s233 + $0xc0] sm:$0xff] %v3220
        %3711 = vst [vmem:[%s233 + $0xc8] sm:$0xff] %v3222
        %3712 = vst [vmem:[%s233 + $0xd0] sm:$0xff] %v3665
        %3713 = vst [vmem:[%s233 + $0xd8] sm:$0xff] %v3224
        %3714 = vst [vmem:[%s233 + $0xe0] sm:$0xff] %v3226
        %3715 = vst [vmem:[%s233 + $0xe8] sm:$0xff] %v3668
        %3716 = vst [vmem:[%s233 + $0xf0] sm:$0xff] %v3230
        %3717 = vst [vmem:[%s233 + $0xf8] sm:$0xff] %v3232
        %3718 = vst [vmem:[%s233 + $0x100] sm:$0xff] %v3673
        %3719 = vst [vmem:[%s233 + $0x108] sm:$0xff] %v3234
        %3720 = vst [vmem:[%s233 + $0x110] sm:$0xff] %v3236
        %3721 = vst [vmem:[%s233 + $0x118] sm:$0xff] %v3676
        %3722 = vst [vmem:[%s233 + $0x120] sm:$0xff] %v3240
        %3723 = vst [vmem:[%s233 + $0x128] sm:$0xff] %v3242
        %3724 = vst [vmem:[%s233 + $0x130] sm:$0xff] %v3681
        %s3725 = sand.u32 %s138, 1
        %s3726 = scalar_lea.sflag [#allocation4], %s3725
        %s3727 = sand.u32 %s138, 1
        %s3728 = smul.addr %s3727, 312
        %s3729 = scalar_lea.vmem [#allocation5], %s3728
        // Predicated region
        $region45: #{tpu_custom_call.1} parent=39 // pred_check
          %p3730 = pneg %p148
        $region46: #{tpu_custom_call.1} parent=39 // pred_check_branch
          %3732 = sbr.rel (%p3730) target = $region48
        $region47: #{tpu_custom_call.1} parent=39 // pred_region
          %s3733 = smul.u32 13, %s20
          %s3735 = ssub.s32 4992, 4992
          %3736 = vsyncadd %s3726, %s3735
          %s3737 = smul.addr %s3733, 3
          %s3738 = smul.addr %s3737, 128
          %s3739 = scalar_lea.hbm %s5, %s3738
          %s3740 = sshll.u32 %s3729, 4
          %s3741 = int_to_ptr.vmem [resolvable:$true] %s3740
          %3746 = dma.vmem_to_hbm [thread:$0]  %s3741, 4992, %s3739, %s3726, 384, 384, 24
        $region48: #{tpu_custom_call.1} parent=39 // pred_fallthru
          _
      $region40: #{tpu_custom_call.1} parent=5 // pred_fallthru
        _
      %p3747 = scmp.le.s32.totalorder 2, %s15
      // Predicated region
      $region49: #{tpu_custom_call.1} parent=5 // pred_check
        %p3748 = pneg %p3747
      $region50: #{tpu_custom_call.1} parent=5 // pred_check_branch
        %3750 = sbr.rel (%p3748) target = $region52
      $region51: #{tpu_custom_call.1} parent=5 // pred_region
        %s3751 = ssub.s32 %s15, 2
        // Predicated region
        $region53: #{tpu_custom_call.1} parent=51 // pred_check
          %p3752 = pneg %p154
        $region54: #{tpu_custom_call.1} parent=51 // pred_check_branch
          %3754 = sbr.rel (%p3752) target = $region56
        $region55: #{tpu_custom_call.1} parent=51 // pred_region
          %s3755 = sand.u32 %s139, 1
          %s3756 = scalar_lea.sflag [#allocation4], %s3755
          %s3757 = sand.u32 %s139, 1
          %s3758 = smul.addr %s3757, 312
          %s3759 = scalar_lea.vmem [#allocation5], %s3758
          %3760 = dma.done %s3756, 4992
        $region56: #{tpu_custom_call.1} parent=51 // pred_fallthru
          _
      $region52: #{tpu_custom_call.1} parent=5 // pred_fallthru
        _
    $region6: #{tpu_custom_call.1} parent=1 // loop_footer
      %s19 = sadd.s32 1, %s15
    $region7: #{tpu_custom_call.1} parent=1 // loop_footer_branch
      %14 = sbr.rel target = $region3
    $region8: #{tpu_custom_call.1} parent=1 // loop_exit
      _
    %3761 = vsyncpa [#allocation3], 1
    %s3762 = scalar_lea.sflag [#allocation3], 1
    %3763 = vsyncpa %s3762, 1
    %3764 = vsyncpa [#allocation4], 1
    %s3765 = scalar_lea.sflag [#allocation4], 1
    %3766 = vsyncpa %s3765, 1

</llo_original>
